<compile_context>
chip_gen: v6e
topology: v6e:2x2x1
jax: 0.10.0
libtpu: 0.0.40
codegen_flags: <defaults>
</compile_context>

<pallas_src>
import functools

import jax
import jax.numpy as jnp
from jax.experimental import pallas as pl
from jax.experimental.pallas import tpu as pltpu

EPS = 1e-5
LANE = 128
VMEM_LIMIT = 32 * 1024 * 1024  # explicit scoped-VMEM budget (safe on v5e/v6e/v7x)


def _round_up(x, m):
    return (x + m - 1) // m * m


# ----------------------------- Pallas kernels ------------------------------

def _gemm_stats_kernel(x_ref, w_ref, y_ref, sum_ref, ssq_ref):
    """(TILE_M, K) @ (K, Npad) GEMM tile; accumulates per-channel sum / sum^2
    across the m-tile grid axis (axis 1, 'arbitrary')."""
    @pl.when(pl.program_id(1) == 0)
    def _():
        sum_ref[...] = jnp.zeros_like(sum_ref)
        ssq_ref[...] = jnp.zeros_like(ssq_ref)

    y = jnp.dot(x_ref[...], w_ref[...], preferred_element_type=jnp.float32)
    y_ref[...] = y.astype(y_ref.dtype)
    sum_ref[...] = sum_ref[...] + jnp.sum(y, axis=0, keepdims=True)
    ssq_ref[...] = ssq_ref[...] + jnp.sum(y * y, axis=0, keepdims=True)


def _bn_relu_kernel(y_ref, scale_ref, shift_ref, o_ref):
    """Fused BN affine + ReLU: o = max(y*scale + shift, 0) (scale/shift folded)."""
    y = y_ref[...].astype(jnp.float32)
    o = jnp.maximum(y * scale_ref[...] + shift_ref[...], 0.0)
    o_ref[...] = o.astype(o_ref.dtype)


def _gemm_tanh_kernel(x_ref, w_ref, o_ref):
    y = jnp.dot(x_ref[...], w_ref[...], preferred_element_type=jnp.float32)
    o_ref[...] = jnp.tanh(y).astype(o_ref.dtype)


# --------------------------- pallas_call wrappers ---------------------------

def _pick_tile_m(M, K, Npad, in_bytes):
    budget = VMEM_LIMIT // 2
    tile = 8
    for cand in (512, 256, 128, 64, 32, 16, 8):
        fp = (2 * (cand * K + K * Npad) * in_bytes   # x + w, double-buffered
              + 2 * cand * Npad * 4                  # y out, double-buffered
              + 4 * 8 * Npad * 4)                    # stats accumulators
        if fp <= budget:
            tile = cand
            break
    return min(tile, _round_up(M, 8))


def _gemm_stats(patches, weights, tile_m):
    P, Mpad, K = patches.shape
    Npad = weights.shape[2]
    grid = (P, Mpad // tile_m)
    return pl.pallas_call(
        _gemm_stats_kernel,
        out_shape=(
            jax.ShapeDtypeStruct((P, Mpad, Npad), patches.dtype),
            jax.ShapeDtypeStruct((P, 8, Npad), jnp.float32),
            jax.ShapeDtypeStruct((P, 8, Npad), jnp.float32),
        ),
        grid=grid,
        in_specs=[
            pl.BlockSpec((None, tile_m, K), lambda ph, mi: (ph, mi, 0)),
            pl.BlockSpec((None, K, Npad), lambda ph, mi: (ph, 0, 0)),
        ],
        out_specs=(
            pl.BlockSpec((None, tile_m, Npad), lambda ph, mi: (ph, mi, 0)),
            pl.BlockSpec((None, 8, Npad), lambda ph, mi: (ph, 0, 0)),
            pl.BlockSpec((None, 8, Npad), lambda ph, mi: (ph, 0, 0)),
        ),
        compiler_params=pltpu.CompilerParams(
            dimension_semantics=("parallel", "arbitrary"),
            vmem_limit_bytes=VMEM_LIMIT),
    )(patches, weights)


def _bn_relu(y, scale, shift, tile_m):
    P, Mpad, Npad = y.shape
    grid = (P, Mpad // tile_m)
    return pl.pallas_call(
        _bn_relu_kernel,
        out_shape=jax.ShapeDtypeStruct((P, Mpad, Npad), y.dtype),
        grid=grid,
        in_specs=[
            pl.BlockSpec((None, tile_m, Npad), lambda ph, mi: (ph, mi, 0)),
            pl.BlockSpec((1, Npad), lambda ph, mi: (0, 0)),
            pl.BlockSpec((1, Npad), lambda ph, mi: (0, 0)),
        ],
        out_specs=pl.BlockSpec((None, tile_m, Npad), lambda ph, mi: (ph, mi, 0)),
        compiler_params=pltpu.CompilerParams(
            dimension_semantics=("parallel", "parallel"),
            vmem_limit_bytes=VMEM_LIMIT),
    )(y, scale, shift)


def _gemm_tanh(patches, weights, tile_m):
    P, Mpad, K = patches.shape
    Npad = weights.shape[2]
    grid = (P, Mpad // tile_m)
    return pl.pallas_call(
        _gemm_tanh_kernel,
        out_shape=jax.ShapeDtypeStruct((P, Mpad, Npad), jnp.float32),
        grid=grid,
        in_specs=[
            pl.BlockSpec((None, tile_m, K), lambda ph, mi: (ph, mi, 0)),
            pl.BlockSpec((None, K, Npad), lambda ph, mi: (ph, 0, 0)),
        ],
        out_specs=pl.BlockSpec((None, tile_m, Npad), lambda ph, mi: (ph, mi, 0)),
        compiler_params=pltpu.CompilerParams(
            dimension_semantics=("parallel", "parallel"),
            vmem_limit_bytes=VMEM_LIMIT),
    )(patches, weights)


# ------------------------------ JAX glue ------------------------------------
# ConvT(K=4, s=2, pad=p) output phase (r,c):
#   out[2a+r, 2b+c] = sum_{dh,dw in {0,1}} in[a + r*p - 1 + dh, b + c*p - 1 + dw]
#                     * W[:, :, kh(p,r,dh), kw(p,c,dw)]
#   kh = (3 if r != p else 2) - 2*dh  (same for kw with c, dw)
# Out-of-range inputs are zero -> pad the input by 1 and take 4 shifted slices.

def _phase_patches(x_nhwc, pad, compute_dtype):
    B, H, W, C = x_nhwc.shape
    Ph, Pw = H + 1 - pad, W + 1 - pad
    xp = jnp.pad(x_nhwc, ((0, 0), (1, 1), (1, 1), (0, 0)))
    phases = []
    for r in (0, 1):
        for c in (0, 1):
            taps = []
            for dh in (0, 1):
                sh = dh + r * pad
                for dw in (0, 1):
                    sw = dw + c * pad
                    taps.append(xp[:, sh:sh + Ph, sw:sw + Pw, :])
            phases.append(jnp.concatenate(taps, axis=-1).reshape(B * Ph * Pw, 4 * C))
    patches = jnp.stack(phases, axis=0).astype(compute_dtype)   # (4, M, 4*Cin)
    return patches, (B, Ph, Pw)


def _phase_weights(w_t, pad, n_pad, compute_dtype):
    # w_t: PyTorch ConvTranspose2d weight (Cin, Cout, 4, 4)
    Cin, Cout = w_t.shape[0], w_t.shape[1]
    phases = []
    for r in (0, 1):
        for c in (0, 1):
            taps = []
            for dh in (0, 1):
                kh = (3 if r != pad else 2) - 2 * dh
                for dw in (0, 1):
                    kw = (3 if c != pad else 2) - 2 * dw
                    taps.append(w_t[:, :, kh, kw])                 # (Cin, Cout)
            phases.append(jnp.stack(taps, 0).reshape(4 * Cin, Cout))  # rows [dh,dw,ci]
    w = jnp.stack(phases, axis=0)                                  # (4, 4*Cin, Cout)
    w = jnp.pad(w, ((0, 0), (0, 0), (0, n_pad - Cout)))            # lane-dense N
    return w.astype(compute_dtype)


def _interleave_phases(y, dims, cout):
    # y: (4, Mpad, Npad), phase index = r*2 + c  ->  (B, 2*Ph, 2*Pw, cout)
    B, Ph, Pw = dims
    M = B * Ph * Pw
    y = y[:, :M, :cout].reshape(2, 2, B, Ph, Pw, cout)
    y = jnp.transpose(y, (2, 3, 0, 4, 1, 5))        # (B, Ph, r, Pw, c, cout)
    return y.reshape(B, 2 * Ph, 2 * Pw, cout)


def _convt_layer(x, w_t, pad, *, gamma=None, beta=None, final_tanh=False,
                 compute_dtype=jnp.bfloat16):
    Cout = w_t.shape[1]
    patches, (B, Ph, Pw) = _phase_patches(x, pad, compute_dtype)
    M = B * Ph * Pw
    K = patches.shape[2]
    Npad = _round_up(Cout, LANE)
    tile_m = _pick_tile_m(M, K, Npad, jnp.dtype(compute_dtype).itemsize)
    Mpad = _round_up(M, tile_m)
    if Mpad != M:
        patches = jnp.pad(patches, ((0, 0), (0, Mpad - M), (0, 0)))
    weights = _phase_weights(w_t, pad, Npad, compute_dtype)

    if final_tanh:
        y = _gemm_tanh(patches, weights, tile_m)
        return _interleave_phases(y, (B, Ph, Pw), Cout)

    y, s, ss = _gemm_stats(patches, weights, tile_m)
    count = 4.0 * M                       # = B*OH*OW (zero-padded rows contribute 0)
    total = jnp.sum(s[:, 0, :], axis=0)
    total_sq = jnp.sum(ss[:, 0, :], axis=0)
    mean = total / count
    var = jnp.maximum(total_sq / count - mean * mean, 0.0)   # biased var (PyTorch BN)
    # TODO(synk): E[x^2]-E[x]^2 in f32 can lose precision at production M; use a
    # two-pass / Welford reduction there.
    scale = jnp.pad(gamma, (0, Npad - Cout)) * jax.lax.rsqrt(var + EPS)
    shift = jnp.pad(beta, (0, Npad - Cout)) - mean * scale
    out = _bn_relu(y, scale.reshape(1, Npad).astype(jnp.float32),
                   shift.reshape(1, Npad).astype(jnp.float32), tile_m)
    return _interleave_phases(out, (B, Ph, Pw), Cout)


def init_params(key, in_size, feature_size, channel_size):
    chans = [in_size, feature_size * 8, feature_size * 4,
             feature_size * 2, feature_size, channel_size]
    keys = jax.random.split(key, 5)
    weights, gammas, betas = [], [], []
    for li in range(5):
        cin, cout = chans[li], chans[li + 1]
        weights.append(0.02 * jax.random.normal(keys[li], (cin, cout, 4, 4), jnp.float32))
        if li < 4:
            gammas.append(jnp.ones((cout,), jnp.float32))
            betas.append(jnp.zeros((cout,), jnp.float32))
    return {"w": weights, "gamma": gammas, "beta": betas}


def generator2d_forward(x_nchw, params, compute_dtype=jnp.bfloat16):
    """NCHW in -> NCHW out (training-mode BN, matching the PyTorch forward)."""
    x = jnp.transpose(x_nchw, (0, 2, 3, 1)).astype(jnp.float32)   # NHWC throughout
    pads = (0, 1, 1, 1, 1)
    for li in range(4):
        x = _convt_layer(x, params["w"][li], pads[li],
                         gamma=params["gamma"][li], beta=params["beta"][li],
                         compute_dtype=compute_dtype)
    x = _convt_layer(x, params["w"][4], pads[4], final_tanh=True,
                     compute_dtype=compute_dtype)
    return jnp.transpose(x, (0, 3, 1, 2)).astype(jnp.float32)


# --------------------------- pure-JAX reference ------------------------------

def _reference_forward(x_nchw, params):
    x = jnp.transpose(x_nchw, (0, 2, 3, 1)).astype(jnp.float32)
    cfgs = [(2, 0), (2, 1), (2, 1), (2, 1), (2, 1)]
    for li, (s, p) in enumerate(cfgs):
        w_t = params["w"][li]
        Kk = w_t.shape[2]
        w_hwio = jnp.transpose(jnp.flip(w_t, (2, 3)), (2, 3, 0, 1))
        y = jax.lax.conv_general_dilated(
            x, w_hwio, window_strides=(1, 1),
            padding=[(Kk - 1 - p, Kk - 1 - p)] * 2, lhs_dilation=(s, s),
            dimension_numbers=("NHWC", "HWIO", "NHWC"))
        if li < 4:
            mean = jnp.mean(y, axis=(0, 1, 2), keepdims=True)
            var = jnp.mean(jnp.square(y - mean), axis=(0, 1, 2), keepdims=True)
            g = params["gamma"][li].reshape(1, 1, 1, -1)
            b = params["beta"][li].reshape(1, 1, 1, -1)
            x = jnp.maximum((y - mean) * jax.lax.rsqrt(var + EPS) * g + b, 0.0)
        else:
            x = jnp.tanh(y)
    return jnp.transpose(x, (0, 3, 1, 2))


if __name__ == "__main__":
    in_size, feature_size, channel_size = 8, 4, 3   # nz=8, ngf=4, nc=3
    key = jax.random.PRNGKey(0)
    k_in, k_par = jax.random.split(key)

    params = init_params(k_par, in_size, feature_size, channel_size)
    x = jax.random.normal(k_in, (2, in_size, 1, 1), jnp.float32)   # DCGAN latent

    # Structural correctness: f32 compute path vs pure-JAX reference.
    out_f32 = jax.jit(functools.partial(generator2d_forward,
                                        compute_dtype=jnp.float32))(x, params)
    ref = jax.jit(_reference_forward)(x, params)
    out_f32, ref = jax.block_until_ready((out_f32, ref))
    assert out_f32.shape == (2, channel_size, 64, 64), out_f32.shape
    max_err = float(jnp.max(jnp.abs(out_f32 - ref)))
    assert max_err < 1e-2, f"mismatch vs reference: {max_err}"

    # Default (bf16 MXU inputs, f32 accumulation) path.
    out = jax.jit(generator2d_forward)(x, params)
    out = jax.block_until_ready(out)
    assert out.shape == (2, channel_size, 64, 64), out.shape
    assert bool(jnp.all(jnp.isfinite(out)))
    assert bool(jnp.all(jnp.abs(out) <= 1.0 + 1e-6))   # tanh range
    print("KERNEL_OK")
</pallas_src>

<mosaic_0001>
module attributes {stable_mosaic.version = 11 : i64} {
  func.func @_gemm_stats_kernel(%arg0: i32, %arg1: i32, %arg2: memref<1x8x32xf32, #tpu.memory_space<vmem>>, %arg3: memref<1x32x128xf32, #tpu.memory_space<vmem>>, %arg4: memref<1x8x128xf32, #tpu.memory_space<vmem>>, %arg5: memref<1x8x128xf32, #tpu.memory_space<vmem>>, %arg6: memref<1x8x128xf32, #tpu.memory_space<vmem>>) attributes {dimension_semantics = [#tpu.dimension_semantics<parallel>, #tpu.dimension_semantics<arbitrary>], iteration_bounds = array<i64: 4, 1>, scalar_prefetch = 0 : i64, scratch_operands = 0 : i64, tpu.core_type = #tpu.core_type<tc>, window_params = [{transform_indices = @transform_0, window_bounds = array<i64: 1, 8, 32>}, {transform_indices = @transform_1, window_bounds = array<i64: 1, 32, 128>}, {transform_indices = @transform_2, window_bounds = array<i64: 1, 8, 128>}, {transform_indices = @transform_3, window_bounds = array<i64: 1, 8, 128>}, {transform_indices = @transform_4, window_bounds = array<i64: 1, 8, 128>}]} {
    %c0_i32 = arith.constant 0 : i32
    %0 = arith.cmpi eq, %arg1, %c0_i32 : i32
    %1 = arith.extui %0 : i1 to i32
    %c0_i32_0 = arith.constant 0 : i32
    %2 = arith.cmpi ne, %1, %c0_i32_0 : i32
    scf.if %2 {
      %cst_23 = arith.constant 0.000000e+00 : f32
      %30 = vector.broadcast %cst_23 : f32 to vector<8x128xf32>
      %c0_24 = arith.constant 0 : index
      %c0_25 = arith.constant 0 : index
      %c0_26 = arith.constant 0 : index
      %31 = vector.load %arg5[%c0_24, %c0_25, %c0_26] : memref<1x8x128xf32, #tpu.memory_space<vmem>>, vector<1x8x128xf32>
      %32 = vector.shape_cast %31 : vector<1x8x128xf32> to vector<8x128xf32>
      %33 = vector.shape_cast %30 : vector<8x128xf32> to vector<1x8x128xf32>
      tpu.vector_store %arg5[%c0_24, %c0_25, %c0_26], %33 {strides = array<i32>} : memref<1x8x128xf32, #tpu.memory_space<vmem>>, vector<1x8x128xf32>,
      %cst_27 = arith.constant 0.000000e+00 : f32
      %34 = vector.broadcast %cst_27 : f32 to vector<8x128xf32>
      %c0_28 = arith.constant 0 : index
      %c0_29 = arith.constant 0 : index
      %c0_30 = arith.constant 0 : index
      %35 = vector.load %arg6[%c0_28, %c0_29, %c0_30] : memref<1x8x128xf32, #tpu.memory_space<vmem>>, vector<1x8x128xf32>
      %36 = vector.shape_cast %35 : vector<1x8x128xf32> to vector<8x128xf32>
      %37 = vector.shape_cast %34 : vector<8x128xf32> to vector<1x8x128xf32>
      tpu.vector_store %arg6[%c0_28, %c0_29, %c0_30], %37 {strides = array<i32>} : memref<1x8x128xf32, #tpu.memory_space<vmem>>, vector<1x8x128xf32>,
    } else {
    }
    %c0 = arith.constant 0 : index
    %c0_1 = arith.constant 0 : index
    %c0_2 = arith.constant 0 : index
    %3 = vector.load %arg2[%c0, %c0_1, %c0_2] : memref<1x8x32xf32, #tpu.memory_space<vmem>>, vector<1x8x32xf32>
    %4 = vector.shape_cast %3 : vector<1x8x32xf32> to vector<8x32xf32>
    %c0_3 = arith.constant 0 : index
    %c0_4 = arith.constant 0 : index
    %c0_5 = arith.constant 0 : index
    %5 = vector.load %arg3[%c0_3, %c0_4, %c0_5] : memref<1x32x128xf32, #tpu.memory_space<vmem>>, vector<1x32x128xf32>
    %6 = vector.shape_cast %5 : vector<1x32x128xf32> to vector<32x128xf32>
    %cst = arith.constant dense<0.000000e+00> : vector<8x128xf32>
    %7 = tpu.matmul %4, %6, %cst {dimension_numbers = #tpu.dot_dimension_numbers<[1], [0], [0], [1], [0, 0, 1, 1], [], []>} : vector<8x32xf32>, vector<32x128xf32>, vector<8x128xf32> -> vector<8x128xf32>
    %c0_6 = arith.constant 0 : index
    %c0_7 = arith.constant 0 : index
    %c0_8 = arith.constant 0 : index
    %8 = vector.load %arg4[%c0_6, %c0_7, %c0_8] : memref<1x8x128xf32, #tpu.memory_space<vmem>>, vector<1x8x128xf32>
    %9 = vector.shape_cast %8 : vector<1x8x128xf32> to vector<8x128xf32>
    %10 = vector.shape_cast %7 : vector<8x128xf32> to vector<1x8x128xf32>
    tpu.vector_store %arg4[%c0_6, %c0_7, %c0_8], %10 {strides = array<i32>} : memref<1x8x128xf32, #tpu.memory_space<vmem>>, vector<1x8x128xf32>,
    %c0_9 = arith.constant 0 : index
    %c0_10 = arith.constant 0 : index
    %c0_11 = arith.constant 0 : index
    %11 = vector.load %arg5[%c0_9, %c0_10, %c0_11] : memref<1x8x128xf32, #tpu.memory_space<vmem>>, vector<1x8x128xf32>
    %12 = vector.shape_cast %11 : vector<1x8x128xf32> to vector<8x128xf32>
    %cst_12 = arith.constant dense<0.000000e+00> : vector<128xf32>
    %13 = vector.multi_reduction <add>, %7, %cst_12 [0] : vector<8x128xf32> to vector<128xf32>
    %14 = vector.shape_cast %13 : vector<128xf32> to vector<1x128xf32>
    %15 = vector.broadcast %14 : vector<1x128xf32> to vector<8x128xf32>
    %16 = arith.addf %12, %15 : vector<8x128xf32>
    %c0_13 = arith.constant 0 : index
    %c0_14 = arith.constant 0 : index
    %c0_15 = arith.constant 0 : index
    %17 = vector.load %arg5[%c0_13, %c0_14, %c0_15] : memref<1x8x128xf32, #tpu.memory_space<vmem>>, vector<1x8x128xf32>
    %18 = vector.shape_cast %17 : vector<1x8x128xf32> to vector<8x128xf32>
    %19 = vector.shape_cast %16 : vector<8x128xf32> to vector<1x8x128xf32>
    tpu.vector_store %arg5[%c0_13, %c0_14, %c0_15], %19 {strides = array<i32>} : memref<1x8x128xf32, #tpu.memory_space<vmem>>, vector<1x8x128xf32>,
    %c0_16 = arith.constant 0 : index
    %c0_17 = arith.constant 0 : index
    %c0_18 = arith.constant 0 : index
    %20 = vector.load %arg6[%c0_16, %c0_17, %c0_18] : memref<1x8x128xf32, #tpu.memory_space<vmem>>, vector<1x8x128xf32>
    %21 = vector.shape_cast %20 : vector<1x8x128xf32> to vector<8x128xf32>
    %22 = arith.mulf %7, %7 : vector<8x128xf32>
    %cst_19 = arith.constant dense<0.000000e+00> : vector<128xf32>
    %23 = vector.multi_reduction <add>, %22, %cst_19 [0] : vector<8x128xf32> to vector<128xf32>
    %24 = vector.shape_cast %23 : vector<128xf32> to vector<1x128xf32>
    %25 = vector.broadcast %24 : vector<1x128xf32> to vector<8x128xf32>
    %26 = arith.addf %21, %25 : vector<8x128xf32>
    %c0_20 = arith.constant 0 : index
    %c0_21 = arith.constant 0 : index
    %c0_22 = arith.constant 0 : index
    %27 = vector.load %arg6[%c0_20, %c0_21, %c0_22] : memref<1x8x128xf32, #tpu.memory_space<vmem>>, vector<1x8x128xf32>
    %28 = vector.shape_cast %27 : vector<1x8x128xf32> to vector<8x128xf32>
    %29 = vector.shape_cast %26 : vector<8x128xf32> to vector<1x8x128xf32>
    tpu.vector_store %arg6[%c0_20, %c0_21, %c0_22], %29 {strides = array<i32>} : memref<1x8x128xf32, #tpu.memory_space<vmem>>, vector<1x8x128xf32>,
    return
  }
  func.func @transform_0(%arg0: i32, %arg1: i32) -> (i32, i32, i32) {
    %c0_i32 = arith.constant 0 : i32
    %c0_i32_0 = arith.constant 0 : i32
    return %arg0, %arg1, %c0_i32 : i32, i32, i32
  }
  func.func @transform_1(%arg0: i32, %arg1: i32) -> (i32, i32, i32) {
    %c0_i32 = arith.constant 0 : i32
    %c0_i32_0 = arith.constant 0 : i32
    %c0_i32_1 = arith.constant 0 : i32
    return %arg0, %c0_i32, %c0_i32_0 : i32, i32, i32
  }
  func.func @transform_2(%arg0: i32, %arg1: i32) -> (i32, i32, i32) {
    %c0_i32 = arith.constant 0 : i32
    %c0_i32_0 = arith.constant 0 : i32
    return %arg0, %arg1, %c0_i32 : i32, i32, i32
  }
  func.func @transform_3(%arg0: i32, %arg1: i32) -> (i32, i32, i32) {
    %c0_i32 = arith.constant 0 : i32
    %c0_i32_0 = arith.constant 0 : i32
    %c0_i32_1 = arith.constant 0 : i32
    return %arg0, %c0_i32, %c0_i32_0 : i32, i32, i32
  }
  func.func @transform_4(%arg0: i32, %arg1: i32) -> (i32, i32, i32) {
    %c0_i32 = arith.constant 0 : i32
    %c0_i32_0 = arith.constant 0 : i32
    %c0_i32_1 = arith.constant 0 : i32
    return %arg0, %c0_i32, %c0_i32_0 : i32, i32, i32
  }
}

module attributes {stable_mosaic.version = 11 : i64} {
  func.func @_bn_relu_kernel(%arg0: i32, %arg1: i32, %arg2: memref<1x8x128xf32, #tpu.memory_space<vmem>>, %arg3: memref<1x128xf32, #tpu.memory_space<vmem>>, %arg4: memref<1x128xf32, #tpu.memory_space<vmem>>, %arg5: memref<1x8x128xf32, #tpu.memory_space<vmem>>) attributes {dimension_semantics = [#tpu.dimension_semantics<parallel>, #tpu.dimension_semantics<parallel>], iteration_bounds = array<i64: 4, 1>, scalar_prefetch = 0 : i64, scratch_operands = 0 : i64, tpu.core_type = #tpu.core_type<tc>, window_params = [{transform_indices = @transform_0, window_bounds = array<i64: 1, 8, 128>}, {pipeline_mode = #tpu.pipeline_mode<synchronous>, transform_indices = @transform_1, window_bounds = array<i64: 1, 128>}, {pipeline_mode = #tpu.pipeline_mode<synchronous>, transform_indices = @transform_2, window_bounds = array<i64: 1, 128>}, {transform_indices = @transform_3, window_bounds = array<i64: 1, 8, 128>}]} {
    %c0 = arith.constant 0 : index
    %c0_0 = arith.constant 0 : index
    %c0_1 = arith.constant 0 : index
    %0 = vector.load %arg2[%c0, %c0_0, %c0_1] : memref<1x8x128xf32, #tpu.memory_space<vmem>>, vector<1x8x128xf32>
    %1 = vector.shape_cast %0 : vector<1x8x128xf32> to vector<8x128xf32>
    %c0_2 = arith.constant 0 : index
    %c0_3 = arith.constant 0 : index
    %2 = vector.load %arg3[%c0_2, %c0_3] : memref<1x128xf32, #tpu.memory_space<vmem>>, vector<1x128xf32>
    %3 = vector.broadcast %2 : vector<1x128xf32> to vector<8x128xf32>
    %4 = arith.mulf %1, %3 : vector<8x128xf32>
    %c0_4 = arith.constant 0 : index
    %c0_5 = arith.constant 0 : index
    %5 = vector.load %arg4[%c0_4, %c0_5] : memref<1x128xf32, #tpu.memory_space<vmem>>, vector<1x128xf32>
    %6 = vector.broadcast %5 : vector<1x128xf32> to vector<8x128xf32>
    %7 = arith.addf %4, %6 : vector<8x128xf32>
    %cst = arith.constant 0.000000e+00 : f32
    %8 = vector.broadcast %cst : f32 to vector<8x128xf32>
    %9 = arith.maximumf %7, %8 : vector<8x128xf32>
    %c0_6 = arith.constant 0 : index
    %c0_7 = arith.constant 0 : index
    %c0_8 = arith.constant 0 : index
    %10 = vector.load %arg5[%c0_6, %c0_7, %c0_8] : memref<1x8x128xf32, #tpu.memory_space<vmem>>, vector<1x8x128xf32>
    %11 = vector.shape_cast %10 : vector<1x8x128xf32> to vector<8x128xf32>
    %12 = vector.shape_cast %9 : vector<8x128xf32> to vector<1x8x128xf32>
    tpu.vector_store %arg5[%c0_6, %c0_7, %c0_8], %12 {strides = array<i32>} : memref<1x8x128xf32, #tpu.memory_space<vmem>>, vector<1x8x128xf32>,
    return
  }
  func.func @transform_0(%arg0: i32, %arg1: i32) -> (i32, i32, i32) {
    %c0_i32 = arith.constant 0 : i32
    %c0_i32_0 = arith.constant 0 : i32
    return %arg0, %arg1, %c0_i32 : i32, i32, i32
  }
  func.func @transform_1(%arg0: i32, %arg1: i32) -> (i32, i32) {
    %c0_i32 = arith.constant 0 : i32
    %c0_i32_0 = arith.constant 0 : i32
    %c0_i32_1 = arith.constant 0 : i32
    return %c0_i32, %c0_i32_0 : i32, i32
  }
  func.func @transform_2(%arg0: i32, %arg1: i32) -> (i32, i32) {
    %c0_i32 = arith.constant 0 : i32
    %c0_i32_0 = arith.constant 0 : i32
    %c0_i32_1 = arith.constant 0 : i32
    return %c0_i32, %c0_i32_0 : i32, i32
  }
  func.func @transform_3(%arg0: i32, %arg1: i32) -> (i32, i32, i32) {
    %c0_i32 = arith.constant 0 : i32
    %c0_i32_0 = arith.constant 0 : i32
    return %arg0, %arg1, %c0_i32 : i32, i32, i32
  }
}

module attributes {stable_mosaic.version = 11 : i64} {
  func.func @_gemm_stats_kernel(%arg0: i32, %arg1: i32, %arg2: memref<1x32x128xf32, #tpu.memory_space<vmem>>, %arg3: memref<1x128x128xf32, #tpu.memory_space<vmem>>, %arg4: memref<1x32x128xf32, #tpu.memory_space<vmem>>, %arg5: memref<1x8x128xf32, #tpu.memory_space<vmem>>, %arg6: memref<1x8x128xf32, #tpu.memory_space<vmem>>) attributes {dimension_semantics = [#tpu.dimension_semantics<parallel>, #tpu.dimension_semantics<arbitrary>], iteration_bounds = array<i64: 4, 1>, scalar_prefetch = 0 : i64, scratch_operands = 0 : i64, tpu.core_type = #tpu.core_type<tc>, window_params = [{transform_indices = @transform_0, window_bounds = array<i64: 1, 32, 128>}, {transform_indices = @transform_1, window_bounds = array<i64: 1, 128, 128>}, {transform_indices = @transform_2, window_bounds = array<i64: 1, 32, 128>}, {transform_indices = @transform_3, window_bounds = array<i64: 1, 8, 128>}, {transform_indices = @transform_4, window_bounds = array<i64: 1, 8, 128>}]} {
    %c0_i32 = arith.constant 0 : i32
    %0 = arith.cmpi eq, %arg1, %c0_i32 : i32
    %1 = arith.extui %0 : i1 to i32
    %c0_i32_0 = arith.constant 0 : i32
    %2 = arith.cmpi ne, %1, %c0_i32_0 : i32
    scf.if %2 {
      %cst_23 = arith.constant 0.000000e+00 : f32
      %30 = vector.broadcast %cst_23 : f32 to vector<8x128xf32>
      %c0_24 = arith.constant 0 : index
      %c0_25 = arith.constant 0 : index
      %c0_26 = arith.constant 0 : index
      %31 = vector.load %arg5[%c0_24, %c0_25, %c0_26] : memref<1x8x128xf32, #tpu.memory_space<vmem>>, vector<1x8x128xf32>
      %32 = vector.shape_cast %31 : vector<1x8x128xf32> to vector<8x128xf32>
      %33 = vector.shape_cast %30 : vector<8x128xf32> to vector<1x8x128xf32>
      tpu.vector_store %arg5[%c0_24, %c0_25, %c0_26], %33 {strides = array<i32>} : memref<1x8x128xf32, #tpu.memory_space<vmem>>, vector<1x8x128xf32>,
      %cst_27 = arith.constant 0.000000e+00 : f32
      %34 = vector.broadcast %cst_27 : f32 to vector<8x128xf32>
      %c0_28 = arith.constant 0 : index
      %c0_29 = arith.constant 0 : index
      %c0_30 = arith.constant 0 : index
      %35 = vector.load %arg6[%c0_28, %c0_29, %c0_30] : memref<1x8x128xf32, #tpu.memory_space<vmem>>, vector<1x8x128xf32>
      %36 = vector.shape_cast %35 : vector<1x8x128xf32> to vector<8x128xf32>
      %37 = vector.shape_cast %34 : vector<8x128xf32> to vector<1x8x128xf32>
      tpu.vector_store %arg6[%c0_28, %c0_29, %c0_30], %37 {strides = array<i32>} : memref<1x8x128xf32, #tpu.memory_space<vmem>>, vector<1x8x128xf32>,
    } else {
    }
    %c0 = arith.constant 0 : index
    %c0_1 = arith.constant 0 : index
    %c0_2 = arith.constant 0 : index
    %3 = vector.load %arg2[%c0, %c0_1, %c0_2] : memref<1x32x128xf32, #tpu.memory_space<vmem>>, vector<1x32x128xf32>
    %4 = vector.shape_cast %3 : vector<1x32x128xf32> to vector<32x128xf32>
    %c0_3 = arith.constant 0 : index
    %c0_4 = arith.constant 0 : index
    %c0_5 = arith.constant 0 : index
    %5 = vector.load %arg3[%c0_3, %c0_4, %c0_5] : memref<1x128x128xf32, #tpu.memory_space<vmem>>, vector<1x128x128xf32>
    %6 = vector.shape_cast %5 : vector<1x128x128xf32> to vector<128x128xf32>
    %cst = arith.constant dense<0.000000e+00> : vector<32x128xf32>
    %7 = tpu.matmul %4, %6, %cst {dimension_numbers = #tpu.dot_dimension_numbers<[1], [0], [0], [1], [0, 0, 1, 1], [], []>} : vector<32x128xf32>, vector<128x128xf32>, vector<32x128xf32> -> vector<32x128xf32>
    %c0_6 = arith.constant 0 : index
    %c0_7 = arith.constant 0 : index
    %c0_8 = arith.constant 0 : index
    %8 = vector.load %arg4[%c0_6, %c0_7, %c0_8] : memref<1x32x128xf32, #tpu.memory_space<vmem>>, vector<1x32x128xf32>
    %9 = vector.shape_cast %8 : vector<1x32x128xf32> to vector<32x128xf32>
    %10 = vector.shape_cast %7 : vector<32x128xf32> to vector<1x32x128xf32>
    tpu.vector_store %arg4[%c0_6, %c0_7, %c0_8], %10 {strides = array<i32>} : memref<1x32x128xf32, #tpu.memory_space<vmem>>, vector<1x32x128xf32>,
    %c0_9 = arith.constant 0 : index
    %c0_10 = arith.constant 0 : index
    %c0_11 = arith.constant 0 : index
    %11 = vector.load %arg5[%c0_9, %c0_10, %c0_11] : memref<1x8x128xf32, #tpu.memory_space<vmem>>, vector<1x8x128xf32>
    %12 = vector.shape_cast %11 : vector<1x8x128xf32> to vector<8x128xf32>
    %cst_12 = arith.constant dense<0.000000e+00> : vector<128xf32>
    %13 = vector.multi_reduction <add>, %7, %cst_12 [0] : vector<32x128xf32> to vector<128xf32>
    %14 = vector.shape_cast %13 : vector<128xf32> to vector<1x128xf32>
    %15 = vector.broadcast %14 : vector<1x128xf32> to vector<8x128xf32>
    %16 = arith.addf %12, %15 : vector<8x128xf32>
    %c0_13 = arith.constant 0 : index
    %c0_14 = arith.constant 0 : index
    %c0_15 = arith.constant 0 : index
    %17 = vector.load %arg5[%c0_13, %c0_14, %c0_15] : memref<1x8x128xf32, #tpu.memory_space<vmem>>, vector<1x8x128xf32>
    %18 = vector.shape_cast %17 : vector<1x8x128xf32> to vector<8x128xf32>
    %19 = vector.shape_cast %16 : vector<8x128xf32> to vector<1x8x128xf32>
    tpu.vector_store %arg5[%c0_13, %c0_14, %c0_15], %19 {strides = array<i32>} : memref<1x8x128xf32, #tpu.memory_space<vmem>>, vector<1x8x128xf32>,
    %c0_16 = arith.constant 0 : index
    %c0_17 = arith.constant 0 : index
    %c0_18 = arith.constant 0 : index
    %20 = vector.load %arg6[%c0_16, %c0_17, %c0_18] : memref<1x8x128xf32, #tpu.memory_space<vmem>>, vector<1x8x128xf32>
    %21 = vector.shape_cast %20 : vector<1x8x128xf32> to vector<8x128xf32>
    %22 = arith.mulf %7, %7 : vector<32x128xf32>
    %cst_19 = arith.constant dense<0.000000e+00> : vector<128xf32>
    %23 = vector.multi_reduction <add>, %22, %cst_19 [0] : vector<32x128xf32> to vector<128xf32>
    %24 = vector.shape_cast %23 : vector<128xf32> to vector<1x128xf32>
    %25 = vector.broadcast %24 : vector<1x128xf32> to vector<8x128xf32>
    %26 = arith.addf %21, %25 : vector<8x128xf32>
    %c0_20 = arith.constant 0 : index
    %c0_21 = arith.constant 0 : index
    %c0_22 = arith.constant 0 : index
    %27 = vector.load %arg6[%c0_20, %c0_21, %c0_22] : memref<1x8x128xf32, #tpu.memory_space<vmem>>, vector<1x8x128xf32>
    %28 = vector.shape_cast %27 : vector<1x8x128xf32> to vector<8x128xf32>
    %29 = vector.shape_cast %26 : vector<8x128xf32> to vector<1x8x128xf32>
    tpu.vector_store %arg6[%c0_20, %c0_21, %c0_22], %29 {strides = array<i32>} : memref<1x8x128xf32, #tpu.memory_space<vmem>>, vector<1x8x128xf32>,
    return
  }
  func.func @transform_0(%arg0: i32, %arg1: i32) -> (i32, i32, i32) {
    %c0_i32 = arith.constant 0 : i32
    %c0_i32_0 = arith.constant 0 : i32
    return %arg0, %arg1, %c0_i32 : i32, i32, i32
  }
  func.func @transform_1(%arg0: i32, %arg1: i32) -> (i32, i32, i32) {
    %c0_i32 = arith.constant 0 : i32
    %c0_i32_0 = arith.constant 0 : i32
    %c0_i32_1 = arith.constant 0 : i32
    return %arg0, %c0_i32, %c0_i32_0 : i32, i32, i32
  }
  func.func @transform_2(%arg0: i32, %arg1: i32) -> (i32, i32, i32) {
    %c0_i32 = arith.constant 0 : i32
    %c0_i32_0 = arith.constant 0 : i32
    return %arg0, %arg1, %c0_i32 : i32, i32, i32
  }
  func.func @transform_3(%arg0: i32, %arg1: i32) -> (i32, i32, i32) {
    %c0_i32 = arith.constant 0 : i32
    %c0_i32_0 = arith.constant 0 : i32
    %c0_i32_1 = arith.constant 0 : i32
    return %arg0, %c0_i32, %c0_i32_0 : i32, i32, i32
  }
  func.func @transform_4(%arg0: i32, %arg1: i32) -> (i32, i32, i32) {
    %c0_i32 = arith.constant 0 : i32
    %c0_i32_0 = arith.constant 0 : i32
    %c0_i32_1 = arith.constant 0 : i32
    return %arg0, %c0_i32, %c0_i32_0 : i32, i32, i32
  }
}

module attributes {stable_mosaic.version = 11 : i64} {
  func.func @_bn_relu_kernel(%arg0: i32, %arg1: i32, %arg2: memref<1x32x128xf32, #tpu.memory_space<vmem>>, %arg3: memref<1x128xf32, #tpu.memory_space<vmem>>, %arg4: memref<1x128xf32, #tpu.memory_space<vmem>>, %arg5: memref<1x32x128xf32, #tpu.memory_space<vmem>>) attributes {dimension_semantics = [#tpu.dimension_semantics<parallel>, #tpu.dimension_semantics<parallel>], iteration_bounds = array<i64: 4, 1>, scalar_prefetch = 0 : i64, scratch_operands = 0 : i64, tpu.core_type = #tpu.core_type<tc>, window_params = [{transform_indices = @transform_0, window_bounds = array<i64: 1, 32, 128>}, {pipeline_mode = #tpu.pipeline_mode<synchronous>, transform_indices = @transform_1, window_bounds = array<i64: 1, 128>}, {pipeline_mode = #tpu.pipeline_mode<synchronous>, transform_indices = @transform_2, window_bounds = array<i64: 1, 128>}, {transform_indices = @transform_3, window_bounds = array<i64: 1, 32, 128>}]} {
    %c0 = arith.constant 0 : index
    %c0_0 = arith.constant 0 : index
    %c0_1 = arith.constant 0 : index
    %0 = vector.load %arg2[%c0, %c0_0, %c0_1] : memref<1x32x128xf32, #tpu.memory_space<vmem>>, vector<1x32x128xf32>
    %1 = vector.shape_cast %0 : vector<1x32x128xf32> to vector<32x128xf32>
    %c0_2 = arith.constant 0 : index
    %c0_3 = arith.constant 0 : index
    %2 = vector.load %arg3[%c0_2, %c0_3] : memref<1x128xf32, #tpu.memory_space<vmem>>, vector<1x128xf32>
    %3 = vector.broadcast %2 : vector<1x128xf32> to vector<32x128xf32>
    %4 = arith.mulf %1, %3 : vector<32x128xf32>
    %c0_4 = arith.constant 0 : index
    %c0_5 = arith.constant 0 : index
    %5 = vector.load %arg4[%c0_4, %c0_5] : memref<1x128xf32, #tpu.memory_space<vmem>>, vector<1x128xf32>
    %6 = vector.broadcast %5 : vector<1x128xf32> to vector<32x128xf32>
    %7 = arith.addf %4, %6 : vector<32x128xf32>
    %cst = arith.constant 0.000000e+00 : f32
    %8 = vector.broadcast %cst : f32 to vector<32x128xf32>
    %9 = arith.maximumf %7, %8 : vector<32x128xf32>
    %c0_6 = arith.constant 0 : index
    %c0_7 = arith.constant 0 : index
    %c0_8 = arith.constant 0 : index
    %10 = vector.load %arg5[%c0_6, %c0_7, %c0_8] : memref<1x32x128xf32, #tpu.memory_space<vmem>>, vector<1x32x128xf32>
    %11 = vector.shape_cast %10 : vector<1x32x128xf32> to vector<32x128xf32>
    %12 = vector.shape_cast %9 : vector<32x128xf32> to vector<1x32x128xf32>
    tpu.vector_store %arg5[%c0_6, %c0_7, %c0_8], %12 {strides = array<i32>} : memref<1x32x128xf32, #tpu.memory_space<vmem>>, vector<1x32x128xf32>,
    return
  }
  func.func @transform_0(%arg0: i32, %arg1: i32) -> (i32, i32, i32) {
    %c0_i32 = arith.constant 0 : i32
    %c0_i32_0 = arith.constant 0 : i32
    return %arg0, %arg1, %c0_i32 : i32, i32, i32
  }
  func.func @transform_1(%arg0: i32, %arg1: i32) -> (i32, i32) {
    %c0_i32 = arith.constant 0 : i32
    %c0_i32_0 = arith.constant 0 : i32
    %c0_i32_1 = arith.constant 0 : i32
    return %c0_i32, %c0_i32_0 : i32, i32
  }
  func.func @transform_2(%arg0: i32, %arg1: i32) -> (i32, i32) {
    %c0_i32 = arith.constant 0 : i32
    %c0_i32_0 = arith.constant 0 : i32
    %c0_i32_1 = arith.constant 0 : i32
    return %c0_i32, %c0_i32_0 : i32, i32
  }
  func.func @transform_3(%arg0: i32, %arg1: i32) -> (i32, i32, i32) {
    %c0_i32 = arith.constant 0 : i32
    %c0_i32_0 = arith.constant 0 : i32
    return %arg0, %arg1, %c0_i32 : i32, i32, i32
  }
}

module attributes {stable_mosaic.version = 11 : i64} {
  func.func @_gemm_stats_kernel(%arg0: i32, %arg1: i32, %arg2: memref<1x128x64xf32, #tpu.memory_space<vmem>>, %arg3: memref<1x64x128xf32, #tpu.memory_space<vmem>>, %arg4: memref<1x128x128xf32, #tpu.memory_space<vmem>>, %arg5: memref<1x8x128xf32, #tpu.memory_space<vmem>>, %arg6: memref<1x8x128xf32, #tpu.memory_space<vmem>>) attributes {dimension_semantics = [#tpu.dimension_semantics<parallel>, #tpu.dimension_semantics<arbitrary>], iteration_bounds = array<i64: 4, 1>, scalar_prefetch = 0 : i64, scratch_operands = 0 : i64, tpu.core_type = #tpu.core_type<tc>, window_params = [{transform_indices = @transform_0, window_bounds = array<i64: 1, 128, 64>}, {transform_indices = @transform_1, window_bounds = array<i64: 1, 64, 128>}, {transform_indices = @transform_2, window_bounds = array<i64: 1, 128, 128>}, {transform_indices = @transform_3, window_bounds = array<i64: 1, 8, 128>}, {transform_indices = @transform_4, window_bounds = array<i64: 1, 8, 128>}]} {
    %c0_i32 = arith.constant 0 : i32
    %0 = arith.cmpi eq, %arg1, %c0_i32 : i32
    %1 = arith.extui %0 : i1 to i32
    %c0_i32_0 = arith.constant 0 : i32
    %2 = arith.cmpi ne, %1, %c0_i32_0 : i32
    scf.if %2 {
      %cst_23 = arith.constant 0.000000e+00 : f32
      %30 = vector.broadcast %cst_23 : f32 to vector<8x128xf32>
      %c0_24 = arith.constant 0 : index
      %c0_25 = arith.constant 0 : index
      %c0_26 = arith.constant 0 : index
      %31 = vector.load %arg5[%c0_24, %c0_25, %c0_26] : memref<1x8x128xf32, #tpu.memory_space<vmem>>, vector<1x8x128xf32>
      %32 = vector.shape_cast %31 : vector<1x8x128xf32> to vector<8x128xf32>
      %33 = vector.shape_cast %30 : vector<8x128xf32> to vector<1x8x128xf32>
      tpu.vector_store %arg5[%c0_24, %c0_25, %c0_26], %33 {strides = array<i32>} : memref<1x8x128xf32, #tpu.memory_space<vmem>>, vector<1x8x128xf32>,
      %cst_27 = arith.constant 0.000000e+00 : f32
      %34 = vector.broadcast %cst_27 : f32 to vector<8x128xf32>
      %c0_28 = arith.constant 0 : index
      %c0_29 = arith.constant 0 : index
      %c0_30 = arith.constant 0 : index
      %35 = vector.load %arg6[%c0_28, %c0_29, %c0_30] : memref<1x8x128xf32, #tpu.memory_space<vmem>>, vector<1x8x128xf32>
      %36 = vector.shape_cast %35 : vector<1x8x128xf32> to vector<8x128xf32>
      %37 = vector.shape_cast %34 : vector<8x128xf32> to vector<1x8x128xf32>
      tpu.vector_store %arg6[%c0_28, %c0_29, %c0_30], %37 {strides = array<i32>} : memref<1x8x128xf32, #tpu.memory_space<vmem>>, vector<1x8x128xf32>,
    } else {
    }
    %c0 = arith.constant 0 : index
    %c0_1 = arith.constant 0 : index
    %c0_2 = arith.constant 0 : index
    %3 = vector.load %arg2[%c0, %c0_1, %c0_2] : memref<1x128x64xf32, #tpu.memory_space<vmem>>, vector<1x128x64xf32>
    %4 = vector.shape_cast %3 : vector<1x128x64xf32> to vector<128x64xf32>
    %c0_3 = arith.constant 0 : index
    %c0_4 = arith.constant 0 : index
    %c0_5 = arith.constant 0 : index
    %5 = vector.load %arg3[%c0_3, %c0_4, %c0_5] : memref<1x64x128xf32, #tpu.memory_space<vmem>>, vector<1x64x128xf32>
    %6 = vector.shape_cast %5 : vector<1x64x128xf32> to vector<64x128xf32>
    %cst = arith.constant dense<0.000000e+00> : vector<128x128xf32>
    %7 = tpu.matmul %4, %6, %cst {dimension_numbers = #tpu.dot_dimension_numbers<[1], [0], [0], [1], [0, 0, 1, 1], [], []>} : vector<128x64xf32>, vector<64x128xf32>, vector<128x128xf32> -> vector<128x128xf32>
    %c0_6 = arith.constant 0 : index
    %c0_7 = arith.constant 0 : index
    %c0_8 = arith.constant 0 : index
    %8 = vector.load %arg4[%c0_6, %c0_7, %c0_8] : memref<1x128x128xf32, #tpu.memory_space<vmem>>, vector<1x128x128xf32>
    %9 = vector.shape_cast %8 : vector<1x128x128xf32> to vector<128x128xf32>
    %10 = vector.shape_cast %7 : vector<128x128xf32> to vector<1x128x128xf32>
    tpu.vector_store %arg4[%c0_6, %c0_7, %c0_8], %10 {strides = array<i32>} : memref<1x128x128xf32, #tpu.memory_space<vmem>>, vector<1x128x128xf32>,
    %c0_9 = arith.constant 0 : index
    %c0_10 = arith.constant 0 : index
    %c0_11 = arith.constant 0 : index
    %11 = vector.load %arg5[%c0_9, %c0_10, %c0_11] : memref<1x8x128xf32, #tpu.memory_space<vmem>>, vector<1x8x128xf32>
    %12 = vector.shape_cast %11 : vector<1x8x128xf32> to vector<8x128xf32>
    %cst_12 = arith.constant dense<0.000000e+00> : vector<128xf32>
    %13 = vector.multi_reduction <add>, %7, %cst_12 [0] : vector<128x128xf32> to vector<128xf32>
    %14 = vector.shape_cast %13 : vector<128xf32> to vector<1x128xf32>
    %15 = vector.broadcast %14 : vector<1x128xf32> to vector<8x128xf32>
    %16 = arith.addf %12, %15 : vector<8x128xf32>
    %c0_13 = arith.constant 0 : index
    %c0_14 = arith.constant 0 : index
    %c0_15 = arith.constant 0 : index
    %17 = vector.load %arg5[%c0_13, %c0_14, %c0_15] : memref<1x8x128xf32, #tpu.memory_space<vmem>>, vector<1x8x128xf32>
    %18 = vector.shape_cast %17 : vector<1x8x128xf32> to vector<8x128xf32>
    %19 = vector.shape_cast %16 : vector<8x128xf32> to vector<1x8x128xf32>
    tpu.vector_store %arg5[%c0_13, %c0_14, %c0_15], %19 {strides = array<i32>} : memref<1x8x128xf32, #tpu.memory_space<vmem>>, vector<1x8x128xf32>,
    %c0_16 = arith.constant 0 : index
    %c0_17 = arith.constant 0 : index
    %c0_18 = arith.constant 0 : index
    %20 = vector.load %arg6[%c0_16, %c0_17, %c0_18] : memref<1x8x128xf32, #tpu.memory_space<vmem>>, vector<1x8x128xf32>
    %21 = vector.shape_cast %20 : vector<1x8x128xf32> to vector<8x128xf32>
    %22 = arith.mulf %7, %7 : vector<128x128xf32>
    %cst_19 = arith.constant dense<0.000000e+00> : vector<128xf32>
    %23 = vector.multi_reduction <add>, %22, %cst_19 [0] : vector<128x128xf32> to vector<128xf32>
    %24 = vector.shape_cast %23 : vector<128xf32> to vector<1x128xf32>
    %25 = vector.broadcast %24 : vector<1x128xf32> to vector<8x128xf32>
    %26 = arith.addf %21, %25 : vector<8x128xf32>
    %c0_20 = arith.constant 0 : index
    %c0_21 = arith.constant 0 : index
    %c0_22 = arith.constant 0 : index
    %27 = vector.load %arg6[%c0_20, %c0_21, %c0_22] : memref<1x8x128xf32, #tpu.memory_space<vmem>>, vector<1x8x128xf32>
    %28 = vector.shape_cast %27 : vector<1x8x128xf32> to vector<8x128xf32>
    %29 = vector.shape_cast %26 : vector<8x128xf32> to vector<1x8x128xf32>
    tpu.vector_store %arg6[%c0_20, %c0_21, %c0_22], %29 {strides = array<i32>} : memref<1x8x128xf32, #tpu.memory_space<vmem>>, vector<1x8x128xf32>,
    return
  }
  func.func @transform_0(%arg0: i32, %arg1: i32) -> (i32, i32, i32) {
    %c0_i32 = arith.constant 0 : i32
    %c0_i32_0 = arith.constant 0 : i32
    return %arg0, %arg1, %c0_i32 : i32, i32, i32
  }
  func.func @transform_1(%arg0: i32, %arg1: i32) -> (i32, i32, i32) {
    %c0_i32 = arith.constant 0 : i32
    %c0_i32_0 = arith.constant 0 : i32
    %c0_i32_1 = arith.constant 0 : i32
    return %arg0, %c0_i32, %c0_i32_0 : i32, i32, i32
  }
  func.func @transform_2(%arg0: i32, %arg1: i32) -> (i32, i32, i32) {
    %c0_i32 = arith.constant 0 : i32
    %c0_i32_0 = arith.constant 0 : i32
    return %arg0, %arg1, %c0_i32 : i32, i32, i32
  }
  func.func @transform_3(%arg0: i32, %arg1: i32) -> (i32, i32, i32) {
    %c0_i32 = arith.constant 0 : i32
    %c0_i32_0 = arith.constant 0 : i32
    %c0_i32_1 = arith.constant 0 : i32
    return %arg0, %c0_i32, %c0_i32_0 : i32, i32, i32
  }
  func.func @transform_4(%arg0: i32, %arg1: i32) -> (i32, i32, i32) {
    %c0_i32 = arith.constant 0 : i32
    %c0_i32_0 = arith.constant 0 : i32
    %c0_i32_1 = arith.constant 0 : i32
    return %arg0, %c0_i32, %c0_i32_0 : i32, i32, i32
  }
}

module attributes {stable_mosaic.version = 11 : i64} {
  func.func @_bn_relu_kernel(%arg0: i32, %arg1: i32, %arg2: memref<1x128x128xf32, #tpu.memory_space<vmem>>, %arg3: memref<1x128xf32, #tpu.memory_space<vmem>>, %arg4: memref<1x128xf32, #tpu.memory_space<vmem>>, %arg5: memref<1x128x128xf32, #tpu.memory_space<vmem>>) attributes {dimension_semantics = [#tpu.dimension_semantics<parallel>, #tpu.dimension_semantics<parallel>], iteration_bounds = array<i64: 4, 1>, scalar_prefetch = 0 : i64, scratch_operands = 0 : i64, tpu.core_type = #tpu.core_type<tc>, window_params = [{transform_indices = @transform_0, window_bounds = array<i64: 1, 128, 128>}, {pipeline_mode = #tpu.pipeline_mode<synchronous>, transform_indices = @transform_1, window_bounds = array<i64: 1, 128>}, {pipeline_mode = #tpu.pipeline_mode<synchronous>, transform_indices = @transform_2, window_bounds = array<i64: 1, 128>}, {transform_indices = @transform_3, window_bounds = array<i64: 1, 128, 128>}]} {
    %c0 = arith.constant 0 : index
    %c0_0 = arith.constant 0 : index
    %c0_1 = arith.constant 0 : index
    %0 = vector.load %arg2[%c0, %c0_0, %c0_1] : memref<1x128x128xf32, #tpu.memory_space<vmem>>, vector<1x128x128xf32>
    %1 = vector.shape_cast %0 : vector<1x128x128xf32> to vector<128x128xf32>
    %c0_2 = arith.constant 0 : index
    %c0_3 = arith.constant 0 : index
    %2 = vector.load %arg3[%c0_2, %c0_3] : memref<1x128xf32, #tpu.memory_space<vmem>>, vector<1x128xf32>
    %3 = vector.broadcast %2 : vector<1x128xf32> to vector<128x128xf32>
    %4 = arith.mulf %1, %3 : vector<128x128xf32>
    %c0_4 = arith.constant 0 : index
    %c0_5 = arith.constant 0 : index
    %5 = vector.load %arg4[%c0_4, %c0_5] : memref<1x128xf32, #tpu.memory_space<vmem>>, vector<1x128xf32>
    %6 = vector.broadcast %5 : vector<1x128xf32> to vector<128x128xf32>
    %7 = arith.addf %4, %6 : vector<128x128xf32>
    %cst = arith.constant 0.000000e+00 : f32
    %8 = vector.broadcast %cst : f32 to vector<128x128xf32>
    %9 = arith.maximumf %7, %8 : vector<128x128xf32>
    %c0_6 = arith.constant 0 : index
    %c0_7 = arith.constant 0 : index
    %c0_8 = arith.constant 0 : index
    %10 = vector.load %arg5[%c0_6, %c0_7, %c0_8] : memref<1x128x128xf32, #tpu.memory_space<vmem>>, vector<1x128x128xf32>
    %11 = vector.shape_cast %10 : vector<1x128x128xf32> to vector<128x128xf32>
    %12 = vector.shape_cast %9 : vector<128x128xf32> to vector<1x128x128xf32>
    tpu.vector_store %arg5[%c0_6, %c0_7, %c0_8], %12 {strides = array<i32>} : memref<1x128x128xf32, #tpu.memory_space<vmem>>, vector<1x128x128xf32>,
    return
  }
  func.func @transform_0(%arg0: i32, %arg1: i32) -> (i32, i32, i32) {
    %c0_i32 = arith.constant 0 : i32
    %c0_i32_0 = arith.constant 0 : i32
    return %arg0, %arg1, %c0_i32 : i32, i32, i32
  }
  func.func @transform_1(%arg0: i32, %arg1: i32) -> (i32, i32) {
    %c0_i32 = arith.constant 0 : i32
    %c0_i32_0 = arith.constant 0 : i32
    %c0_i32_1 = arith.constant 0 : i32
    return %c0_i32, %c0_i32_0 : i32, i32
  }
  func.func @transform_2(%arg0: i32, %arg1: i32) -> (i32, i32) {
    %c0_i32 = arith.constant 0 : i32
    %c0_i32_0 = arith.constant 0 : i32
    %c0_i32_1 = arith.constant 0 : i32
    return %c0_i32, %c0_i32_0 : i32, i32
  }
  func.func @transform_3(%arg0: i32, %arg1: i32) -> (i32, i32, i32) {
    %c0_i32 = arith.constant 0 : i32
    %c0_i32_0 = arith.constant 0 : i32
    return %arg0, %arg1, %c0_i32 : i32, i32, i32
  }
}

module attributes {stable_mosaic.version = 11 : i64} {
  func.func @_gemm_stats_kernel(%arg0: i32, %arg1: i32, %arg2: memref<1x512x32xf32, #tpu.memory_space<vmem>>, %arg3: memref<1x32x128xf32, #tpu.memory_space<vmem>>, %arg4: memref<1x512x128xf32, #tpu.memory_space<vmem>>, %arg5: memref<1x8x128xf32, #tpu.memory_space<vmem>>, %arg6: memref<1x8x128xf32, #tpu.memory_space<vmem>>) attributes {dimension_semantics = [#tpu.dimension_semantics<parallel>, #tpu.dimension_semantics<arbitrary>], iteration_bounds = array<i64: 4, 1>, scalar_prefetch = 0 : i64, scratch_operands = 0 : i64, tpu.core_type = #tpu.core_type<tc>, window_params = [{transform_indices = @transform_0, window_bounds = array<i64: 1, 512, 32>}, {transform_indices = @transform_1, window_bounds = array<i64: 1, 32, 128>}, {transform_indices = @transform_2, window_bounds = array<i64: 1, 512, 128>}, {transform_indices = @transform_3, window_bounds = array<i64: 1, 8, 128>}, {transform_indices = @transform_4, window_bounds = array<i64: 1, 8, 128>}]} {
    %c0_i32 = arith.constant 0 : i32
    %0 = arith.cmpi eq, %arg1, %c0_i32 : i32
    %1 = arith.extui %0 : i1 to i32
    %c0_i32_0 = arith.constant 0 : i32
    %2 = arith.cmpi ne, %1, %c0_i32_0 : i32
    scf.if %2 {
      %cst_23 = arith.constant 0.000000e+00 : f32
      %30 = vector.broadcast %cst_23 : f32 to vector<8x128xf32>
      %c0_24 = arith.constant 0 : index
      %c0_25 = arith.constant 0 : index
      %c0_26 = arith.constant 0 : index
      %31 = vector.load %arg5[%c0_24, %c0_25, %c0_26] : memref<1x8x128xf32, #tpu.memory_space<vmem>>, vector<1x8x128xf32>
      %32 = vector.shape_cast %31 : vector<1x8x128xf32> to vector<8x128xf32>
      %33 = vector.shape_cast %30 : vector<8x128xf32> to vector<1x8x128xf32>
      tpu.vector_store %arg5[%c0_24, %c0_25, %c0_26], %33 {strides = array<i32>} : memref<1x8x128xf32, #tpu.memory_space<vmem>>, vector<1x8x128xf32>,
      %cst_27 = arith.constant 0.000000e+00 : f32
      %34 = vector.broadcast %cst_27 : f32 to vector<8x128xf32>
      %c0_28 = arith.constant 0 : index
      %c0_29 = arith.constant 0 : index
      %c0_30 = arith.constant 0 : index
      %35 = vector.load %arg6[%c0_28, %c0_29, %c0_30] : memref<1x8x128xf32, #tpu.memory_space<vmem>>, vector<1x8x128xf32>
      %36 = vector.shape_cast %35 : vector<1x8x128xf32> to vector<8x128xf32>
      %37 = vector.shape_cast %34 : vector<8x128xf32> to vector<1x8x128xf32>
      tpu.vector_store %arg6[%c0_28, %c0_29, %c0_30], %37 {strides = array<i32>} : memref<1x8x128xf32, #tpu.memory_space<vmem>>, vector<1x8x128xf32>,
    } else {
    }
    %c0 = arith.constant 0 : index
    %c0_1 = arith.constant 0 : index
    %c0_2 = arith.constant 0 : index
    %3 = vector.load %arg2[%c0, %c0_1, %c0_2] : memref<1x512x32xf32, #tpu.memory_space<vmem>>, vector<1x512x32xf32>
    %4 = vector.shape_cast %3 : vector<1x512x32xf32> to vector<512x32xf32>
    %c0_3 = arith.constant 0 : index
    %c0_4 = arith.constant 0 : index
    %c0_5 = arith.constant 0 : index
    %5 = vector.load %arg3[%c0_3, %c0_4, %c0_5] : memref<1x32x128xf32, #tpu.memory_space<vmem>>, vector<1x32x128xf32>
    %6 = vector.shape_cast %5 : vector<1x32x128xf32> to vector<32x128xf32>
    %cst = arith.constant dense<0.000000e+00> : vector<512x128xf32>
    %7 = tpu.matmul %4, %6, %cst {dimension_numbers = #tpu.dot_dimension_numbers<[1], [0], [0], [1], [0, 0, 1, 1], [], []>} : vector<512x32xf32>, vector<32x128xf32>, vector<512x128xf32> -> vector<512x128xf32>
    %c0_6 = arith.constant 0 : index
    %c0_7 = arith.constant 0 : index
    %c0_8 = arith.constant 0 : index
    %8 = vector.load %arg4[%c0_6, %c0_7, %c0_8] : memref<1x512x128xf32, #tpu.memory_space<vmem>>, vector<1x512x128xf32>
    %9 = vector.shape_cast %8 : vector<1x512x128xf32> to vector<512x128xf32>
    %10 = vector.shape_cast %7 : vector<512x128xf32> to vector<1x512x128xf32>
    tpu.vector_store %arg4[%c0_6, %c0_7, %c0_8], %10 {strides = array<i32>} : memref<1x512x128xf32, #tpu.memory_space<vmem>>, vector<1x512x128xf32>,
    %c0_9 = arith.constant 0 : index
    %c0_10 = arith.constant 0 : index
    %c0_11 = arith.constant 0 : index
    %11 = vector.load %arg5[%c0_9, %c0_10, %c0_11] : memref<1x8x128xf32, #tpu.memory_space<vmem>>, vector<1x8x128xf32>
    %12 = vector.shape_cast %11 : vector<1x8x128xf32> to vector<8x128xf32>
    %cst_12 = arith.constant dense<0.000000e+00> : vector<128xf32>
    %13 = vector.multi_reduction <add>, %7, %cst_12 [0] : vector<512x128xf32> to vector<128xf32>
    %14 = vector.shape_cast %13 : vector<128xf32> to vector<1x128xf32>
    %15 = vector.broadcast %14 : vector<1x128xf32> to vector<8x128xf32>
    %16 = arith.addf %12, %15 : vector<8x128xf32>
    %c0_13 = arith.constant 0 : index
    %c0_14 = arith.constant 0 : index
    %c0_15 = arith.constant 0 : index
    %17 = vector.load %arg5[%c0_13, %c0_14, %c0_15] : memref<1x8x128xf32, #tpu.memory_space<vmem>>, vector<1x8x128xf32>
    %18 = vector.shape_cast %17 : vector<1x8x128xf32> to vector<8x128xf32>
    %19 = vector.shape_cast %16 : vector<8x128xf32> to vector<1x8x128xf32>
    tpu.vector_store %arg5[%c0_13, %c0_14, %c0_15], %19 {strides = array<i32>} : memref<1x8x128xf32, #tpu.memory_space<vmem>>, vector<1x8x128xf32>,
    %c0_16 = arith.constant 0 : index
    %c0_17 = arith.constant 0 : index
    %c0_18 = arith.constant 0 : index
    %20 = vector.load %arg6[%c0_16, %c0_17, %c0_18] : memref<1x8x128xf32, #tpu.memory_space<vmem>>, vector<1x8x128xf32>
    %21 = vector.shape_cast %20 : vector<1x8x128xf32> to vector<8x128xf32>
    %22 = arith.mulf %7, %7 : vector<512x128xf32>
    %cst_19 = arith.constant dense<0.000000e+00> : vector<128xf32>
    %23 = vector.multi_reduction <add>, %22, %cst_19 [0] : vector<512x128xf32> to vector<128xf32>
    %24 = vector.shape_cast %23 : vector<128xf32> to vector<1x128xf32>
    %25 = vector.broadcast %24 : vector<1x128xf32> to vector<8x128xf32>
    %26 = arith.addf %21, %25 : vector<8x128xf32>
    %c0_20 = arith.constant 0 : index
    %c0_21 = arith.constant 0 : index
    %c0_22 = arith.constant 0 : index
    %27 = vector.load %arg6[%c0_20, %c0_21, %c0_22] : memref<1x8x128xf32, #tpu.memory_space<vmem>>, vector<1x8x128xf32>
    %28 = vector.shape_cast %27 : vector<1x8x128xf32> to vector<8x128xf32>
    %29 = vector.shape_cast %26 : vector<8x128xf32> to vector<1x8x128xf32>
    tpu.vector_store %arg6[%c0_20, %c0_21, %c0_22], %29 {strides = array<i32>} : memref<1x8x128xf32, #tpu.memory_space<vmem>>, vector<1x8x128xf32>,
    return
  }
  func.func @transform_0(%arg0: i32, %arg1: i32) -> (i32, i32, i32) {
    %c0_i32 = arith.constant 0 : i32
    %c0_i32_0 = arith.constant 0 : i32
    return %arg0, %arg1, %c0_i32 : i32, i32, i32
  }
  func.func @transform_1(%arg0: i32, %arg1: i32) -> (i32, i32, i32) {
    %c0_i32 = arith.constant 0 : i32
    %c0_i32_0 = arith.constant 0 : i32
    %c0_i32_1 = arith.constant 0 : i32
    return %arg0, %c0_i32, %c0_i32_0 : i32, i32, i32
  }
  func.func @transform_2(%arg0: i32, %arg1: i32) -> (i32, i32, i32) {
    %c0_i32 = arith.constant 0 : i32
    %c0_i32_0 = arith.constant 0 : i32
    return %arg0, %arg1, %c0_i32 : i32, i32, i32
  }
  func.func @transform_3(%arg0: i32, %arg1: i32) -> (i32, i32, i32) {
    %c0_i32 = arith.constant 0 : i32
    %c0_i32_0 = arith.constant 0 : i32
    %c0_i32_1 = arith.constant 0 : i32
    return %arg0, %c0_i32, %c0_i32_0 : i32, i32, i32
  }
  func.func @transform_4(%arg0: i32, %arg1: i32) -> (i32, i32, i32) {
    %c0_i32 = arith.constant 0 : i32
    %c0_i32_0 = arith.constant 0 : i32
    %c0_i32_1 = arith.constant 0 : i32
    return %arg0, %c0_i32, %c0_i32_0 : i32, i32, i32
  }
}

module attributes {stable_mosaic.version = 11 : i64} {
  func.func @_bn_relu_kernel(%arg0: i32, %arg1: i32, %arg2: memref<1x512x128xf32, #tpu.memory_space<vmem>>, %arg3: memref<1x128xf32, #tpu.memory_space<vmem>>, %arg4: memref<1x128xf32, #tpu.memory_space<vmem>>, %arg5: memref<1x512x128xf32, #tpu.memory_space<vmem>>) attributes {dimension_semantics = [#tpu.dimension_semantics<parallel>, #tpu.dimension_semantics<parallel>], iteration_bounds = array<i64: 4, 1>, scalar_prefetch = 0 : i64, scratch_operands = 0 : i64, tpu.core_type = #tpu.core_type<tc>, window_params = [{transform_indices = @transform_0, window_bounds = array<i64: 1, 512, 128>}, {pipeline_mode = #tpu.pipeline_mode<synchronous>, transform_indices = @transform_1, window_bounds = array<i64: 1, 128>}, {pipeline_mode = #tpu.pipeline_mode<synchronous>, transform_indices = @transform_2, window_bounds = array<i64: 1, 128>}, {transform_indices = @transform_3, window_bounds = array<i64: 1, 512, 128>}]} {
    %c0 = arith.constant 0 : index
    %c0_0 = arith.constant 0 : index
    %c0_1 = arith.constant 0 : index
    %0 = vector.load %arg2[%c0, %c0_0, %c0_1] : memref<1x512x128xf32, #tpu.memory_space<vmem>>, vector<1x512x128xf32>
    %1 = vector.shape_cast %0 : vector<1x512x128xf32> to vector<512x128xf32>
    %c0_2 = arith.constant 0 : index
    %c0_3 = arith.constant 0 : index
    %2 = vector.load %arg3[%c0_2, %c0_3] : memref<1x128xf32, #tpu.memory_space<vmem>>, vector<1x128xf32>
    %3 = vector.broadcast %2 : vector<1x128xf32> to vector<512x128xf32>
    %4 = arith.mulf %1, %3 : vector<512x128xf32>
    %c0_4 = arith.constant 0 : index
    %c0_5 = arith.constant 0 : index
    %5 = vector.load %arg4[%c0_4, %c0_5] : memref<1x128xf32, #tpu.memory_space<vmem>>, vector<1x128xf32>
    %6 = vector.broadcast %5 : vector<1x128xf32> to vector<512x128xf32>
    %7 = arith.addf %4, %6 : vector<512x128xf32>
    %cst = arith.constant 0.000000e+00 : f32
    %8 = vector.broadcast %cst : f32 to vector<512x128xf32>
    %9 = arith.maximumf %7, %8 : vector<512x128xf32>
    %c0_6 = arith.constant 0 : index
    %c0_7 = arith.constant 0 : index
    %c0_8 = arith.constant 0 : index
    %10 = vector.load %arg5[%c0_6, %c0_7, %c0_8] : memref<1x512x128xf32, #tpu.memory_space<vmem>>, vector<1x512x128xf32>
    %11 = vector.shape_cast %10 : vector<1x512x128xf32> to vector<512x128xf32>
    %12 = vector.shape_cast %9 : vector<512x128xf32> to vector<1x512x128xf32>
    tpu.vector_store %arg5[%c0_6, %c0_7, %c0_8], %12 {strides = array<i32>} : memref<1x512x128xf32, #tpu.memory_space<vmem>>, vector<1x512x128xf32>,
    return
  }
  func.func @transform_0(%arg0: i32, %arg1: i32) -> (i32, i32, i32) {
    %c0_i32 = arith.constant 0 : i32
    %c0_i32_0 = arith.constant 0 : i32
    return %arg0, %arg1, %c0_i32 : i32, i32, i32
  }
  func.func @transform_1(%arg0: i32, %arg1: i32) -> (i32, i32) {
    %c0_i32 = arith.constant 0 : i32
    %c0_i32_0 = arith.constant 0 : i32
    %c0_i32_1 = arith.constant 0 : i32
    return %c0_i32, %c0_i32_0 : i32, i32
  }
  func.func @transform_2(%arg0: i32, %arg1: i32) -> (i32, i32) {
    %c0_i32 = arith.constant 0 : i32
    %c0_i32_0 = arith.constant 0 : i32
    %c0_i32_1 = arith.constant 0 : i32
    return %c0_i32, %c0_i32_0 : i32, i32
  }
  func.func @transform_3(%arg0: i32, %arg1: i32) -> (i32, i32, i32) {
    %c0_i32 = arith.constant 0 : i32
    %c0_i32_0 = arith.constant 0 : i32
    return %arg0, %arg1, %c0_i32 : i32, i32, i32
  }
}

module attributes {stable_mosaic.version = 11 : i64} {
  func.func @_gemm_tanh_kernel(%arg0: i32, %arg1: i32, %arg2: memref<1x512x16xf32, #tpu.memory_space<vmem>>, %arg3: memref<1x16x128xf32, #tpu.memory_space<vmem>>, %arg4: memref<1x512x128xf32, #tpu.memory_space<vmem>>) attributes {dimension_semantics = [#tpu.dimension_semantics<parallel>, #tpu.dimension_semantics<parallel>], iteration_bounds = array<i64: 4, 4>, scalar_prefetch = 0 : i64, scratch_operands = 0 : i64, tpu.core_type = #tpu.core_type<tc>, window_params = [{transform_indices = @transform_0, window_bounds = array<i64: 1, 512, 16>}, {transform_indices = @transform_1, window_bounds = array<i64: 1, 16, 128>}, {transform_indices = @transform_2, window_bounds = array<i64: 1, 512, 128>}]} {
    %c0 = arith.constant 0 : index
    %c0_0 = arith.constant 0 : index
    %c0_1 = arith.constant 0 : index
    %0 = vector.load %arg2[%c0, %c0_0, %c0_1] : memref<1x512x16xf32, #tpu.memory_space<vmem>>, vector<1x512x16xf32>
    %1 = vector.shape_cast %0 : vector<1x512x16xf32> to vector<512x16xf32>
    %c0_2 = arith.constant 0 : index
    %c0_3 = arith.constant 0 : index
    %c0_4 = arith.constant 0 : index
    %2 = vector.load %arg3[%c0_2, %c0_3, %c0_4] : memref<1x16x128xf32, #tpu.memory_space<vmem>>, vector<1x16x128xf32>
    %3 = vector.shape_cast %2 : vector<1x16x128xf32> to vector<16x128xf32>
    %cst = arith.constant dense<0.000000e+00> : vector<512x128xf32>
    %4 = tpu.matmul %1, %3, %cst {dimension_numbers = #tpu.dot_dimension_numbers<[1], [0], [0], [1], [0, 0, 1, 1], [], []>} : vector<512x16xf32>, vector<16x128xf32>, vector<512x128xf32> -> vector<512x128xf32>
    %5 = math.tanh %4 : vector<512x128xf32>
    %c0_5 = arith.constant 0 : index
    %c0_6 = arith.constant 0 : index
    %c0_7 = arith.constant 0 : index
    %6 = vector.load %arg4[%c0_5, %c0_6, %c0_7] : memref<1x512x128xf32, #tpu.memory_space<vmem>>, vector<1x512x128xf32>
    %7 = vector.shape_cast %6 : vector<1x512x128xf32> to vector<512x128xf32>
    %8 = vector.shape_cast %5 : vector<512x128xf32> to vector<1x512x128xf32>
    tpu.vector_store %arg4[%c0_5, %c0_6, %c0_7], %8 {strides = array<i32>} : memref<1x512x128xf32, #tpu.memory_space<vmem>>, vector<1x512x128xf32>,
    return
  }
  func.func @transform_0(%arg0: i32, %arg1: i32) -> (i32, i32, i32) {
    %c0_i32 = arith.constant 0 : i32
    %c0_i32_0 = arith.constant 0 : i32
    return %arg0, %arg1, %c0_i32 : i32, i32, i32
  }
  func.func @transform_1(%arg0: i32, %arg1: i32) -> (i32, i32, i32) {
    %c0_i32 = arith.constant 0 : i32
    %c0_i32_0 = arith.constant 0 : i32
    %c0_i32_1 = arith.constant 0 : i32
    return %arg0, %c0_i32, %c0_i32_0 : i32, i32, i32
  }
  func.func @transform_2(%arg0: i32, %arg1: i32) -> (i32, i32, i32) {
    %c0_i32 = arith.constant 0 : i32
    %c0_i32_0 = arith.constant 0 : i32
    return %arg0, %arg1, %c0_i32 : i32, i32, i32
  }
}

</mosaic_0001>

<llo_original>
// kernel: generator2d_forward.10
$region0: #{generator2d_forward.10}
  #allocation0 [shape = 'u32[]', space=smem, size = 0x4, offset = 0x4, fixed_abs, tag = 'smem constant byte address 0x4 - core index']
  #allocation1 [shape = 'u32[144,128]{1,0:T(1,128)}', space=vmem, size = 0x12000, scoped, tag = 'internal scratch']
  %s0 = inlined_call_operand.vmem [shape: f32[4,8,128], index: 0, kind: input, shape index: {}]
  %s1 = inlined_call_operand.vmem [shape: f32[1,128], index: 1, kind: input, shape index: {}]
  %s2 = inlined_call_operand.vmem [shape: f32[1,128], index: 2, kind: input, shape index: {}]
  %s3 = inlined_call_operand.vmem [shape: f32[4,8,128], index: 3, kind: output, shape index: {}]
  %s4 = sld [smem:[#allocation0]]
  $region45: #{generator2d_forward.10} parent=0
    _
  %s6 = ssub.s32 1, %s4
  %s7 = scalar_select 0, %s6, %s4
  loop: start=0, step=1, limit=6
  $region2: #{generator2d_forward.10} parent=0 // loop_pre_header
    _
  $region3: #{generator2d_forward.10} parent=0 // loop_header
    %s9 = sphi 0, %s13
    %p10 = scmp.ge.s32.totalorder %s9, 6
    %s16 = sphi 0, %s28
    %s17 = sphi 0, %s24
    %s18 = sphi 0, %s16
    %s19 = sphi 0, %s17
    %s20 = sphi 0, %s18
    %s21 = sphi 0, %s19
    %s33 = sphi 0, %s35
    %s36 = sphi 0, %s33
    %s37 = sphi 0, %s36
    %s53 = sphi 0, %s37
    %s57 = sphi 0, %s57
    %s59 = sphi 0, %s57
    %s60 = sphi 0, %s59
    %s74 = sphi 0, %s60
    %s78 = sphi 0, %s78
    %s80 = sphi 0, %s78
    %s81 = sphi 0, %s80
    %s95 = sphi 0, %s81
    %s103 = sphi 0, %s105
    %s106 = sphi 0, %s103
    %s107 = sphi 0, %s106
    %s123 = sphi 0, %s107
  $region4: #{generator2d_forward.10} parent=0 // loop_header_branch
    %12 = sbr.rel (%p10) target = $region8
  $region5: #{generator2d_forward.10} parent=0 // loop_body
    %s14 = ssub.s32 %s9, 1
    %s15 = ssub.s32 %s9, 2
    %s22 = sadd.s32 1, %s17
    %p23 = scmp.ge.s32.totalorder %s22, 1
    %s24 = scalar_select %p23, 0, %s22
    %s25 = sadd.s32 1, %s16
    %s26 = scalar_select %p23, %s25, %s16
    %p27 = scmp.ge.s32.totalorder %s26, 4
    %s28 = scalar_select %p27, 0, %s26
    %s29 = ssub.s32 %s16, %s28
    %s30 = ssub.s32 %s17, %s24
    %s31 = sor.u32 %s29, %s30
    %p32 = scmp.eq.s32.totalorder %s31, 0
    %s34 = sadd.s32 %s33, 1
    %s35 = scalar_select %p32, %s33, %s34
    %p38 = pneg %p32
    %p39 = scmp.eq.s32.totalorder %s9, 3
    %p40 = por %p38, %p39
    %p41 = scmp.ne.s32.totalorder %s33, %s36
    %p42 = scmp.eq.s32.totalorder %s9, 0
    %p43 = por %p41, %p42
    %p44 = scmp.ne.s32.totalorder %s33, %s36
    %p45 = scmp.eq.s32.totalorder %s14, 3
    %p46 = por %p44, %p45
    %p47 = scmp.ne.s32.totalorder %s36, %s37
    %p48 = scmp.eq.s32.totalorder %s14, 0
    %p49 = por %p47, %p48
    %p50 = scmp.ne.s32.totalorder %s36, %s37
    %p51 = scmp.eq.s32.totalorder %s15, 3
    %p52 = por %p50, %p51
    %p54 = scmp.ne.s32.totalorder %s37, %s53
    %p55 = scmp.eq.s32.totalorder %s15, 0
    %p56 = por %p54, %p55
    %s58 = sadd.s32 %s57, 1
    %p61 = scmp.eq.s32.totalorder %s9, 3
    %p62 = scmp.ne.s32.totalorder %s57, %s59
    %p63 = scmp.eq.s32.totalorder %s9, 0
    %p64 = por %p62, %p63
    %p65 = scmp.ne.s32.totalorder %s57, %s59
    %p66 = scmp.eq.s32.totalorder %s14, 3
    %p67 = por %p65, %p66
    %p68 = scmp.ne.s32.totalorder %s59, %s60
    %p69 = scmp.eq.s32.totalorder %s14, 0
    %p70 = por %p68, %p69
    %p71 = scmp.ne.s32.totalorder %s59, %s60
    %p72 = scmp.eq.s32.totalorder %s15, 3
    %p73 = por %p71, %p72
    %p75 = scmp.ne.s32.totalorder %s60, %s74
    %p76 = scmp.eq.s32.totalorder %s15, 0
    %p77 = por %p75, %p76
    %s79 = sadd.s32 %s78, 1
    %p82 = scmp.eq.s32.totalorder %s9, 3
    %p83 = scmp.ne.s32.totalorder %s78, %s80
    %p84 = scmp.eq.s32.totalorder %s9, 0
    %p85 = por %p83, %p84
    %p86 = scmp.ne.s32.totalorder %s78, %s80
    %p87 = scmp.eq.s32.totalorder %s14, 3
    %p88 = por %p86, %p87
    %p89 = scmp.ne.s32.totalorder %s80, %s81
    %p90 = scmp.eq.s32.totalorder %s14, 0
    %p91 = por %p89, %p90
    %p92 = scmp.ne.s32.totalorder %s80, %s81
    %p93 = scmp.eq.s32.totalorder %s15, 3
    %p94 = por %p92, %p93
    %p96 = scmp.ne.s32.totalorder %s81, %s95
    %p97 = scmp.eq.s32.totalorder %s15, 0
    %p98 = por %p96, %p97
    %s99 = ssub.s32 %s16, %s28
    %s100 = ssub.s32 %s17, %s24
    %s101 = sor.u32 %s99, %s100
    %p102 = scmp.eq.s32.totalorder %s101, 0
    %s104 = sadd.s32 %s103, 1
    %s105 = scalar_select %p102, %s103, %s104
    %p108 = pneg %p102
    %p109 = scmp.eq.s32.totalorder %s9, 3
    %p110 = por %p108, %p109
    %p111 = scmp.ne.s32.totalorder %s103, %s106
    %p112 = scmp.eq.s32.totalorder %s9, 0
    %p113 = por %p111, %p112
    %p114 = scmp.ne.s32.totalorder %s103, %s106
    %p115 = scmp.eq.s32.totalorder %s14, 3
    %p116 = por %p114, %p115
    %p117 = scmp.ne.s32.totalorder %s106, %s107
    %p118 = scmp.eq.s32.totalorder %s14, 0
    %p119 = por %p117, %p118
    %p120 = scmp.ne.s32.totalorder %s106, %s107
    %p121 = scmp.eq.s32.totalorder %s15, 3
    %p122 = por %p120, %p121
    %p124 = scmp.ne.s32.totalorder %s107, %s123
    %p125 = scmp.eq.s32.totalorder %s15, 0
    %p126 = por %p124, %p125
    %p127 = scmp.le.s32.totalorder 1, %s9
    %p128 = scmp.lt.s32.totalorder %s9, 5
    %p129 = pnand %p127, %p128
    %p130 = pneg %p129
    // Predicated region
    $region9: #{generator2d_forward.10} parent=5 // pred_check
      _
    $region10: #{generator2d_forward.10} parent=5 // pred_check_branch
      %132 = sbr.rel (%p129) target = $region12
    $region11: #{generator2d_forward.10} parent=5 // pred_region
      %s133 = ssub.s32 %s9, 1
      // Predicated region
      $region13: #{generator2d_forward.10} parent=11 // pred_check
        %p134 = pneg %p70
      $region14: #{generator2d_forward.10} parent=11 // pred_check_branch
        %136 = sbr.rel (%p134) target = $region16
      $region15: #{generator2d_forward.10} parent=11 // pred_region
        _
      $region16: #{generator2d_forward.10} parent=11 // pred_fallthru
        _
      // Predicated region
      $region17: #{generator2d_forward.10} parent=11 // pred_check
        %p137 = pneg %p91
      $region18: #{generator2d_forward.10} parent=11 // pred_check_branch
        %139 = sbr.rel (%p137) target = $region20
      $region19: #{generator2d_forward.10} parent=11 // pred_region
        _
      $region20: #{generator2d_forward.10} parent=11 // pred_fallthru
        _
    $region12: #{generator2d_forward.10} parent=5 // pred_fallthru
      _
    %p140 = scmp.lt.s32.totalorder %s9, 4
    // Predicated region
    $region21: #{generator2d_forward.10} parent=5 // pred_check
      %p141 = pneg %p140
    $region22: #{generator2d_forward.10} parent=5 // pred_check_branch
      %143 = sbr.rel (%p141) target = $region24
    $region23: #{generator2d_forward.10} parent=5 // pred_region
      // Predicated region
      $region25: #{generator2d_forward.10} parent=23 // pred_check
        %p144 = pneg %p43
      $region26: #{generator2d_forward.10} parent=23 // pred_check_branch
        %146 = sbr.rel (%p144) target = $region28
      $region27: #{generator2d_forward.10} parent=23 // pred_region
        %p147 = scmp.lt.s32.totalorder %s16, 3
        %s148 = scalar_select %p147, %s16, 3
        %p149 = scmp.lt.s32.totalorder %s17, 0
        %s150 = scalar_select %p149, %s17, 0
        %s151 = sadd.s32 %s150, %s148
        %s152 = smul.addr %s151, 8
        %s153 = scalar_lea.vmem %s0, %s152
      $region28: #{generator2d_forward.10} parent=23 // pred_fallthru
        _
    $region24: #{generator2d_forward.10} parent=5 // pred_fallthru
      _
    %p154 = scmp.le.s32.totalorder 1, %s9
    %p155 = scmp.lt.s32.totalorder %s9, 5
    %p156 = pnand %p154, %p155
    %p157 = pneg %p156
    // Predicated region
    $region29: #{generator2d_forward.10} parent=5 // pred_check
      _
    $region30: #{generator2d_forward.10} parent=5 // pred_check_branch
      %159 = sbr.rel (%p156) target = $region32
    $region31: #{generator2d_forward.10} parent=5 // pred_region
      %s160 = ssub.s32 %s9, 1
      %p161 = scmp.lt.s32.totalorder %s18, 3
      %s162 = scalar_select %p161, %s18, 3
      %p163 = scmp.lt.s32.totalorder %s19, 0
      %s164 = scalar_select %p163, %s19, 0
      %s165 = sadd.s32 %s164, %s162
      %s166 = smul.addr %s165, 8
      %s167 = scalar_lea.vmem %s0, %s166
      %p168 = pneg %p49
      %p169 = pneg %p46
      %p170 = pneg %p70
      %p171 = pneg %p67
      %p172 = pneg %p91
      %p173 = pneg %p88
      %p174 = pneg %p119
      %p175 = pneg %p116
      %p176 = scmp.lt.s32.totalorder %s18, 3
      %s177 = scalar_select %p176, %s18, 3
      %p178 = scmp.lt.s32.totalorder %s19, 0
      %s179 = scalar_select %p178, %s19, 0
      %s180 = sadd.s32 %s179, %s177
      %s181 = smul.addr %s180, 8
      %s182 = scalar_lea.vmem %s3, %s181
      %p183 = scmp.lt.s32.totalorder %s18, 3
      %s184 = scalar_select %p183, %s18, 3
      %p185 = scmp.lt.s32.totalorder %s19, 0
      %s186 = scalar_select %p185, %s19, 0
      %s187 = sadd.s32 %s186, %s184
      %s188 = smul.addr %s187, 8
      %s189 = scalar_lea.vmem %s0, %s188
      %p190 = scmp.lt.s32.totalorder %s18, 3
      %s191 = scalar_select %p190, %s18, 3
      %p192 = scmp.lt.s32.totalorder %s19, 0
      %s193 = scalar_select %p192, %s19, 0
      %s194 = sadd.s32 %s193, %s191
      %s195 = smul.addr %s194, 8
      %s196 = scalar_lea.vmem %s3, %s195
      %v197 = vld [vmem:[%s189] sm:$0xff]
      %v198 = vld [vmem:[%s1] sm:$0x1]
      %v200 = vlaneseq
      %v201 = vshrl.u32 %v200, 7
      %v202 = vsub.s32 0, %v201
      %v203 = vrot.slane %v198, %v202
      %v205 = vmul.f32 %v197, %v203
      %v206 = vld [vmem:[%s2] sm:$0x1]
      %v208 = vlaneseq
      %v209 = vshrl.u32 %v208, 7
      %v210 = vsub.s32 0, %v209
      %v211 = vrot.slane %v206, %v210
      %v213 = vadd.f32 %v205, %v211
      %v214 = vmax.f32 %v213, 0.0
      %215 = vst [vmem:[%s196] sm:$0xff] %v214
      %p216 = scmp.lt.s32.totalorder %s18, 3
      %s217 = scalar_select %p216, %s18, 3
      %p218 = scmp.lt.s32.totalorder %s19, 0
      %s219 = scalar_select %p218, %s19, 0
      %s220 = sadd.s32 %s219, %s217
      %s221 = smul.addr %s220, 8
      %s222 = scalar_lea.vmem %s3, %s221
      // Predicated region
      $region33: #{generator2d_forward.10} parent=31 // pred_check
        %p223 = pneg %p116
      $region34: #{generator2d_forward.10} parent=31 // pred_check_branch
        %225 = sbr.rel (%p223) target = $region36
      $region35: #{generator2d_forward.10} parent=31 // pred_region
        _
      $region36: #{generator2d_forward.10} parent=31 // pred_fallthru
        _
    $region32: #{generator2d_forward.10} parent=5 // pred_fallthru
      _
    %p226 = scmp.le.s32.totalorder 2, %s9
    // Predicated region
    $region37: #{generator2d_forward.10} parent=5 // pred_check
      %p227 = pneg %p226
    $region38: #{generator2d_forward.10} parent=5 // pred_check_branch
      %229 = sbr.rel (%p227) target = $region40
    $region39: #{generator2d_forward.10} parent=5 // pred_region
      %s230 = ssub.s32 %s9, 2
      // Predicated region
      $region41: #{generator2d_forward.10} parent=39 // pred_check
        %p231 = pneg %p122
      $region42: #{generator2d_forward.10} parent=39 // pred_check_branch
        %233 = sbr.rel (%p231) target = $region44
      $region43: #{generator2d_forward.10} parent=39 // pred_region
        %p234 = scmp.lt.s32.totalorder %s20, 3
        %s235 = scalar_select %p234, %s20, 3
        %p236 = scmp.lt.s32.totalorder %s21, 0
        %s237 = scalar_select %p236, %s21, 0
        %s238 = sadd.s32 %s237, %s235
        %s239 = smul.addr %s238, 8
        %s240 = scalar_lea.vmem %s3, %s239
      $region44: #{generator2d_forward.10} parent=39 // pred_fallthru
        _
    $region40: #{generator2d_forward.10} parent=5 // pred_fallthru
      _
  $region6: #{generator2d_forward.10} parent=0 // loop_footer
    %s13 = sadd.s32 1, %s9
  $region7: #{generator2d_forward.10} parent=0 // loop_footer_branch
    %8 = sbr.rel target = $region3
  $region8: #{generator2d_forward.10} parent=0 // loop_exit
    _

// kernel: generator2d_forward.9
$region0: #{generator2d_forward.9}
  #allocation0 [shape = 'u32[]', space=smem, size = 0x4, offset = 0x4, fixed_abs, tag = 'smem constant byte address 0x4 - core index']
  #allocation1 [shape = 'u32[144,128]{1,0:T(1,128)}', space=vmem, size = 0x12000, scoped, tag = 'internal scratch']
  %s0 = inlined_call_operand.vmem [shape: f32[4,8,32], index: 0, kind: input, shape index: {}]
  %s1 = inlined_call_operand.vmem [shape: f32[4,32,128], index: 1, kind: input, shape index: {}]
  %s2 = inlined_call_operand.vmem [shape: f32[4,8,128], index: 2, kind: output, shape index: {0}]
  %s3 = inlined_call_operand.vmem [shape: f32[4,8,128], index: 3, kind: output, shape index: {1}]
  %s4 = inlined_call_operand.vmem [shape: f32[4,8,128], index: 4, kind: output, shape index: {2}]
  %5 = xla_tuple %s2, %s3, %s4
  %s6 = sld [smem:[#allocation0]]
  $region61: #{generator2d_forward.9} parent=0
    _
  %s8 = ssub.s32 1, %s6
  %s9 = scalar_select 0, %s8, %s6
  loop: start=0, step=1, limit=6
  $region2: #{generator2d_forward.9} parent=0 // loop_pre_header
    _
  $region3: #{generator2d_forward.9} parent=0 // loop_header
    %s11 = sphi 0, %s15
    %p12 = scmp.ge.s32.totalorder %s11, 6
    %s18 = sphi 0, %s30
    %s19 = sphi 0, %s26
    %s20 = sphi 0, %s18
    %s21 = sphi 0, %s19
    %s22 = sphi 0, %s20
    %s23 = sphi 0, %s21
    %s35 = sphi 0, %s37
    %s38 = sphi 0, %s35
    %s39 = sphi 0, %s38
    %s55 = sphi 0, %s39
    %s61 = sphi 0, %s63
    %s64 = sphi 0, %s61
    %s65 = sphi 0, %s64
    %s81 = sphi 0, %s65
    %s89 = sphi 0, %s91
    %s92 = sphi 0, %s89
    %s93 = sphi 0, %s92
    %s109 = sphi 0, %s93
    %s115 = sphi 0, %s117
    %s118 = sphi 0, %s115
    %s119 = sphi 0, %s118
    %s135 = sphi 0, %s119
    %s141 = sphi 0, %s143
    %s144 = sphi 0, %s141
    %s145 = sphi 0, %s144
    %s161 = sphi 0, %s145
  $region4: #{generator2d_forward.9} parent=0 // loop_header_branch
    %14 = sbr.rel (%p12) target = $region8
  $region5: #{generator2d_forward.9} parent=0 // loop_body
    %s16 = ssub.s32 %s11, 1
    %s17 = ssub.s32 %s11, 2
    %s24 = sadd.s32 1, %s19
    %p25 = scmp.ge.s32.totalorder %s24, 1
    %s26 = scalar_select %p25, 0, %s24
    %s27 = sadd.s32 1, %s18
    %s28 = scalar_select %p25, %s27, %s18
    %p29 = scmp.ge.s32.totalorder %s28, 4
    %s30 = scalar_select %p29, 0, %s28
    %s31 = ssub.s32 %s18, %s30
    %s32 = ssub.s32 %s19, %s26
    %s33 = sor.u32 %s31, %s32
    %p34 = scmp.eq.s32.totalorder %s33, 0
    %s36 = sadd.s32 %s35, 1
    %s37 = scalar_select %p34, %s35, %s36
    %p40 = pneg %p34
    %p41 = scmp.eq.s32.totalorder %s11, 3
    %p42 = por %p40, %p41
    %p43 = scmp.ne.s32.totalorder %s35, %s38
    %p44 = scmp.eq.s32.totalorder %s11, 0
    %p45 = por %p43, %p44
    %p46 = scmp.ne.s32.totalorder %s35, %s38
    %p47 = scmp.eq.s32.totalorder %s16, 3
    %p48 = por %p46, %p47
    %p49 = scmp.ne.s32.totalorder %s38, %s39
    %p50 = scmp.eq.s32.totalorder %s16, 0
    %p51 = por %p49, %p50
    %p52 = scmp.ne.s32.totalorder %s38, %s39
    %p53 = scmp.eq.s32.totalorder %s17, 3
    %p54 = por %p52, %p53
    %p56 = scmp.ne.s32.totalorder %s39, %s55
    %p57 = scmp.eq.s32.totalorder %s17, 0
    %p58 = por %p56, %p57
    %s59 = ssub.s32 %s18, %s30
    %p60 = scmp.eq.s32.totalorder %s59, 0
    %s62 = sadd.s32 %s61, 1
    %s63 = scalar_select %p60, %s61, %s62
    %p66 = pneg %p60
    %p67 = scmp.eq.s32.totalorder %s11, 3
    %p68 = por %p66, %p67
    %p69 = scmp.ne.s32.totalorder %s61, %s64
    %p70 = scmp.eq.s32.totalorder %s11, 0
    %p71 = por %p69, %p70
    %p72 = scmp.ne.s32.totalorder %s61, %s64
    %p73 = scmp.eq.s32.totalorder %s16, 3
    %p74 = por %p72, %p73
    %p75 = scmp.ne.s32.totalorder %s64, %s65
    %p76 = scmp.eq.s32.totalorder %s16, 0
    %p77 = por %p75, %p76
    %p78 = scmp.ne.s32.totalorder %s64, %s65
    %p79 = scmp.eq.s32.totalorder %s17, 3
    %p80 = por %p78, %p79
    %p82 = scmp.ne.s32.totalorder %s65, %s81
    %p83 = scmp.eq.s32.totalorder %s17, 0
    %p84 = por %p82, %p83
    %s85 = ssub.s32 %s18, %s30
    %s86 = ssub.s32 %s19, %s26
    %s87 = sor.u32 %s85, %s86
    %p88 = scmp.eq.s32.totalorder %s87, 0
    %s90 = sadd.s32 %s89, 1
    %s91 = scalar_select %p88, %s89, %s90
    %p94 = pneg %p88
    %p95 = scmp.eq.s32.totalorder %s11, 3
    %p96 = por %p94, %p95
    %p97 = scmp.ne.s32.totalorder %s89, %s92
    %p98 = scmp.eq.s32.totalorder %s11, 0
    %p99 = por %p97, %p98
    %p100 = scmp.ne.s32.totalorder %s89, %s92
    %p101 = scmp.eq.s32.totalorder %s16, 3
    %p102 = por %p100, %p101
    %p103 = scmp.ne.s32.totalorder %s92, %s93
    %p104 = scmp.eq.s32.totalorder %s16, 0
    %p105 = por %p103, %p104
    %p106 = scmp.ne.s32.totalorder %s92, %s93
    %p107 = scmp.eq.s32.totalorder %s17, 3
    %p108 = por %p106, %p107
    %p110 = scmp.ne.s32.totalorder %s93, %s109
    %p111 = scmp.eq.s32.totalorder %s17, 0
    %p112 = por %p110, %p111
    %s113 = ssub.s32 %s18, %s30
    %p114 = scmp.eq.s32.totalorder %s113, 0
    %s116 = sadd.s32 %s115, 1
    %s117 = scalar_select %p114, %s115, %s116
    %p120 = pneg %p114
    %p121 = scmp.eq.s32.totalorder %s11, 3
    %p122 = por %p120, %p121
    %p123 = scmp.ne.s32.totalorder %s115, %s118
    %p124 = scmp.eq.s32.totalorder %s11, 0
    %p125 = por %p123, %p124
    %p126 = scmp.ne.s32.totalorder %s115, %s118
    %p127 = scmp.eq.s32.totalorder %s16, 3
    %p128 = por %p126, %p127
    %p129 = scmp.ne.s32.totalorder %s118, %s119
    %p130 = scmp.eq.s32.totalorder %s16, 0
    %p131 = por %p129, %p130
    %p132 = scmp.ne.s32.totalorder %s118, %s119
    %p133 = scmp.eq.s32.totalorder %s17, 3
    %p134 = por %p132, %p133
    %p136 = scmp.ne.s32.totalorder %s119, %s135
    %p137 = scmp.eq.s32.totalorder %s17, 0
    %p138 = por %p136, %p137
    %s139 = ssub.s32 %s18, %s30
    %p140 = scmp.eq.s32.totalorder %s139, 0
    %s142 = sadd.s32 %s141, 1
    %s143 = scalar_select %p140, %s141, %s142
    %p146 = pneg %p140
    %p147 = scmp.eq.s32.totalorder %s11, 3
    %p148 = por %p146, %p147
    %p149 = scmp.ne.s32.totalorder %s141, %s144
    %p150 = scmp.eq.s32.totalorder %s11, 0
    %p151 = por %p149, %p150
    %p152 = scmp.ne.s32.totalorder %s141, %s144
    %p153 = scmp.eq.s32.totalorder %s16, 3
    %p154 = por %p152, %p153
    %p155 = scmp.ne.s32.totalorder %s144, %s145
    %p156 = scmp.eq.s32.totalorder %s16, 0
    %p157 = por %p155, %p156
    %p158 = scmp.ne.s32.totalorder %s144, %s145
    %p159 = scmp.eq.s32.totalorder %s17, 3
    %p160 = por %p158, %p159
    %p162 = scmp.ne.s32.totalorder %s145, %s161
    %p163 = scmp.eq.s32.totalorder %s17, 0
    %p164 = por %p162, %p163
    %p165 = scmp.le.s32.totalorder 1, %s11
    %p166 = scmp.lt.s32.totalorder %s11, 5
    %p167 = pnand %p165, %p166
    %p168 = pneg %p167
    // Predicated region
    $region9: #{generator2d_forward.9} parent=5 // pred_check
      _
    $region10: #{generator2d_forward.9} parent=5 // pred_check_branch
      %170 = sbr.rel (%p167) target = $region12
    $region11: #{generator2d_forward.9} parent=5 // pred_region
      %s171 = ssub.s32 %s11, 1
    $region12: #{generator2d_forward.9} parent=5 // pred_fallthru
      _
    %p172 = scmp.lt.s32.totalorder %s11, 4
    // Predicated region
    $region13: #{generator2d_forward.9} parent=5 // pred_check
      %p173 = pneg %p172
    $region14: #{generator2d_forward.9} parent=5 // pred_check_branch
      %175 = sbr.rel (%p173) target = $region16
    $region15: #{generator2d_forward.9} parent=5 // pred_region
      // Predicated region
      $region17: #{generator2d_forward.9} parent=15 // pred_check
        %p176 = pneg %p45
      $region18: #{generator2d_forward.9} parent=15 // pred_check_branch
        %178 = sbr.rel (%p176) target = $region20
      $region19: #{generator2d_forward.9} parent=15 // pred_region
        %p179 = scmp.lt.s32.totalorder %s18, 3
        %s180 = scalar_select %p179, %s18, 3
        %p181 = scmp.lt.s32.totalorder %s19, 0
        %s182 = scalar_select %p181, %s19, 0
        %s183 = sadd.s32 %s182, %s180
        %s184 = smul.addr %s183, 8
        %s185 = scalar_lea.vmem %s0, %s184
      $region20: #{generator2d_forward.9} parent=15 // pred_fallthru
        _
      // Predicated region
      $region21: #{generator2d_forward.9} parent=15 // pred_check
        %p186 = pneg %p71
      $region22: #{generator2d_forward.9} parent=15 // pred_check_branch
        %188 = sbr.rel (%p186) target = $region24
      $region23: #{generator2d_forward.9} parent=15 // pred_region
        %p189 = scmp.lt.s32.totalorder %s18, 3
        %s190 = scalar_select %p189, %s18, 3
        %s191 = smul.addr %s190, 4
        %s192 = smul.addr %s191, 8
        %s193 = scalar_lea.vmem %s1, %s192
      $region24: #{generator2d_forward.9} parent=15 // pred_fallthru
        _
    $region16: #{generator2d_forward.9} parent=5 // pred_fallthru
      _
    %p194 = scmp.le.s32.totalorder 1, %s11
    %p195 = scmp.lt.s32.totalorder %s11, 5
    %p196 = pnand %p194, %p195
    %p197 = pneg %p196
    // Predicated region
    $region25: #{generator2d_forward.9} parent=5 // pred_check
      _
    $region26: #{generator2d_forward.9} parent=5 // pred_check_branch
      %199 = sbr.rel (%p196) target = $region28
    $region27: #{generator2d_forward.9} parent=5 // pred_region
      %s200 = ssub.s32 %s11, 1
      %p201 = scmp.lt.s32.totalorder %s20, 3
      %s202 = scalar_select %p201, %s20, 3
      %p203 = scmp.lt.s32.totalorder %s21, 0
      %s204 = scalar_select %p203, %s21, 0
      %s205 = sadd.s32 %s204, %s202
      %s206 = smul.addr %s205, 8
      %s207 = scalar_lea.vmem %s0, %s206
      %p208 = pneg %p51
      %p209 = pneg %p48
      %p210 = scmp.lt.s32.totalorder %s20, 3
      %s211 = scalar_select %p210, %s20, 3
      %s212 = smul.addr %s211, 4
      %s213 = smul.addr %s212, 8
      %s214 = scalar_lea.vmem %s1, %s213
      %p215 = pneg %p77
      %p216 = pneg %p74
      %p217 = pneg %p105
      %p218 = pneg %p102
      %p219 = scmp.lt.s32.totalorder %s20, 3
      %s220 = scalar_select %p219, %s20, 3
      %p221 = scmp.lt.s32.totalorder %s21, 0
      %s222 = scalar_select %p221, %s21, 0
      %s223 = sadd.s32 %s222, %s220
      %s224 = smul.addr %s223, 8
      %s225 = scalar_lea.vmem %s2, %s224
      %p226 = pneg %p131
      %p227 = pneg %p128
      %p228 = scmp.lt.s32.totalorder %s20, 3
      %s229 = scalar_select %p228, %s20, 3
      %s230 = smul.addr %s229, 8
      %s231 = scalar_lea.vmem %s3, %s230
      %p232 = pneg %p157
      %p233 = pneg %p154
      %p234 = scmp.lt.s32.totalorder %s20, 3
      %s235 = scalar_select %p234, %s20, 3
      %s236 = smul.addr %s235, 8
      %s237 = scalar_lea.vmem %s4, %s236
      %p238 = scmp.lt.s32.totalorder %s20, 3
      %s239 = scalar_select %p238, %s20, 3
      %p240 = scmp.lt.s32.totalorder %s21, 0
      %s241 = scalar_select %p240, %s21, 0
      %s242 = sadd.s32 %s241, %s239
      %s243 = smul.addr %s242, 8
      %s244 = scalar_lea.vmem %s0, %s243
      %p245 = scmp.lt.s32.totalorder %s20, 3
      %s246 = scalar_select %p245, %s20, 3
      %s247 = smul.addr %s246, 4
      %s248 = smul.addr %s247, 8
      %s249 = scalar_lea.vmem %s1, %s248
      %p250 = scmp.lt.s32.totalorder %s20, 3
      %s251 = scalar_select %p250, %s20, 3
      %p252 = scmp.lt.s32.totalorder %s21, 0
      %s253 = scalar_select %p252, %s21, 0
      %s254 = sadd.s32 %s253, %s251
      %s255 = smul.addr %s254, 8
      %s256 = scalar_lea.vmem %s2, %s255
      %p257 = scmp.lt.s32.totalorder %s20, 3
      %s258 = scalar_select %p257, %s20, 3
      %s259 = smul.addr %s258, 8
      %s260 = scalar_lea.vmem %s3, %s259
      %p261 = scmp.lt.s32.totalorder %s20, 3
      %s262 = scalar_select %p261, %s20, 3
      %s263 = smul.addr %s262, 8
      %s264 = scalar_lea.vmem %s4, %s263
      %p265 = scmp.eq.s32.totalorder %s21, 0
      // Predicated region
      $region29: #{generator2d_forward.9} parent=27 // pred_check
        %p266 = pneg %p265
      $region30: #{generator2d_forward.9} parent=27 // pred_check_branch
        %268 = sbr.rel (%p266) target = $region32
      $region31: #{generator2d_forward.9} parent=27 // pred_region
        %269 = vst [vmem:[%s260] sm:$0xff] 0.0
        %270 = vst [vmem:[%s264] sm:$0xff] 0.0
      $region32: #{generator2d_forward.9} parent=27 // pred_fallthru
        _
      %v271 = vld [vmem:[%s244] sm:$0xff]
      %v272 = vld [vmem:[%s249] sm:$0xff]
      %v273 = vld [vmem:[%s249 + $0x8] sm:$0xff]
      %v274 = vld [vmem:[%s249 + $0x10] sm:$0xff]
      %v275 = vld [vmem:[%s249 + $0x18] sm:$0xff]
      %vm276 = vcmask 261120
      %v278 = vsel %vm276, %v271, 0
      %280 = vmatprep.subr.mxu0 0.0
      %281 = vmatpush1.msra.mxu0 0.0
      %282 = vmatprep.subr.mxu0 0.0
      %283 = vmatpush1.msra.mxu0 0.0
      %284 = vmatprep.subr.mxu0 0.0
      %285 = vmatpush1.msra.mxu0 0.0
      %286 = vmatprep.subr.mxu0 0.0
      %287 = vmatpush1.msra.mxu0 0.0
      %288 = vmatprep.subr.mxu0 0.0
      %289 = vmatpush1.msra.mxu0 0.0
      %290 = vmatprep.subr.mxu0 0.0
      %291 = vmatpush1.msra.mxu0 0.0
      %292 = vmatprep.subr.mxu0 0.0
      %293 = vmatpush1.msra.mxu0 0.0
      %294 = vmatprep.subr.mxu0 0.0
      %295 = vmatpush1.msra.mxu0 0.0
      %296 = vmatprep.subr.mxu0 0.0
      %297 = vmatpush1.msra.mxu0 0.0
      %298 = vmatprep.subr.mxu0 0.0
      %299 = vmatpush1.msra.mxu0 0.0
      %300 = vmatprep.subr.mxu0 0.0
      %301 = vmatpush1.msra.mxu0 0.0
      %302 = vmatprep.subr.mxu0 0.0
      %303 = vmatpush1.msra.mxu0 0.0
      %304 = vmatprep.subr.mxu0 0.0
      %305 = vmatpush1.msra.mxu0 %v275
      %306 = vmatprep.subr.mxu0 0.0
      %307 = vmatpush1.msra.mxu0 %v274
      %308 = vmatprep.subr.mxu0 0.0
      %309 = vmatpush1.msra.mxu0 %v273
      %310 = vmatprep.subr.mxu0 0.0
      %311 = vmatpush1.msra.mxu0 %v272
      %312 = vmatprep.subr.mxu0 0.0
      %313 = vmatpush2.msra.mxu0 0.0
      %314 = vmatprep.subr.mxu0 0.0
      %315 = vmatpush2.msra.mxu0 0.0
      %316 = vmatprep.subr.mxu0 0.0
      %317 = vmatpush2.msra.mxu0 0.0
      %318 = vmatprep.subr.mxu0 0.0
      %319 = vmatpush2.msra.mxu0 0.0
      %320 = vmatprep.subr.mxu0 0.0
      %321 = vmatpush2.msra.mxu0 0.0
      %322 = vmatprep.subr.mxu0 0.0
      %323 = vmatpush2.msra.mxu0 0.0
      %324 = vmatprep.subr.mxu0 0.0
      %325 = vmatpush2.msra.mxu0 0.0
      %326 = vmatprep.subr.mxu0 0.0
      %327 = vmatpush2.msra.mxu0 0.0
      %328 = vmatprep.subr.mxu0 0.0
      %329 = vmatpush2.msra.mxu0 0.0
      %330 = vmatprep.subr.mxu0 0.0
      %331 = vmatpush2.msra.mxu0 0.0
      %332 = vmatprep.subr.mxu0 0.0
      %333 = vmatpush2.msra.mxu0 0.0
      %334 = vmatprep.subr.mxu0 0.0
      %335 = vmatpush2.msra.mxu0 0.0
      %336 = vmatprep.subr.mxu0 0.0
      %337 = vmatpush2.msra.mxu0 0.0
      %338 = vmatprep.subr.mxu0 0.0
      %339 = vmatpush2.msra.mxu0 0.0
      %340 = vmatprep.subr.mxu0 0.0
      %341 = vmatpush2.msra.mxu0 0.0
      %342 = vmatprep.subr.mxu0 0.0
      %343 = vmatpush2.msra.mxu0 0.0
      %344 = vmatprep.mubr.f32.mxu0 0.0
      %345 = vmatmul.mubr.f32.gmra.mxu0 %v278
      %v346 = vpop.f32.mrf.mxu0
      %v347 = vadd.f32 0.0, %v346
      %v348 = vpop.f32.mrf.mxu0
      %349 = vdwg.mxu0
      %350 = vst [vmem:[%s256] sm:$0xff] %v347
      %v351 = vld [vmem:[%s260] sm:$0xff]
      %v352 = vrot.slane %v347, 4
      %v353 = vadd.f32 %v347, %v352
      %v354 = vrot.slane %v353, 2
      %v355 = vadd.f32 %v353, %v354
      %v356 = vrot.slane %v355, 1
      %v357 = vadd.f32 %v355, %v356
      %v358 = vadd.f32 %v351, %v357
      %359 = vst [vmem:[%s260] sm:$0xff] %v358
      %v360 = vld [vmem:[%s264] sm:$0xff]
      %v361 = vmul.f32 %v347, %v347
      %v362 = vrot.slane %v361, 4
      %v363 = vadd.f32 %v361, %v362
      %v364 = vrot.slane %v363, 2
      %v365 = vadd.f32 %v363, %v364
      %v366 = vrot.slane %v365, 1
      %v367 = vadd.f32 %v365, %v366
      %v368 = vadd.f32 %v360, %v367
      %369 = vst [vmem:[%s264] sm:$0xff] %v368
      %p370 = scmp.lt.s32.totalorder %s20, 3
      %s371 = scalar_select %p370, %s20, 3
      %p372 = scmp.lt.s32.totalorder %s21, 0
      %s373 = scalar_select %p372, %s21, 0
      %s374 = sadd.s32 %s373, %s371
      %s375 = smul.addr %s374, 8
      %s376 = scalar_lea.vmem %s2, %s375
      %p377 = scmp.lt.s32.totalorder %s20, 3
      %s378 = scalar_select %p377, %s20, 3
      %s379 = smul.addr %s378, 8
      %s380 = scalar_lea.vmem %s3, %s379
      %p381 = scmp.lt.s32.totalorder %s20, 3
      %s382 = scalar_select %p381, %s20, 3
      %s383 = smul.addr %s382, 8
      %s384 = scalar_lea.vmem %s4, %s383
      // Predicated region
      $region33: #{generator2d_forward.9} parent=27 // pred_check
        %p385 = pneg %p102
      $region34: #{generator2d_forward.9} parent=27 // pred_check_branch
        %387 = sbr.rel (%p385) target = $region36
      $region35: #{generator2d_forward.9} parent=27 // pred_region
        _
      $region36: #{generator2d_forward.9} parent=27 // pred_fallthru
        _
      // Predicated region
      $region37: #{generator2d_forward.9} parent=27 // pred_check
        %p388 = pneg %p128
      $region38: #{generator2d_forward.9} parent=27 // pred_check_branch
        %390 = sbr.rel (%p388) target = $region40
      $region39: #{generator2d_forward.9} parent=27 // pred_region
        _
      $region40: #{generator2d_forward.9} parent=27 // pred_fallthru
        _
      // Predicated region
      $region41: #{generator2d_forward.9} parent=27 // pred_check
        %p391 = pneg %p154
      $region42: #{generator2d_forward.9} parent=27 // pred_check_branch
        %393 = sbr.rel (%p391) target = $region44
      $region43: #{generator2d_forward.9} parent=27 // pred_region
        _
      $region44: #{generator2d_forward.9} parent=27 // pred_fallthru
        _
    $region28: #{generator2d_forward.9} parent=5 // pred_fallthru
      _
    %p394 = scmp.le.s32.totalorder 2, %s11
    // Predicated region
    $region45: #{generator2d_forward.9} parent=5 // pred_check
      %p395 = pneg %p394
    $region46: #{generator2d_forward.9} parent=5 // pred_check_branch
      %397 = sbr.rel (%p395) target = $region48
    $region47: #{generator2d_forward.9} parent=5 // pred_region
      %s398 = ssub.s32 %s11, 2
      // Predicated region
      $region49: #{generator2d_forward.9} parent=47 // pred_check
        %p399 = pneg %p108
      $region50: #{generator2d_forward.9} parent=47 // pred_check_branch
        %401 = sbr.rel (%p399) target = $region52
      $region51: #{generator2d_forward.9} parent=47 // pred_region
        %p402 = scmp.lt.s32.totalorder %s22, 3
        %s403 = scalar_select %p402, %s22, 3
        %p404 = scmp.lt.s32.totalorder %s23, 0
        %s405 = scalar_select %p404, %s23, 0
        %s406 = sadd.s32 %s405, %s403
        %s407 = smul.addr %s406, 8
        %s408 = scalar_lea.vmem %s2, %s407
      $region52: #{generator2d_forward.9} parent=47 // pred_fallthru
        _
      // Predicated region
      $region53: #{generator2d_forward.9} parent=47 // pred_check
        %p409 = pneg %p134
      $region54: #{generator2d_forward.9} parent=47 // pred_check_branch
        %411 = sbr.rel (%p409) target = $region56
      $region55: #{generator2d_forward.9} parent=47 // pred_region
        %p412 = scmp.lt.s32.totalorder %s22, 3
        %s413 = scalar_select %p412, %s22, 3
        %s414 = smul.addr %s413, 8
        %s415 = scalar_lea.vmem %s3, %s414
      $region56: #{generator2d_forward.9} parent=47 // pred_fallthru
        _
      // Predicated region
      $region57: #{generator2d_forward.9} parent=47 // pred_check
        %p416 = pneg %p160
      $region58: #{generator2d_forward.9} parent=47 // pred_check_branch
        %418 = sbr.rel (%p416) target = $region60
      $region59: #{generator2d_forward.9} parent=47 // pred_region
        %p419 = scmp.lt.s32.totalorder %s22, 3
        %s420 = scalar_select %p419, %s22, 3
        %s421 = smul.addr %s420, 8
        %s422 = scalar_lea.vmem %s4, %s421
      $region60: #{generator2d_forward.9} parent=47 // pred_fallthru
        _
    $region48: #{generator2d_forward.9} parent=5 // pred_fallthru
      _
  $region6: #{generator2d_forward.9} parent=0 // loop_footer
    %s15 = sadd.s32 1, %s11
  $region7: #{generator2d_forward.9} parent=0 // loop_footer_branch
    %10 = sbr.rel target = $region3
  $region8: #{generator2d_forward.9} parent=0 // loop_exit
    _

// kernel: generator2d_forward.11
$region0: #{generator2d_forward.11}
  #allocation0 [shape = 'u32[]', space=smem, size = 0x4, offset = 0x4, fixed_abs, tag = 'smem constant byte address 0x4 - core index']
  #allocation1 [shape = 'u32[144,128]{1,0:T(1,128)}', space=vmem, size = 0x12000, scoped, tag = 'internal scratch']
  %s0 = inlined_call_operand.vmem [shape: f32[4,32,128], index: 0, kind: input, shape index: {}]
  %s1 = inlined_call_operand.vmem [shape: f32[4,128,128], index: 1, kind: input, shape index: {}]
  %s2 = inlined_call_operand.vmem [shape: f32[4,32,128], index: 2, kind: output, shape index: {0}]
  %s3 = inlined_call_operand.vmem [shape: f32[4,8,128], index: 3, kind: output, shape index: {1}]
  %s4 = inlined_call_operand.vmem [shape: f32[4,8,128], index: 4, kind: output, shape index: {2}]
  %5 = xla_tuple %s2, %s3, %s4
  %s6 = sld [smem:[#allocation0]]
  $region61: #{generator2d_forward.11} parent=0
    _
  %s8 = ssub.s32 1, %s6
  %s9 = scalar_select 0, %s8, %s6
  loop: start=0, step=1, limit=6
  $region2: #{generator2d_forward.11} parent=0 // loop_pre_header
    _
  $region3: #{generator2d_forward.11} parent=0 // loop_header
    %s11 = sphi 0, %s15
    %p12 = scmp.ge.s32.totalorder %s11, 6
    %s18 = sphi 0, %s30
    %s19 = sphi 0, %s26
    %s20 = sphi 0, %s18
    %s21 = sphi 0, %s19
    %s22 = sphi 0, %s20
    %s23 = sphi 0, %s21
    %s35 = sphi 0, %s37
    %s38 = sphi 0, %s35
    %s39 = sphi 0, %s38
    %s55 = sphi 0, %s39
    %s61 = sphi 0, %s63
    %s64 = sphi 0, %s61
    %s65 = sphi 0, %s64
    %s81 = sphi 0, %s65
    %s89 = sphi 0, %s91
    %s92 = sphi 0, %s89
    %s93 = sphi 0, %s92
    %s109 = sphi 0, %s93
    %s115 = sphi 0, %s117
    %s118 = sphi 0, %s115
    %s119 = sphi 0, %s118
    %s135 = sphi 0, %s119
    %s141 = sphi 0, %s143
    %s144 = sphi 0, %s141
    %s145 = sphi 0, %s144
    %s161 = sphi 0, %s145
  $region4: #{generator2d_forward.11} parent=0 // loop_header_branch
    %14 = sbr.rel (%p12) target = $region8
  $region5: #{generator2d_forward.11} parent=0 // loop_body
    %s16 = ssub.s32 %s11, 1
    %s17 = ssub.s32 %s11, 2
    %s24 = sadd.s32 1, %s19
    %p25 = scmp.ge.s32.totalorder %s24, 1
    %s26 = scalar_select %p25, 0, %s24
    %s27 = sadd.s32 1, %s18
    %s28 = scalar_select %p25, %s27, %s18
    %p29 = scmp.ge.s32.totalorder %s28, 4
    %s30 = scalar_select %p29, 0, %s28
    %s31 = ssub.s32 %s18, %s30
    %s32 = ssub.s32 %s19, %s26
    %s33 = sor.u32 %s31, %s32
    %p34 = scmp.eq.s32.totalorder %s33, 0
    %s36 = sadd.s32 %s35, 1
    %s37 = scalar_select %p34, %s35, %s36
    %p40 = pneg %p34
    %p41 = scmp.eq.s32.totalorder %s11, 3
    %p42 = por %p40, %p41
    %p43 = scmp.ne.s32.totalorder %s35, %s38
    %p44 = scmp.eq.s32.totalorder %s11, 0
    %p45 = por %p43, %p44
    %p46 = scmp.ne.s32.totalorder %s35, %s38
    %p47 = scmp.eq.s32.totalorder %s16, 3
    %p48 = por %p46, %p47
    %p49 = scmp.ne.s32.totalorder %s38, %s39
    %p50 = scmp.eq.s32.totalorder %s16, 0
    %p51 = por %p49, %p50
    %p52 = scmp.ne.s32.totalorder %s38, %s39
    %p53 = scmp.eq.s32.totalorder %s17, 3
    %p54 = por %p52, %p53
    %p56 = scmp.ne.s32.totalorder %s39, %s55
    %p57 = scmp.eq.s32.totalorder %s17, 0
    %p58 = por %p56, %p57
    %s59 = ssub.s32 %s18, %s30
    %p60 = scmp.eq.s32.totalorder %s59, 0
    %s62 = sadd.s32 %s61, 1
    %s63 = scalar_select %p60, %s61, %s62
    %p66 = pneg %p60
    %p67 = scmp.eq.s32.totalorder %s11, 3
    %p68 = por %p66, %p67
    %p69 = scmp.ne.s32.totalorder %s61, %s64
    %p70 = scmp.eq.s32.totalorder %s11, 0
    %p71 = por %p69, %p70
    %p72 = scmp.ne.s32.totalorder %s61, %s64
    %p73 = scmp.eq.s32.totalorder %s16, 3
    %p74 = por %p72, %p73
    %p75 = scmp.ne.s32.totalorder %s64, %s65
    %p76 = scmp.eq.s32.totalorder %s16, 0
    %p77 = por %p75, %p76
    %p78 = scmp.ne.s32.totalorder %s64, %s65
    %p79 = scmp.eq.s32.totalorder %s17, 3
    %p80 = por %p78, %p79
    %p82 = scmp.ne.s32.totalorder %s65, %s81
    %p83 = scmp.eq.s32.totalorder %s17, 0
    %p84 = por %p82, %p83
    %s85 = ssub.s32 %s18, %s30
    %s86 = ssub.s32 %s19, %s26
    %s87 = sor.u32 %s85, %s86
    %p88 = scmp.eq.s32.totalorder %s87, 0
    %s90 = sadd.s32 %s89, 1
    %s91 = scalar_select %p88, %s89, %s90
    %p94 = pneg %p88
    %p95 = scmp.eq.s32.totalorder %s11, 3
    %p96 = por %p94, %p95
    %p97 = scmp.ne.s32.totalorder %s89, %s92
    %p98 = scmp.eq.s32.totalorder %s11, 0
    %p99 = por %p97, %p98
    %p100 = scmp.ne.s32.totalorder %s89, %s92
    %p101 = scmp.eq.s32.totalorder %s16, 3
    %p102 = por %p100, %p101
    %p103 = scmp.ne.s32.totalorder %s92, %s93
    %p104 = scmp.eq.s32.totalorder %s16, 0
    %p105 = por %p103, %p104
    %p106 = scmp.ne.s32.totalorder %s92, %s93
    %p107 = scmp.eq.s32.totalorder %s17, 3
    %p108 = por %p106, %p107
    %p110 = scmp.ne.s32.totalorder %s93, %s109
    %p111 = scmp.eq.s32.totalorder %s17, 0
    %p112 = por %p110, %p111
    %s113 = ssub.s32 %s18, %s30
    %p114 = scmp.eq.s32.totalorder %s113, 0
    %s116 = sadd.s32 %s115, 1
    %s117 = scalar_select %p114, %s115, %s116
    %p120 = pneg %p114
    %p121 = scmp.eq.s32.totalorder %s11, 3
    %p122 = por %p120, %p121
    %p123 = scmp.ne.s32.totalorder %s115, %s118
    %p124 = scmp.eq.s32.totalorder %s11, 0
    %p125 = por %p123, %p124
    %p126 = scmp.ne.s32.totalorder %s115, %s118
    %p127 = scmp.eq.s32.totalorder %s16, 3
    %p128 = por %p126, %p127
    %p129 = scmp.ne.s32.totalorder %s118, %s119
    %p130 = scmp.eq.s32.totalorder %s16, 0
    %p131 = por %p129, %p130
    %p132 = scmp.ne.s32.totalorder %s118, %s119
    %p133 = scmp.eq.s32.totalorder %s17, 3
    %p134 = por %p132, %p133
    %p136 = scmp.ne.s32.totalorder %s119, %s135
    %p137 = scmp.eq.s32.totalorder %s17, 0
    %p138 = por %p136, %p137
    %s139 = ssub.s32 %s18, %s30
    %p140 = scmp.eq.s32.totalorder %s139, 0
    %s142 = sadd.s32 %s141, 1
    %s143 = scalar_select %p140, %s141, %s142
    %p146 = pneg %p140
    %p147 = scmp.eq.s32.totalorder %s11, 3
    %p148 = por %p146, %p147
    %p149 = scmp.ne.s32.totalorder %s141, %s144
    %p150 = scmp.eq.s32.totalorder %s11, 0
    %p151 = por %p149, %p150
    %p152 = scmp.ne.s32.totalorder %s141, %s144
    %p153 = scmp.eq.s32.totalorder %s16, 3
    %p154 = por %p152, %p153
    %p155 = scmp.ne.s32.totalorder %s144, %s145
    %p156 = scmp.eq.s32.totalorder %s16, 0
    %p157 = por %p155, %p156
    %p158 = scmp.ne.s32.totalorder %s144, %s145
    %p159 = scmp.eq.s32.totalorder %s17, 3
    %p160 = por %p158, %p159
    %p162 = scmp.ne.s32.totalorder %s145, %s161
    %p163 = scmp.eq.s32.totalorder %s17, 0
    %p164 = por %p162, %p163
    %p165 = scmp.le.s32.totalorder 1, %s11
    %p166 = scmp.lt.s32.totalorder %s11, 5
    %p167 = pnand %p165, %p166
    %p168 = pneg %p167
    // Predicated region
    $region9: #{generator2d_forward.11} parent=5 // pred_check
      _
    $region10: #{generator2d_forward.11} parent=5 // pred_check_branch
      %170 = sbr.rel (%p167) target = $region12
    $region11: #{generator2d_forward.11} parent=5 // pred_region
      %s171 = ssub.s32 %s11, 1
    $region12: #{generator2d_forward.11} parent=5 // pred_fallthru
      _
    %p172 = scmp.lt.s32.totalorder %s11, 4
    // Predicated region
    $region13: #{generator2d_forward.11} parent=5 // pred_check
      %p173 = pneg %p172
    $region14: #{generator2d_forward.11} parent=5 // pred_check_branch
      %175 = sbr.rel (%p173) target = $region16
    $region15: #{generator2d_forward.11} parent=5 // pred_region
      // Predicated region
      $region17: #{generator2d_forward.11} parent=15 // pred_check
        %p176 = pneg %p45
      $region18: #{generator2d_forward.11} parent=15 // pred_check_branch
        %178 = sbr.rel (%p176) target = $region20
      $region19: #{generator2d_forward.11} parent=15 // pred_region
        %s179 = smul.u32 4, %s19
        %p180 = scmp.lt.s32.totalorder %s18, 3
        %s181 = scalar_select %p180, %s18, 3
        %p182 = scmp.lt.s32.totalorder %s179, 3
        %s183 = scalar_select %p182, %s179, 3
        %s184 = smul.addr %s181, 4
        %s185 = sadd.s32 %s183, %s184
        %s186 = smul.addr %s185, 8
        %s187 = scalar_lea.vmem %s0, %s186
        %s188 = smul.u32 4, %s19
      $region20: #{generator2d_forward.11} parent=15 // pred_fallthru
        _
      // Predicated region
      $region21: #{generator2d_forward.11} parent=15 // pred_check
        %p189 = pneg %p71
      $region22: #{generator2d_forward.11} parent=15 // pred_check_branch
        %191 = sbr.rel (%p189) target = $region24
      $region23: #{generator2d_forward.11} parent=15 // pred_region
        %p192 = scmp.lt.s32.totalorder %s18, 3
        %s193 = scalar_select %p192, %s18, 3
        %s194 = smul.addr %s193, 16
        %s195 = smul.addr %s194, 8
        %s196 = scalar_lea.vmem %s1, %s195
      $region24: #{generator2d_forward.11} parent=15 // pred_fallthru
        _
    $region16: #{generator2d_forward.11} parent=5 // pred_fallthru
      _
    %p197 = scmp.le.s32.totalorder 1, %s11
    %p198 = scmp.lt.s32.totalorder %s11, 5
    %p199 = pnand %p197, %p198
    %p200 = pneg %p199
    // Predicated region
    $region25: #{generator2d_forward.11} parent=5 // pred_check
      _
    $region26: #{generator2d_forward.11} parent=5 // pred_check_branch
      %202 = sbr.rel (%p199) target = $region28
    $region27: #{generator2d_forward.11} parent=5 // pred_region
      %s203 = ssub.s32 %s11, 1
      %s204 = smul.u32 4, %s21
      %p205 = scmp.lt.s32.totalorder %s20, 3
      %s206 = scalar_select %p205, %s20, 3
      %p207 = scmp.lt.s32.totalorder %s204, 3
      %s208 = scalar_select %p207, %s204, 3
      %s209 = smul.addr %s206, 4
      %s210 = sadd.s32 %s208, %s209
      %s211 = smul.addr %s210, 8
      %s212 = scalar_lea.vmem %s0, %s211
      %p213 = pneg %p51
      %p214 = pneg %p48
      %p215 = scmp.lt.s32.totalorder %s20, 3
      %s216 = scalar_select %p215, %s20, 3
      %s217 = smul.addr %s216, 16
      %s218 = smul.addr %s217, 8
      %s219 = scalar_lea.vmem %s1, %s218
      %p220 = pneg %p77
      %p221 = pneg %p74
      %p222 = pneg %p105
      %p223 = pneg %p102
      %s224 = smul.u32 4, %s21
      %p225 = scmp.lt.s32.totalorder %s20, 3
      %s226 = scalar_select %p225, %s20, 3
      %p227 = scmp.lt.s32.totalorder %s224, 3
      %s228 = scalar_select %p227, %s224, 3
      %s229 = smul.addr %s226, 4
      %s230 = sadd.s32 %s228, %s229
      %s231 = smul.addr %s230, 8
      %s232 = scalar_lea.vmem %s2, %s231
      %p233 = pneg %p131
      %p234 = pneg %p128
      %p235 = scmp.lt.s32.totalorder %s20, 3
      %s236 = scalar_select %p235, %s20, 3
      %s237 = smul.addr %s236, 8
      %s238 = scalar_lea.vmem %s3, %s237
      %p239 = pneg %p157
      %p240 = pneg %p154
      %p241 = scmp.lt.s32.totalorder %s20, 3
      %s242 = scalar_select %p241, %s20, 3
      %s243 = smul.addr %s242, 8
      %s244 = scalar_lea.vmem %s4, %s243
      %s245 = smul.u32 4, %s21
      %p246 = scmp.lt.s32.totalorder %s20, 3
      %s247 = scalar_select %p246, %s20, 3
      %p248 = scmp.lt.s32.totalorder %s245, 3
      %s249 = scalar_select %p248, %s245, 3
      %s250 = smul.addr %s247, 4
      %s251 = sadd.s32 %s249, %s250
      %s252 = smul.addr %s251, 8
      %s253 = scalar_lea.vmem %s0, %s252
      %s254 = smul.u32 4, %s21
      %p255 = scmp.lt.s32.totalorder %s20, 3
      %s256 = scalar_select %p255, %s20, 3
      %s257 = smul.addr %s256, 16
      %s258 = smul.addr %s257, 8
      %s259 = scalar_lea.vmem %s1, %s258
      %s260 = smul.u32 4, %s21
      %p261 = scmp.lt.s32.totalorder %s20, 3
      %s262 = scalar_select %p261, %s20, 3
      %p263 = scmp.lt.s32.totalorder %s260, 3
      %s264 = scalar_select %p263, %s260, 3
      %s265 = smul.addr %s262, 4
      %s266 = sadd.s32 %s264, %s265
      %s267 = smul.addr %s266, 8
      %s268 = scalar_lea.vmem %s2, %s267
      %s269 = smul.u32 4, %s21
      %p270 = scmp.lt.s32.totalorder %s20, 3
      %s271 = scalar_select %p270, %s20, 3
      %s272 = smul.addr %s271, 8
      %s273 = scalar_lea.vmem %s3, %s272
      %p274 = scmp.lt.s32.totalorder %s20, 3
      %s275 = scalar_select %p274, %s20, 3
      %s276 = smul.addr %s275, 8
      %s277 = scalar_lea.vmem %s4, %s276
      %p278 = scmp.eq.s32.totalorder %s21, 0
      // Predicated region
      $region29: #{generator2d_forward.11} parent=27 // pred_check
        %p279 = pneg %p278
      $region30: #{generator2d_forward.11} parent=27 // pred_check_branch
        %281 = sbr.rel (%p279) target = $region32
      $region31: #{generator2d_forward.11} parent=27 // pred_region
        %282 = vst [vmem:[%s273] sm:$0xff] 0.0
        %283 = vst [vmem:[%s277] sm:$0xff] 0.0
      $region32: #{generator2d_forward.11} parent=27 // pred_fallthru
        _
      %v284 = vld [vmem:[%s253] sm:$0xff]
      %v285 = vld [vmem:[%s253 + $0x8] sm:$0xff]
      %v286 = vld [vmem:[%s253 + $0x10] sm:$0xff]
      %v287 = vld [vmem:[%s253 + $0x18] sm:$0xff]
      %v288 = vld [vmem:[%s259] sm:$0xff]
      %v289 = vld [vmem:[%s259 + $0x8] sm:$0xff]
      %v290 = vld [vmem:[%s259 + $0x10] sm:$0xff]
      %v291 = vld [vmem:[%s259 + $0x18] sm:$0xff]
      %v292 = vld [vmem:[%s259 + $0x20] sm:$0xff]
      %v293 = vld [vmem:[%s259 + $0x28] sm:$0xff]
      %v294 = vld [vmem:[%s259 + $0x30] sm:$0xff]
      %v295 = vld [vmem:[%s259 + $0x38] sm:$0xff]
      %v296 = vld [vmem:[%s259 + $0x40] sm:$0xff]
      %v297 = vld [vmem:[%s259 + $0x48] sm:$0xff]
      %v298 = vld [vmem:[%s259 + $0x50] sm:$0xff]
      %v299 = vld [vmem:[%s259 + $0x58] sm:$0xff]
      %v300 = vld [vmem:[%s259 + $0x60] sm:$0xff]
      %v301 = vld [vmem:[%s259 + $0x68] sm:$0xff]
      %v302 = vld [vmem:[%s259 + $0x70] sm:$0xff]
      %v303 = vld [vmem:[%s259 + $0x78] sm:$0xff]
      %304 = vmatprep.subr.mxu0 0.0
      %305 = vmatpush1.msra.mxu0 %v303
      %306 = vmatprep.subr.mxu0 0.0
      %307 = vmatpush1.msra.mxu0 %v302
      %308 = vmatprep.subr.mxu0 0.0
      %309 = vmatpush1.msra.mxu0 %v301
      %310 = vmatprep.subr.mxu0 0.0
      %311 = vmatpush1.msra.mxu0 %v300
      %312 = vmatprep.subr.mxu0 0.0
      %313 = vmatpush1.msra.mxu0 %v299
      %314 = vmatprep.subr.mxu0 0.0
      %315 = vmatpush1.msra.mxu0 %v298
      %316 = vmatprep.subr.mxu0 0.0
      %317 = vmatpush1.msra.mxu0 %v297
      %318 = vmatprep.subr.mxu0 0.0
      %319 = vmatpush1.msra.mxu0 %v296
      %320 = vmatprep.subr.mxu0 0.0
      %321 = vmatpush1.msra.mxu0 %v295
      %322 = vmatprep.subr.mxu0 0.0
      %323 = vmatpush1.msra.mxu0 %v294
      %324 = vmatprep.subr.mxu0 0.0
      %325 = vmatpush1.msra.mxu0 %v293
      %326 = vmatprep.subr.mxu0 0.0
      %327 = vmatpush1.msra.mxu0 %v292
      %328 = vmatprep.subr.mxu0 0.0
      %329 = vmatpush1.msra.mxu0 %v291
      %330 = vmatprep.subr.mxu0 0.0
      %331 = vmatpush1.msra.mxu0 %v290
      %332 = vmatprep.subr.mxu0 0.0
      %333 = vmatpush1.msra.mxu0 %v289
      %334 = vmatprep.subr.mxu0 0.0
      %335 = vmatpush1.msra.mxu0 %v288
      %336 = vmatprep.subr.mxu0 0.0
      %337 = vmatpush2.msra.mxu0 0.0
      %338 = vmatprep.subr.mxu0 0.0
      %339 = vmatpush2.msra.mxu0 0.0
      %340 = vmatprep.subr.mxu0 0.0
      %341 = vmatpush2.msra.mxu0 0.0
      %342 = vmatprep.subr.mxu0 0.0
      %343 = vmatpush2.msra.mxu0 0.0
      %344 = vmatprep.subr.mxu0 0.0
      %345 = vmatpush2.msra.mxu0 0.0
      %346 = vmatprep.subr.mxu0 0.0
      %347 = vmatpush2.msra.mxu0 0.0
      %348 = vmatprep.subr.mxu0 0.0
      %349 = vmatpush2.msra.mxu0 0.0
      %350 = vmatprep.subr.mxu0 0.0
      %351 = vmatpush2.msra.mxu0 0.0
      %352 = vmatprep.subr.mxu0 0.0
      %353 = vmatpush2.msra.mxu0 0.0
      %354 = vmatprep.subr.mxu0 0.0
      %355 = vmatpush2.msra.mxu0 0.0
      %356 = vmatprep.subr.mxu0 0.0
      %357 = vmatpush2.msra.mxu0 0.0
      %358 = vmatprep.subr.mxu0 0.0
      %359 = vmatpush2.msra.mxu0 0.0
      %360 = vmatprep.subr.mxu0 0.0
      %361 = vmatpush2.msra.mxu0 0.0
      %362 = vmatprep.subr.mxu0 0.0
      %363 = vmatpush2.msra.mxu0 0.0
      %364 = vmatprep.subr.mxu0 0.0
      %365 = vmatpush2.msra.mxu0 0.0
      %366 = vmatprep.subr.mxu0 0.0
      %367 = vmatpush2.msra.mxu0 0.0
      %368 = vmatprep.mubr.f32.mxu0 0.0
      %369 = vmatmul.mubr.f32.gmra.mxu0 %v284
      %v370 = vpop.f32.mrf.mxu0
      %v371 = vadd.f32 0.0, %v370
      %v372 = vpop.f32.mrf.mxu0
      %373 = vmatprep.mubr.f32.mxu0 0.0
      %374 = vmatmul.mubr.f32.gmra.mxu0 %v285
      %v375 = vpop.f32.mrf.mxu0
      %v376 = vadd.f32 0.0, %v375
      %v377 = vpop.f32.mrf.mxu0
      %378 = vmatprep.mubr.f32.mxu0 0.0
      %379 = vmatmul.mubr.f32.gmra.mxu0 %v286
      %v380 = vpop.f32.mrf.mxu0
      %v381 = vadd.f32 0.0, %v380
      %v382 = vpop.f32.mrf.mxu0
      %383 = vmatprep.mubr.f32.mxu0 0.0
      %384 = vmatmul.mubr.f32.gmra.mxu0 %v287
      %v385 = vpop.f32.mrf.mxu0
      %v386 = vadd.f32 0.0, %v385
      %v387 = vpop.f32.mrf.mxu0
      %388 = vdwg.mxu0
      %389 = vst [vmem:[%s268] sm:$0xff] %v371
      %390 = vst [vmem:[%s268 + $0x8] sm:$0xff] %v376
      %391 = vst [vmem:[%s268 + $0x10] sm:$0xff] %v381
      %392 = vst [vmem:[%s268 + $0x18] sm:$0xff] %v386
      %v393 = vld [vmem:[%s273] sm:$0xff]
      %v394 = vadd.f32 %v371, %v376
      %v395 = vadd.f32 %v394, %v381
      %v396 = vadd.f32 %v395, %v386
      %v397 = vrot.slane %v396, 4
      %v398 = vadd.f32 %v396, %v397
      %v399 = vrot.slane %v398, 2
      %v400 = vadd.f32 %v398, %v399
      %v401 = vrot.slane %v400, 1
      %v402 = vadd.f32 %v400, %v401
      %v403 = vadd.f32 %v393, %v402
      %404 = vst [vmem:[%s273] sm:$0xff] %v403
      %v405 = vld [vmem:[%s277] sm:$0xff]
      %v406 = vmul.f32 %v371, %v371
      %v407 = vmul.f32 %v376, %v376
      %v408 = vmul.f32 %v381, %v381
      %v409 = vmul.f32 %v386, %v386
      %v410 = vadd.f32 %v406, %v407
      %v411 = vadd.f32 %v410, %v408
      %v412 = vadd.f32 %v411, %v409
      %v413 = vrot.slane %v412, 4
      %v414 = vadd.f32 %v412, %v413
      %v415 = vrot.slane %v414, 2
      %v416 = vadd.f32 %v414, %v415
      %v417 = vrot.slane %v416, 1
      %v418 = vadd.f32 %v416, %v417
      %v419 = vadd.f32 %v405, %v418
      %420 = vst [vmem:[%s277] sm:$0xff] %v419
      %s421 = smul.u32 4, %s21
      %p422 = scmp.lt.s32.totalorder %s20, 3
      %s423 = scalar_select %p422, %s20, 3
      %p424 = scmp.lt.s32.totalorder %s421, 3
      %s425 = scalar_select %p424, %s421, 3
      %s426 = smul.addr %s423, 4
      %s427 = sadd.s32 %s425, %s426
      %s428 = smul.addr %s427, 8
      %s429 = scalar_lea.vmem %s2, %s428
      %p430 = scmp.lt.s32.totalorder %s20, 3
      %s431 = scalar_select %p430, %s20, 3
      %s432 = smul.addr %s431, 8
      %s433 = scalar_lea.vmem %s3, %s432
      %p434 = scmp.lt.s32.totalorder %s20, 3
      %s435 = scalar_select %p434, %s20, 3
      %s436 = smul.addr %s435, 8
      %s437 = scalar_lea.vmem %s4, %s436
      // Predicated region
      $region33: #{generator2d_forward.11} parent=27 // pred_check
        %p438 = pneg %p102
      $region34: #{generator2d_forward.11} parent=27 // pred_check_branch
        %440 = sbr.rel (%p438) target = $region36
      $region35: #{generator2d_forward.11} parent=27 // pred_region
        %s441 = smul.u32 4, %s21
      $region36: #{generator2d_forward.11} parent=27 // pred_fallthru
        _
      // Predicated region
      $region37: #{generator2d_forward.11} parent=27 // pred_check
        %p442 = pneg %p128
      $region38: #{generator2d_forward.11} parent=27 // pred_check_branch
        %444 = sbr.rel (%p442) target = $region40
      $region39: #{generator2d_forward.11} parent=27 // pred_region
        _
      $region40: #{generator2d_forward.11} parent=27 // pred_fallthru
        _
      // Predicated region
      $region41: #{generator2d_forward.11} parent=27 // pred_check
        %p445 = pneg %p154
      $region42: #{generator2d_forward.11} parent=27 // pred_check_branch
        %447 = sbr.rel (%p445) target = $region44
      $region43: #{generator2d_forward.11} parent=27 // pred_region
        _
      $region44: #{generator2d_forward.11} parent=27 // pred_fallthru
        _
    $region28: #{generator2d_forward.11} parent=5 // pred_fallthru
      _
    %p448 = scmp.le.s32.totalorder 2, %s11
    // Predicated region
    $region45: #{generator2d_forward.11} parent=5 // pred_check
      %p449 = pneg %p448
    $region46: #{generator2d_forward.11} parent=5 // pred_check_branch
      %451 = sbr.rel (%p449) target = $region48
    $region47: #{generator2d_forward.11} parent=5 // pred_region
      %s452 = ssub.s32 %s11, 2
      // Predicated region
      $region49: #{generator2d_forward.11} parent=47 // pred_check
        %p453 = pneg %p108
      $region50: #{generator2d_forward.11} parent=47 // pred_check_branch
        %455 = sbr.rel (%p453) target = $region52
      $region51: #{generator2d_forward.11} parent=47 // pred_region
        %s456 = smul.u32 4, %s23
        %p457 = scmp.lt.s32.totalorder %s22, 3
        %s458 = scalar_select %p457, %s22, 3
        %p459 = scmp.lt.s32.totalorder %s456, 3
        %s460 = scalar_select %p459, %s456, 3
        %s461 = smul.addr %s458, 4
        %s462 = sadd.s32 %s460, %s461
        %s463 = smul.addr %s462, 8
        %s464 = scalar_lea.vmem %s2, %s463
      $region52: #{generator2d_forward.11} parent=47 // pred_fallthru
        _
      // Predicated region
      $region53: #{generator2d_forward.11} parent=47 // pred_check
        %p465 = pneg %p134
      $region54: #{generator2d_forward.11} parent=47 // pred_check_branch
        %467 = sbr.rel (%p465) target = $region56
      $region55: #{generator2d_forward.11} parent=47 // pred_region
        %p468 = scmp.lt.s32.totalorder %s22, 3
        %s469 = scalar_select %p468, %s22, 3
        %s470 = smul.addr %s469, 8
        %s471 = scalar_lea.vmem %s3, %s470
      $region56: #{generator2d_forward.11} parent=47 // pred_fallthru
        _
      // Predicated region
      $region57: #{generator2d_forward.11} parent=47 // pred_check
        %p472 = pneg %p160
      $region58: #{generator2d_forward.11} parent=47 // pred_check_branch
        %474 = sbr.rel (%p472) target = $region60
      $region59: #{generator2d_forward.11} parent=47 // pred_region
        %p475 = scmp.lt.s32.totalorder %s22, 3
        %s476 = scalar_select %p475, %s22, 3
        %s477 = smul.addr %s476, 8
        %s478 = scalar_lea.vmem %s4, %s477
      $region60: #{generator2d_forward.11} parent=47 // pred_fallthru
        _
    $region48: #{generator2d_forward.11} parent=5 // pred_fallthru
      _
  $region6: #{generator2d_forward.11} parent=0 // loop_footer
    %s15 = sadd.s32 1, %s11
  $region7: #{generator2d_forward.11} parent=0 // loop_footer_branch
    %10 = sbr.rel target = $region3
  $region8: #{generator2d_forward.11} parent=0 // loop_exit
    _

// kernel: generator2d_forward.12
$region0: #{generator2d_forward.12}
  #allocation0 [shape = 'u32[]', space=smem, size = 0x4, offset = 0x4, fixed_abs, tag = 'smem constant byte address 0x4 - core index']
  #allocation1 [shape = 'u32[144,128]{1,0:T(1,128)}', space=vmem, size = 0x12000, scoped, tag = 'internal scratch']
  %s0 = inlined_call_operand.vmem [shape: f32[4,32,128], index: 0, kind: input, shape index: {}]
  %s1 = inlined_call_operand.vmem [shape: f32[1,128], index: 1, kind: input, shape index: {}]
  %s2 = inlined_call_operand.vmem [shape: f32[1,128], index: 2, kind: input, shape index: {}]
  %s3 = inlined_call_operand.vmem [shape: f32[4,32,128], index: 3, kind: output, shape index: {}]
  %s4 = sld [smem:[#allocation0]]
  $region45: #{generator2d_forward.12} parent=0
    _
  %s6 = ssub.s32 1, %s4
  %s7 = scalar_select 0, %s6, %s4
  loop: start=0, step=1, limit=6
  $region2: #{generator2d_forward.12} parent=0 // loop_pre_header
    _
  $region3: #{generator2d_forward.12} parent=0 // loop_header
    %s9 = sphi 0, %s13
    %p10 = scmp.ge.s32.totalorder %s9, 6
    %s16 = sphi 0, %s28
    %s17 = sphi 0, %s24
    %s18 = sphi 0, %s16
    %s19 = sphi 0, %s17
    %s20 = sphi 0, %s18
    %s21 = sphi 0, %s19
    %s33 = sphi 0, %s35
    %s36 = sphi 0, %s33
    %s37 = sphi 0, %s36
    %s53 = sphi 0, %s37
    %s57 = sphi 0, %s57
    %s59 = sphi 0, %s57
    %s60 = sphi 0, %s59
    %s74 = sphi 0, %s60
    %s78 = sphi 0, %s78
    %s80 = sphi 0, %s78
    %s81 = sphi 0, %s80
    %s95 = sphi 0, %s81
    %s103 = sphi 0, %s105
    %s106 = sphi 0, %s103
    %s107 = sphi 0, %s106
    %s123 = sphi 0, %s107
  $region4: #{generator2d_forward.12} parent=0 // loop_header_branch
    %12 = sbr.rel (%p10) target = $region8
  $region5: #{generator2d_forward.12} parent=0 // loop_body
    %s14 = ssub.s32 %s9, 1
    %s15 = ssub.s32 %s9, 2
    %s22 = sadd.s32 1, %s17
    %p23 = scmp.ge.s32.totalorder %s22, 1
    %s24 = scalar_select %p23, 0, %s22
    %s25 = sadd.s32 1, %s16
    %s26 = scalar_select %p23, %s25, %s16
    %p27 = scmp.ge.s32.totalorder %s26, 4
    %s28 = scalar_select %p27, 0, %s26
    %s29 = ssub.s32 %s16, %s28
    %s30 = ssub.s32 %s17, %s24
    %s31 = sor.u32 %s29, %s30
    %p32 = scmp.eq.s32.totalorder %s31, 0
    %s34 = sadd.s32 %s33, 1
    %s35 = scalar_select %p32, %s33, %s34
    %p38 = pneg %p32
    %p39 = scmp.eq.s32.totalorder %s9, 3
    %p40 = por %p38, %p39
    %p41 = scmp.ne.s32.totalorder %s33, %s36
    %p42 = scmp.eq.s32.totalorder %s9, 0
    %p43 = por %p41, %p42
    %p44 = scmp.ne.s32.totalorder %s33, %s36
    %p45 = scmp.eq.s32.totalorder %s14, 3
    %p46 = por %p44, %p45
    %p47 = scmp.ne.s32.totalorder %s36, %s37
    %p48 = scmp.eq.s32.totalorder %s14, 0
    %p49 = por %p47, %p48
    %p50 = scmp.ne.s32.totalorder %s36, %s37
    %p51 = scmp.eq.s32.totalorder %s15, 3
    %p52 = por %p50, %p51
    %p54 = scmp.ne.s32.totalorder %s37, %s53
    %p55 = scmp.eq.s32.totalorder %s15, 0
    %p56 = por %p54, %p55
    %s58 = sadd.s32 %s57, 1
    %p61 = scmp.eq.s32.totalorder %s9, 3
    %p62 = scmp.ne.s32.totalorder %s57, %s59
    %p63 = scmp.eq.s32.totalorder %s9, 0
    %p64 = por %p62, %p63
    %p65 = scmp.ne.s32.totalorder %s57, %s59
    %p66 = scmp.eq.s32.totalorder %s14, 3
    %p67 = por %p65, %p66
    %p68 = scmp.ne.s32.totalorder %s59, %s60
    %p69 = scmp.eq.s32.totalorder %s14, 0
    %p70 = por %p68, %p69
    %p71 = scmp.ne.s32.totalorder %s59, %s60
    %p72 = scmp.eq.s32.totalorder %s15, 3
    %p73 = por %p71, %p72
    %p75 = scmp.ne.s32.totalorder %s60, %s74
    %p76 = scmp.eq.s32.totalorder %s15, 0
    %p77 = por %p75, %p76
    %s79 = sadd.s32 %s78, 1
    %p82 = scmp.eq.s32.totalorder %s9, 3
    %p83 = scmp.ne.s32.totalorder %s78, %s80
    %p84 = scmp.eq.s32.totalorder %s9, 0
    %p85 = por %p83, %p84
    %p86 = scmp.ne.s32.totalorder %s78, %s80
    %p87 = scmp.eq.s32.totalorder %s14, 3
    %p88 = por %p86, %p87
    %p89 = scmp.ne.s32.totalorder %s80, %s81
    %p90 = scmp.eq.s32.totalorder %s14, 0
    %p91 = por %p89, %p90
    %p92 = scmp.ne.s32.totalorder %s80, %s81
    %p93 = scmp.eq.s32.totalorder %s15, 3
    %p94 = por %p92, %p93
    %p96 = scmp.ne.s32.totalorder %s81, %s95
    %p97 = scmp.eq.s32.totalorder %s15, 0
    %p98 = por %p96, %p97
    %s99 = ssub.s32 %s16, %s28
    %s100 = ssub.s32 %s17, %s24
    %s101 = sor.u32 %s99, %s100
    %p102 = scmp.eq.s32.totalorder %s101, 0
    %s104 = sadd.s32 %s103, 1
    %s105 = scalar_select %p102, %s103, %s104
    %p108 = pneg %p102
    %p109 = scmp.eq.s32.totalorder %s9, 3
    %p110 = por %p108, %p109
    %p111 = scmp.ne.s32.totalorder %s103, %s106
    %p112 = scmp.eq.s32.totalorder %s9, 0
    %p113 = por %p111, %p112
    %p114 = scmp.ne.s32.totalorder %s103, %s106
    %p115 = scmp.eq.s32.totalorder %s14, 3
    %p116 = por %p114, %p115
    %p117 = scmp.ne.s32.totalorder %s106, %s107
    %p118 = scmp.eq.s32.totalorder %s14, 0
    %p119 = por %p117, %p118
    %p120 = scmp.ne.s32.totalorder %s106, %s107
    %p121 = scmp.eq.s32.totalorder %s15, 3
    %p122 = por %p120, %p121
    %p124 = scmp.ne.s32.totalorder %s107, %s123
    %p125 = scmp.eq.s32.totalorder %s15, 0
    %p126 = por %p124, %p125
    %p127 = scmp.le.s32.totalorder 1, %s9
    %p128 = scmp.lt.s32.totalorder %s9, 5
    %p129 = pnand %p127, %p128
    %p130 = pneg %p129
    // Predicated region
    $region9: #{generator2d_forward.12} parent=5 // pred_check
      _
    $region10: #{generator2d_forward.12} parent=5 // pred_check_branch
      %132 = sbr.rel (%p129) target = $region12
    $region11: #{generator2d_forward.12} parent=5 // pred_region
      %s133 = ssub.s32 %s9, 1
      // Predicated region
      $region13: #{generator2d_forward.12} parent=11 // pred_check
        %p134 = pneg %p70
      $region14: #{generator2d_forward.12} parent=11 // pred_check_branch
        %136 = sbr.rel (%p134) target = $region16
      $region15: #{generator2d_forward.12} parent=11 // pred_region
        _
      $region16: #{generator2d_forward.12} parent=11 // pred_fallthru
        _
      // Predicated region
      $region17: #{generator2d_forward.12} parent=11 // pred_check
        %p137 = pneg %p91
      $region18: #{generator2d_forward.12} parent=11 // pred_check_branch
        %139 = sbr.rel (%p137) target = $region20
      $region19: #{generator2d_forward.12} parent=11 // pred_region
        _
      $region20: #{generator2d_forward.12} parent=11 // pred_fallthru
        _
    $region12: #{generator2d_forward.12} parent=5 // pred_fallthru
      _
    %p140 = scmp.lt.s32.totalorder %s9, 4
    // Predicated region
    $region21: #{generator2d_forward.12} parent=5 // pred_check
      %p141 = pneg %p140
    $region22: #{generator2d_forward.12} parent=5 // pred_check_branch
      %143 = sbr.rel (%p141) target = $region24
    $region23: #{generator2d_forward.12} parent=5 // pred_region
      // Predicated region
      $region25: #{generator2d_forward.12} parent=23 // pred_check
        %p144 = pneg %p43
      $region26: #{generator2d_forward.12} parent=23 // pred_check_branch
        %146 = sbr.rel (%p144) target = $region28
      $region27: #{generator2d_forward.12} parent=23 // pred_region
        %s147 = smul.u32 4, %s17
        %p148 = scmp.lt.s32.totalorder %s16, 3
        %s149 = scalar_select %p148, %s16, 3
        %p150 = scmp.lt.s32.totalorder %s147, 3
        %s151 = scalar_select %p150, %s147, 3
        %s152 = smul.addr %s149, 4
        %s153 = sadd.s32 %s151, %s152
        %s154 = smul.addr %s153, 8
        %s155 = scalar_lea.vmem %s0, %s154
        %s156 = smul.u32 4, %s17
      $region28: #{generator2d_forward.12} parent=23 // pred_fallthru
        _
    $region24: #{generator2d_forward.12} parent=5 // pred_fallthru
      _
    %p157 = scmp.le.s32.totalorder 1, %s9
    %p158 = scmp.lt.s32.totalorder %s9, 5
    %p159 = pnand %p157, %p158
    %p160 = pneg %p159
    // Predicated region
    $region29: #{generator2d_forward.12} parent=5 // pred_check
      _
    $region30: #{generator2d_forward.12} parent=5 // pred_check_branch
      %162 = sbr.rel (%p159) target = $region32
    $region31: #{generator2d_forward.12} parent=5 // pred_region
      %s163 = ssub.s32 %s9, 1
      %s164 = smul.u32 4, %s19
      %p165 = scmp.lt.s32.totalorder %s18, 3
      %s166 = scalar_select %p165, %s18, 3
      %p167 = scmp.lt.s32.totalorder %s164, 3
      %s168 = scalar_select %p167, %s164, 3
      %s169 = smul.addr %s166, 4
      %s170 = sadd.s32 %s168, %s169
      %s171 = smul.addr %s170, 8
      %s172 = scalar_lea.vmem %s0, %s171
      %p173 = pneg %p49
      %p174 = pneg %p46
      %p175 = pneg %p70
      %p176 = pneg %p67
      %p177 = pneg %p91
      %p178 = pneg %p88
      %p179 = pneg %p119
      %p180 = pneg %p116
      %s181 = smul.u32 4, %s19
      %p182 = scmp.lt.s32.totalorder %s18, 3
      %s183 = scalar_select %p182, %s18, 3
      %p184 = scmp.lt.s32.totalorder %s181, 3
      %s185 = scalar_select %p184, %s181, 3
      %s186 = smul.addr %s183, 4
      %s187 = sadd.s32 %s185, %s186
      %s188 = smul.addr %s187, 8
      %s189 = scalar_lea.vmem %s3, %s188
      %s190 = smul.u32 4, %s19
      %p191 = scmp.lt.s32.totalorder %s18, 3
      %s192 = scalar_select %p191, %s18, 3
      %p193 = scmp.lt.s32.totalorder %s190, 3
      %s194 = scalar_select %p193, %s190, 3
      %s195 = smul.addr %s192, 4
      %s196 = sadd.s32 %s194, %s195
      %s197 = smul.addr %s196, 8
      %s198 = scalar_lea.vmem %s0, %s197
      %s199 = smul.u32 4, %s19
      %s200 = smul.u32 4, %s19
      %p201 = scmp.lt.s32.totalorder %s18, 3
      %s202 = scalar_select %p201, %s18, 3
      %p203 = scmp.lt.s32.totalorder %s200, 3
      %s204 = scalar_select %p203, %s200, 3
      %s205 = smul.addr %s202, 4
      %s206 = sadd.s32 %s204, %s205
      %s207 = smul.addr %s206, 8
      %s208 = scalar_lea.vmem %s3, %s207
      %s209 = smul.u32 4, %s19
      %v210 = vld [vmem:[%s198] sm:$0xff]
      %v211 = vld [vmem:[%s198 + $0x8] sm:$0xff]
      %v212 = vld [vmem:[%s198 + $0x10] sm:$0xff]
      %v213 = vld [vmem:[%s198 + $0x18] sm:$0xff]
      %v214 = vld [vmem:[%s1] sm:$0x1]
      %v216 = vlaneseq
      %v217 = vshrl.u32 %v216, 7
      %v218 = vsub.s32 0, %v217
      %v219 = vrot.slane %v214, %v218
      %v221 = vmul.f32 %v210, %v219
      %v222 = vmul.f32 %v211, %v219
      %v223 = vmul.f32 %v212, %v219
      %v224 = vmul.f32 %v213, %v219
      %v225 = vld [vmem:[%s2] sm:$0x1]
      %v227 = vlaneseq
      %v228 = vshrl.u32 %v227, 7
      %v229 = vsub.s32 0, %v228
      %v230 = vrot.slane %v225, %v229
      %v232 = vadd.f32 %v221, %v230
      %v233 = vadd.f32 %v222, %v230
      %v234 = vadd.f32 %v223, %v230
      %v235 = vadd.f32 %v224, %v230
      %v236 = vmax.f32 %v232, 0.0
      %v237 = vmax.f32 %v233, 0.0
      %v238 = vmax.f32 %v234, 0.0
      %v239 = vmax.f32 %v235, 0.0
      %240 = vst [vmem:[%s208] sm:$0xff] %v236
      %241 = vst [vmem:[%s208 + $0x8] sm:$0xff] %v237
      %242 = vst [vmem:[%s208 + $0x10] sm:$0xff] %v238
      %243 = vst [vmem:[%s208 + $0x18] sm:$0xff] %v239
      %s244 = smul.u32 4, %s19
      %p245 = scmp.lt.s32.totalorder %s18, 3
      %s246 = scalar_select %p245, %s18, 3
      %p247 = scmp.lt.s32.totalorder %s244, 3
      %s248 = scalar_select %p247, %s244, 3
      %s249 = smul.addr %s246, 4
      %s250 = sadd.s32 %s248, %s249
      %s251 = smul.addr %s250, 8
      %s252 = scalar_lea.vmem %s3, %s251
      // Predicated region
      $region33: #{generator2d_forward.12} parent=31 // pred_check
        %p253 = pneg %p116
      $region34: #{generator2d_forward.12} parent=31 // pred_check_branch
        %255 = sbr.rel (%p253) target = $region36
      $region35: #{generator2d_forward.12} parent=31 // pred_region
        %s256 = smul.u32 4, %s19
      $region36: #{generator2d_forward.12} parent=31 // pred_fallthru
        _
    $region32: #{generator2d_forward.12} parent=5 // pred_fallthru
      _
    %p257 = scmp.le.s32.totalorder 2, %s9
    // Predicated region
    $region37: #{generator2d_forward.12} parent=5 // pred_check
      %p258 = pneg %p257
    $region38: #{generator2d_forward.12} parent=5 // pred_check_branch
      %260 = sbr.rel (%p258) target = $region40
    $region39: #{generator2d_forward.12} parent=5 // pred_region
      %s261 = ssub.s32 %s9, 2
      // Predicated region
      $region41: #{generator2d_forward.12} parent=39 // pred_check
        %p262 = pneg %p122
      $region42: #{generator2d_forward.12} parent=39 // pred_check_branch
        %264 = sbr.rel (%p262) target = $region44
      $region43: #{generator2d_forward.12} parent=39 // pred_region
        %s265 = smul.u32 4, %s21
        %p266 = scmp.lt.s32.totalorder %s20, 3
        %s267 = scalar_select %p266, %s20, 3
        %p268 = scmp.lt.s32.totalorder %s265, 3
        %s269 = scalar_select %p268, %s265, 3
        %s270 = smul.addr %s267, 4
        %s271 = sadd.s32 %s269, %s270
        %s272 = smul.addr %s271, 8
        %s273 = scalar_lea.vmem %s3, %s272
      $region44: #{generator2d_forward.12} parent=39 // pred_fallthru
        _
    $region40: #{generator2d_forward.12} parent=5 // pred_fallthru
      _
  $region6: #{generator2d_forward.12} parent=0 // loop_footer
    %s13 = sadd.s32 1, %s9
  $region7: #{generator2d_forward.12} parent=0 // loop_footer_branch
    %8 = sbr.rel target = $region3
  $region8: #{generator2d_forward.12} parent=0 // loop_exit
    _

// kernel: generator2d_forward.13
$region0: #{generator2d_forward.13}
  #allocation0 [shape = 'u32[]', space=smem, size = 0x4, offset = 0x4, fixed_abs, tag = 'smem constant byte address 0x4 - core index']
  #allocation1 [shape = 'u32[144,128]{1,0:T(1,128)}', space=vmem, size = 0x12000, scoped, tag = 'internal scratch']
  %s0 = inlined_call_operand.vmem [shape: f32[4,128,64], index: 0, kind: input, shape index: {}]
  %s1 = inlined_call_operand.vmem [shape: f32[4,64,128], index: 1, kind: input, shape index: {}]
  %s2 = inlined_call_operand.vmem [shape: f32[4,128,128], index: 2, kind: output, shape index: {0}]
  %s3 = inlined_call_operand.vmem [shape: f32[4,8,128], index: 3, kind: output, shape index: {1}]
  %s4 = inlined_call_operand.vmem [shape: f32[4,8,128], index: 4, kind: output, shape index: {2}]
  %5 = xla_tuple %s2, %s3, %s4
  %s6 = sld [smem:[#allocation0]]
  $region61: #{generator2d_forward.13} parent=0
    _
  %s8 = ssub.s32 1, %s6
  %s9 = scalar_select 0, %s8, %s6
  loop: start=0, step=1, limit=6
  $region2: #{generator2d_forward.13} parent=0 // loop_pre_header
    _
  $region3: #{generator2d_forward.13} parent=0 // loop_header
    %s11 = sphi 0, %s15
    %p12 = scmp.ge.s32.totalorder %s11, 6
    %s18 = sphi 0, %s30
    %s19 = sphi 0, %s26
    %s20 = sphi 0, %s18
    %s21 = sphi 0, %s19
    %s22 = sphi 0, %s20
    %s23 = sphi 0, %s21
    %s35 = sphi 0, %s37
    %s38 = sphi 0, %s35
    %s39 = sphi 0, %s38
    %s55 = sphi 0, %s39
    %s61 = sphi 0, %s63
    %s64 = sphi 0, %s61
    %s65 = sphi 0, %s64
    %s81 = sphi 0, %s65
    %s89 = sphi 0, %s91
    %s92 = sphi 0, %s89
    %s93 = sphi 0, %s92
    %s109 = sphi 0, %s93
    %s115 = sphi 0, %s117
    %s118 = sphi 0, %s115
    %s119 = sphi 0, %s118
    %s135 = sphi 0, %s119
    %s141 = sphi 0, %s143
    %s144 = sphi 0, %s141
    %s145 = sphi 0, %s144
    %s161 = sphi 0, %s145
  $region4: #{generator2d_forward.13} parent=0 // loop_header_branch
    %14 = sbr.rel (%p12) target = $region8
  $region5: #{generator2d_forward.13} parent=0 // loop_body
    %s16 = ssub.s32 %s11, 1
    %s17 = ssub.s32 %s11, 2
    %s24 = sadd.s32 1, %s19
    %p25 = scmp.ge.s32.totalorder %s24, 1
    %s26 = scalar_select %p25, 0, %s24
    %s27 = sadd.s32 1, %s18
    %s28 = scalar_select %p25, %s27, %s18
    %p29 = scmp.ge.s32.totalorder %s28, 4
    %s30 = scalar_select %p29, 0, %s28
    %s31 = ssub.s32 %s18, %s30
    %s32 = ssub.s32 %s19, %s26
    %s33 = sor.u32 %s31, %s32
    %p34 = scmp.eq.s32.totalorder %s33, 0
    %s36 = sadd.s32 %s35, 1
    %s37 = scalar_select %p34, %s35, %s36
    %p40 = pneg %p34
    %p41 = scmp.eq.s32.totalorder %s11, 3
    %p42 = por %p40, %p41
    %p43 = scmp.ne.s32.totalorder %s35, %s38
    %p44 = scmp.eq.s32.totalorder %s11, 0
    %p45 = por %p43, %p44
    %p46 = scmp.ne.s32.totalorder %s35, %s38
    %p47 = scmp.eq.s32.totalorder %s16, 3
    %p48 = por %p46, %p47
    %p49 = scmp.ne.s32.totalorder %s38, %s39
    %p50 = scmp.eq.s32.totalorder %s16, 0
    %p51 = por %p49, %p50
    %p52 = scmp.ne.s32.totalorder %s38, %s39
    %p53 = scmp.eq.s32.totalorder %s17, 3
    %p54 = por %p52, %p53
    %p56 = scmp.ne.s32.totalorder %s39, %s55
    %p57 = scmp.eq.s32.totalorder %s17, 0
    %p58 = por %p56, %p57
    %s59 = ssub.s32 %s18, %s30
    %p60 = scmp.eq.s32.totalorder %s59, 0
    %s62 = sadd.s32 %s61, 1
    %s63 = scalar_select %p60, %s61, %s62
    %p66 = pneg %p60
    %p67 = scmp.eq.s32.totalorder %s11, 3
    %p68 = por %p66, %p67
    %p69 = scmp.ne.s32.totalorder %s61, %s64
    %p70 = scmp.eq.s32.totalorder %s11, 0
    %p71 = por %p69, %p70
    %p72 = scmp.ne.s32.totalorder %s61, %s64
    %p73 = scmp.eq.s32.totalorder %s16, 3
    %p74 = por %p72, %p73
    %p75 = scmp.ne.s32.totalorder %s64, %s65
    %p76 = scmp.eq.s32.totalorder %s16, 0
    %p77 = por %p75, %p76
    %p78 = scmp.ne.s32.totalorder %s64, %s65
    %p79 = scmp.eq.s32.totalorder %s17, 3
    %p80 = por %p78, %p79
    %p82 = scmp.ne.s32.totalorder %s65, %s81
    %p83 = scmp.eq.s32.totalorder %s17, 0
    %p84 = por %p82, %p83
    %s85 = ssub.s32 %s18, %s30
    %s86 = ssub.s32 %s19, %s26
    %s87 = sor.u32 %s85, %s86
    %p88 = scmp.eq.s32.totalorder %s87, 0
    %s90 = sadd.s32 %s89, 1
    %s91 = scalar_select %p88, %s89, %s90
    %p94 = pneg %p88
    %p95 = scmp.eq.s32.totalorder %s11, 3
    %p96 = por %p94, %p95
    %p97 = scmp.ne.s32.totalorder %s89, %s92
    %p98 = scmp.eq.s32.totalorder %s11, 0
    %p99 = por %p97, %p98
    %p100 = scmp.ne.s32.totalorder %s89, %s92
    %p101 = scmp.eq.s32.totalorder %s16, 3
    %p102 = por %p100, %p101
    %p103 = scmp.ne.s32.totalorder %s92, %s93
    %p104 = scmp.eq.s32.totalorder %s16, 0
    %p105 = por %p103, %p104
    %p106 = scmp.ne.s32.totalorder %s92, %s93
    %p107 = scmp.eq.s32.totalorder %s17, 3
    %p108 = por %p106, %p107
    %p110 = scmp.ne.s32.totalorder %s93, %s109
    %p111 = scmp.eq.s32.totalorder %s17, 0
    %p112 = por %p110, %p111
    %s113 = ssub.s32 %s18, %s30
    %p114 = scmp.eq.s32.totalorder %s113, 0
    %s116 = sadd.s32 %s115, 1
    %s117 = scalar_select %p114, %s115, %s116
    %p120 = pneg %p114
    %p121 = scmp.eq.s32.totalorder %s11, 3
    %p122 = por %p120, %p121
    %p123 = scmp.ne.s32.totalorder %s115, %s118
    %p124 = scmp.eq.s32.totalorder %s11, 0
    %p125 = por %p123, %p124
    %p126 = scmp.ne.s32.totalorder %s115, %s118
    %p127 = scmp.eq.s32.totalorder %s16, 3
    %p128 = por %p126, %p127
    %p129 = scmp.ne.s32.totalorder %s118, %s119
    %p130 = scmp.eq.s32.totalorder %s16, 0
    %p131 = por %p129, %p130
    %p132 = scmp.ne.s32.totalorder %s118, %s119
    %p133 = scmp.eq.s32.totalorder %s17, 3
    %p134 = por %p132, %p133
    %p136 = scmp.ne.s32.totalorder %s119, %s135
    %p137 = scmp.eq.s32.totalorder %s17, 0
    %p138 = por %p136, %p137
    %s139 = ssub.s32 %s18, %s30
    %p140 = scmp.eq.s32.totalorder %s139, 0
    %s142 = sadd.s32 %s141, 1
    %s143 = scalar_select %p140, %s141, %s142
    %p146 = pneg %p140
    %p147 = scmp.eq.s32.totalorder %s11, 3
    %p148 = por %p146, %p147
    %p149 = scmp.ne.s32.totalorder %s141, %s144
    %p150 = scmp.eq.s32.totalorder %s11, 0
    %p151 = por %p149, %p150
    %p152 = scmp.ne.s32.totalorder %s141, %s144
    %p153 = scmp.eq.s32.totalorder %s16, 3
    %p154 = por %p152, %p153
    %p155 = scmp.ne.s32.totalorder %s144, %s145
    %p156 = scmp.eq.s32.totalorder %s16, 0
    %p157 = por %p155, %p156
    %p158 = scmp.ne.s32.totalorder %s144, %s145
    %p159 = scmp.eq.s32.totalorder %s17, 3
    %p160 = por %p158, %p159
    %p162 = scmp.ne.s32.totalorder %s145, %s161
    %p163 = scmp.eq.s32.totalorder %s17, 0
    %p164 = por %p162, %p163
    %p165 = scmp.le.s32.totalorder 1, %s11
    %p166 = scmp.lt.s32.totalorder %s11, 5
    %p167 = pnand %p165, %p166
    %p168 = pneg %p167
    // Predicated region
    $region9: #{generator2d_forward.13} parent=5 // pred_check
      _
    $region10: #{generator2d_forward.13} parent=5 // pred_check_branch
      %170 = sbr.rel (%p167) target = $region12
    $region11: #{generator2d_forward.13} parent=5 // pred_region
      %s171 = ssub.s32 %s11, 1
    $region12: #{generator2d_forward.13} parent=5 // pred_fallthru
      _
    %p172 = scmp.lt.s32.totalorder %s11, 4
    // Predicated region
    $region13: #{generator2d_forward.13} parent=5 // pred_check
      %p173 = pneg %p172
    $region14: #{generator2d_forward.13} parent=5 // pred_check_branch
      %175 = sbr.rel (%p173) target = $region16
    $region15: #{generator2d_forward.13} parent=5 // pred_region
      // Predicated region
      $region17: #{generator2d_forward.13} parent=15 // pred_check
        %p176 = pneg %p45
      $region18: #{generator2d_forward.13} parent=15 // pred_check_branch
        %178 = sbr.rel (%p176) target = $region20
      $region19: #{generator2d_forward.13} parent=15 // pred_region
        %s179 = smul.u32 16, %s19
        %p180 = scmp.lt.s32.totalorder %s18, 3
        %s181 = scalar_select %p180, %s18, 3
        %p182 = scmp.lt.s32.totalorder %s179, 15
        %s183 = scalar_select %p182, %s179, 15
        %s184 = smul.addr %s181, 16
        %s185 = sadd.s32 %s183, %s184
        %s186 = smul.addr %s185, 8
        %s187 = scalar_lea.vmem %s0, %s186
        %s188 = smul.u32 16, %s19
      $region20: #{generator2d_forward.13} parent=15 // pred_fallthru
        _
      // Predicated region
      $region21: #{generator2d_forward.13} parent=15 // pred_check
        %p189 = pneg %p71
      $region22: #{generator2d_forward.13} parent=15 // pred_check_branch
        %191 = sbr.rel (%p189) target = $region24
      $region23: #{generator2d_forward.13} parent=15 // pred_region
        %p192 = scmp.lt.s32.totalorder %s18, 3
        %s193 = scalar_select %p192, %s18, 3
        %s194 = smul.addr %s193, 8
        %s195 = smul.addr %s194, 8
        %s196 = scalar_lea.vmem %s1, %s195
      $region24: #{generator2d_forward.13} parent=15 // pred_fallthru
        _
    $region16: #{generator2d_forward.13} parent=5 // pred_fallthru
      _
    %p197 = scmp.le.s32.totalorder 1, %s11
    %p198 = scmp.lt.s32.totalorder %s11, 5
    %p199 = pnand %p197, %p198
    %p200 = pneg %p199
    // Predicated region
    $region25: #{generator2d_forward.13} parent=5 // pred_check
      _
    $region26: #{generator2d_forward.13} parent=5 // pred_check_branch
      %202 = sbr.rel (%p199) target = $region28
    $region27: #{generator2d_forward.13} parent=5 // pred_region
      %s203 = ssub.s32 %s11, 1
      %s204 = smul.u32 16, %s21
      %p205 = scmp.lt.s32.totalorder %s20, 3
      %s206 = scalar_select %p205, %s20, 3
      %p207 = scmp.lt.s32.totalorder %s204, 15
      %s208 = scalar_select %p207, %s204, 15
      %s209 = smul.addr %s206, 16
      %s210 = sadd.s32 %s208, %s209
      %s211 = smul.addr %s210, 8
      %s212 = scalar_lea.vmem %s0, %s211
      %p213 = pneg %p51
      %p214 = pneg %p48
      %p215 = scmp.lt.s32.totalorder %s20, 3
      %s216 = scalar_select %p215, %s20, 3
      %s217 = smul.addr %s216, 8
      %s218 = smul.addr %s217, 8
      %s219 = scalar_lea.vmem %s1, %s218
      %p220 = pneg %p77
      %p221 = pneg %p74
      %p222 = pneg %p105
      %p223 = pneg %p102
      %s224 = smul.u32 16, %s21
      %p225 = scmp.lt.s32.totalorder %s20, 3
      %s226 = scalar_select %p225, %s20, 3
      %p227 = scmp.lt.s32.totalorder %s224, 15
      %s228 = scalar_select %p227, %s224, 15
      %s229 = smul.addr %s226, 16
      %s230 = sadd.s32 %s228, %s229
      %s231 = smul.addr %s230, 8
      %s232 = scalar_lea.vmem %s2, %s231
      %p233 = pneg %p131
      %p234 = pneg %p128
      %p235 = scmp.lt.s32.totalorder %s20, 3
      %s236 = scalar_select %p235, %s20, 3
      %s237 = smul.addr %s236, 8
      %s238 = scalar_lea.vmem %s3, %s237
      %p239 = pneg %p157
      %p240 = pneg %p154
      %p241 = scmp.lt.s32.totalorder %s20, 3
      %s242 = scalar_select %p241, %s20, 3
      %s243 = smul.addr %s242, 8
      %s244 = scalar_lea.vmem %s4, %s243
      %s245 = smul.u32 16, %s21
      %p246 = scmp.lt.s32.totalorder %s20, 3
      %s247 = scalar_select %p246, %s20, 3
      %p248 = scmp.lt.s32.totalorder %s245, 15
      %s249 = scalar_select %p248, %s245, 15
      %s250 = smul.addr %s247, 16
      %s251 = sadd.s32 %s249, %s250
      %s252 = smul.addr %s251, 8
      %s253 = scalar_lea.vmem %s0, %s252
      %s254 = smul.u32 16, %s21
      %p255 = scmp.lt.s32.totalorder %s20, 3
      %s256 = scalar_select %p255, %s20, 3
      %s257 = smul.addr %s256, 8
      %s258 = smul.addr %s257, 8
      %s259 = scalar_lea.vmem %s1, %s258
      %s260 = smul.u32 16, %s21
      %p261 = scmp.lt.s32.totalorder %s20, 3
      %s262 = scalar_select %p261, %s20, 3
      %p263 = scmp.lt.s32.totalorder %s260, 15
      %s264 = scalar_select %p263, %s260, 15
      %s265 = smul.addr %s262, 16
      %s266 = sadd.s32 %s264, %s265
      %s267 = smul.addr %s266, 8
      %s268 = scalar_lea.vmem %s2, %s267
      %s269 = smul.u32 16, %s21
      %p270 = scmp.lt.s32.totalorder %s20, 3
      %s271 = scalar_select %p270, %s20, 3
      %s272 = smul.addr %s271, 8
      %s273 = scalar_lea.vmem %s3, %s272
      %p274 = scmp.lt.s32.totalorder %s20, 3
      %s275 = scalar_select %p274, %s20, 3
      %s276 = smul.addr %s275, 8
      %s277 = scalar_lea.vmem %s4, %s276
      %p278 = scmp.eq.s32.totalorder %s21, 0
      // Predicated region
      $region29: #{generator2d_forward.13} parent=27 // pred_check
        %p279 = pneg %p278
      $region30: #{generator2d_forward.13} parent=27 // pred_check_branch
        %281 = sbr.rel (%p279) target = $region32
      $region31: #{generator2d_forward.13} parent=27 // pred_region
        %282 = vst [vmem:[%s273] sm:$0xff] 0.0
        %283 = vst [vmem:[%s277] sm:$0xff] 0.0
      $region32: #{generator2d_forward.13} parent=27 // pred_fallthru
        _
      %v284 = vld [vmem:[%s253] sm:$0xff]
      %v285 = vld [vmem:[%s253 + $0x8] sm:$0xff]
      %v286 = vld [vmem:[%s253 + $0x10] sm:$0xff]
      %v287 = vld [vmem:[%s253 + $0x18] sm:$0xff]
      %v288 = vld [vmem:[%s253 + $0x20] sm:$0xff]
      %v289 = vld [vmem:[%s253 + $0x28] sm:$0xff]
      %v290 = vld [vmem:[%s253 + $0x30] sm:$0xff]
      %v291 = vld [vmem:[%s253 + $0x38] sm:$0xff]
      %v292 = vld [vmem:[%s253 + $0x40] sm:$0xff]
      %v293 = vld [vmem:[%s253 + $0x48] sm:$0xff]
      %v294 = vld [vmem:[%s253 + $0x50] sm:$0xff]
      %v295 = vld [vmem:[%s253 + $0x58] sm:$0xff]
      %v296 = vld [vmem:[%s253 + $0x60] sm:$0xff]
      %v297 = vld [vmem:[%s253 + $0x68] sm:$0xff]
      %v298 = vld [vmem:[%s253 + $0x70] sm:$0xff]
      %v299 = vld [vmem:[%s253 + $0x78] sm:$0xff]
      %v300 = vld [vmem:[%s259] sm:$0xff]
      %v301 = vld [vmem:[%s259 + $0x8] sm:$0xff]
      %v302 = vld [vmem:[%s259 + $0x10] sm:$0xff]
      %v303 = vld [vmem:[%s259 + $0x18] sm:$0xff]
      %v304 = vld [vmem:[%s259 + $0x20] sm:$0xff]
      %v305 = vld [vmem:[%s259 + $0x28] sm:$0xff]
      %v306 = vld [vmem:[%s259 + $0x30] sm:$0xff]
      %v307 = vld [vmem:[%s259 + $0x38] sm:$0xff]
      %vm308 = vcmask 523264
      %v310 = vsel %vm308, %v284, 0
      %v313 = vsel %vm308, %v285, 0
      %v316 = vsel %vm308, %v286, 0
      %v319 = vsel %vm308, %v287, 0
      %v322 = vsel %vm308, %v288, 0
      %v325 = vsel %vm308, %v289, 0
      %v328 = vsel %vm308, %v290, 0
      %v331 = vsel %vm308, %v291, 0
      %v334 = vsel %vm308, %v292, 0
      %v337 = vsel %vm308, %v293, 0
      %v340 = vsel %vm308, %v294, 0
      %v343 = vsel %vm308, %v295, 0
      %v346 = vsel %vm308, %v296, 0
      %v349 = vsel %vm308, %v297, 0
      %v352 = vsel %vm308, %v298, 0
      %v355 = vsel %vm308, %v299, 0
      %357 = vmatprep.subr.mxu0 0.0
      %358 = vmatpush1.msra.mxu0 0.0
      %359 = vmatprep.subr.mxu0 0.0
      %360 = vmatpush1.msra.mxu0 0.0
      %361 = vmatprep.subr.mxu0 0.0
      %362 = vmatpush1.msra.mxu0 0.0
      %363 = vmatprep.subr.mxu0 0.0
      %364 = vmatpush1.msra.mxu0 0.0
      %365 = vmatprep.subr.mxu0 0.0
      %366 = vmatpush1.msra.mxu0 0.0
      %367 = vmatprep.subr.mxu0 0.0
      %368 = vmatpush1.msra.mxu0 0.0
      %369 = vmatprep.subr.mxu0 0.0
      %370 = vmatpush1.msra.mxu0 0.0
      %371 = vmatprep.subr.mxu0 0.0
      %372 = vmatpush1.msra.mxu0 0.0
      %373 = vmatprep.subr.mxu0 0.0
      %374 = vmatpush1.msra.mxu0 %v307
      %375 = vmatprep.subr.mxu0 0.0
      %376 = vmatpush1.msra.mxu0 %v306
      %377 = vmatprep.subr.mxu0 0.0
      %378 = vmatpush1.msra.mxu0 %v305
      %379 = vmatprep.subr.mxu0 0.0
      %380 = vmatpush1.msra.mxu0 %v304
      %381 = vmatprep.subr.mxu0 0.0
      %382 = vmatpush1.msra.mxu0 %v303
      %383 = vmatprep.subr.mxu0 0.0
      %384 = vmatpush1.msra.mxu0 %v302
      %385 = vmatprep.subr.mxu0 0.0
      %386 = vmatpush1.msra.mxu0 %v301
      %387 = vmatprep.subr.mxu0 0.0
      %388 = vmatpush1.msra.mxu0 %v300
      %389 = vmatprep.subr.mxu0 0.0
      %390 = vmatpush2.msra.mxu0 0.0
      %391 = vmatprep.subr.mxu0 0.0
      %392 = vmatpush2.msra.mxu0 0.0
      %393 = vmatprep.subr.mxu0 0.0
      %394 = vmatpush2.msra.mxu0 0.0
      %395 = vmatprep.subr.mxu0 0.0
      %396 = vmatpush2.msra.mxu0 0.0
      %397 = vmatprep.subr.mxu0 0.0
      %398 = vmatpush2.msra.mxu0 0.0
      %399 = vmatprep.subr.mxu0 0.0
      %400 = vmatpush2.msra.mxu0 0.0
      %401 = vmatprep.subr.mxu0 0.0
      %402 = vmatpush2.msra.mxu0 0.0
      %403 = vmatprep.subr.mxu0 0.0
      %404 = vmatpush2.msra.mxu0 0.0
      %405 = vmatprep.subr.mxu0 0.0
      %406 = vmatpush2.msra.mxu0 0.0
      %407 = vmatprep.subr.mxu0 0.0
      %408 = vmatpush2.msra.mxu0 0.0
      %409 = vmatprep.subr.mxu0 0.0
      %410 = vmatpush2.msra.mxu0 0.0
      %411 = vmatprep.subr.mxu0 0.0
      %412 = vmatpush2.msra.mxu0 0.0
      %413 = vmatprep.subr.mxu0 0.0
      %414 = vmatpush2.msra.mxu0 0.0
      %415 = vmatprep.subr.mxu0 0.0
      %416 = vmatpush2.msra.mxu0 0.0
      %417 = vmatprep.subr.mxu0 0.0
      %418 = vmatpush2.msra.mxu0 0.0
      %419 = vmatprep.subr.mxu0 0.0
      %420 = vmatpush2.msra.mxu0 0.0
      %421 = vmatprep.mubr.f32.mxu0 0.0
      %422 = vmatmul.mubr.f32.gmra.mxu0 %v310
      %v423 = vpop.f32.mrf.mxu0
      %v424 = vadd.f32 0.0, %v423
      %v425 = vpop.f32.mrf.mxu0
      %426 = vmatprep.mubr.f32.mxu0 0.0
      %427 = vmatmul.mubr.f32.gmra.mxu0 %v313
      %v428 = vpop.f32.mrf.mxu0
      %v429 = vadd.f32 0.0, %v428
      %v430 = vpop.f32.mrf.mxu0
      %431 = vmatprep.mubr.f32.mxu0 0.0
      %432 = vmatmul.mubr.f32.gmra.mxu0 %v316
      %v433 = vpop.f32.mrf.mxu0
      %v434 = vadd.f32 0.0, %v433
      %v435 = vpop.f32.mrf.mxu0
      %436 = vmatprep.mubr.f32.mxu0 0.0
      %437 = vmatmul.mubr.f32.gmra.mxu0 %v319
      %v438 = vpop.f32.mrf.mxu0
      %v439 = vadd.f32 0.0, %v438
      %v440 = vpop.f32.mrf.mxu0
      %441 = vmatprep.mubr.f32.mxu0 0.0
      %442 = vmatmul.mubr.f32.gmra.mxu0 %v322
      %v443 = vpop.f32.mrf.mxu0
      %v444 = vadd.f32 0.0, %v443
      %v445 = vpop.f32.mrf.mxu0
      %446 = vmatprep.mubr.f32.mxu0 0.0
      %447 = vmatmul.mubr.f32.gmra.mxu0 %v325
      %v448 = vpop.f32.mrf.mxu0
      %v449 = vadd.f32 0.0, %v448
      %v450 = vpop.f32.mrf.mxu0
      %451 = vmatprep.mubr.f32.mxu0 0.0
      %452 = vmatmul.mubr.f32.gmra.mxu0 %v328
      %v453 = vpop.f32.mrf.mxu0
      %v454 = vadd.f32 0.0, %v453
      %v455 = vpop.f32.mrf.mxu0
      %456 = vmatprep.mubr.f32.mxu0 0.0
      %457 = vmatmul.mubr.f32.gmra.mxu0 %v331
      %v458 = vpop.f32.mrf.mxu0
      %v459 = vadd.f32 0.0, %v458
      %v460 = vpop.f32.mrf.mxu0
      %461 = vmatprep.mubr.f32.mxu0 0.0
      %462 = vmatmul.mubr.f32.gmra.mxu0 %v334
      %v463 = vpop.f32.mrf.mxu0
      %v464 = vadd.f32 0.0, %v463
      %v465 = vpop.f32.mrf.mxu0
      %466 = vmatprep.mubr.f32.mxu0 0.0
      %467 = vmatmul.mubr.f32.gmra.mxu0 %v337
      %v468 = vpop.f32.mrf.mxu0
      %v469 = vadd.f32 0.0, %v468
      %v470 = vpop.f32.mrf.mxu0
      %471 = vmatprep.mubr.f32.mxu0 0.0
      %472 = vmatmul.mubr.f32.gmra.mxu0 %v340
      %v473 = vpop.f32.mrf.mxu0
      %v474 = vadd.f32 0.0, %v473
      %v475 = vpop.f32.mrf.mxu0
      %476 = vmatprep.mubr.f32.mxu0 0.0
      %477 = vmatmul.mubr.f32.gmra.mxu0 %v343
      %v478 = vpop.f32.mrf.mxu0
      %v479 = vadd.f32 0.0, %v478
      %v480 = vpop.f32.mrf.mxu0
      %481 = vmatprep.mubr.f32.mxu0 0.0
      %482 = vmatmul.mubr.f32.gmra.mxu0 %v346
      %v483 = vpop.f32.mrf.mxu0
      %v484 = vadd.f32 0.0, %v483
      %v485 = vpop.f32.mrf.mxu0
      %486 = vmatprep.mubr.f32.mxu0 0.0
      %487 = vmatmul.mubr.f32.gmra.mxu0 %v349
      %v488 = vpop.f32.mrf.mxu0
      %v489 = vadd.f32 0.0, %v488
      %v490 = vpop.f32.mrf.mxu0
      %491 = vmatprep.mubr.f32.mxu0 0.0
      %492 = vmatmul.mubr.f32.gmra.mxu0 %v352
      %v493 = vpop.f32.mrf.mxu0
      %v494 = vadd.f32 0.0, %v493
      %v495 = vpop.f32.mrf.mxu0
      %496 = vmatprep.mubr.f32.mxu0 0.0
      %497 = vmatmul.mubr.f32.gmra.mxu0 %v355
      %v498 = vpop.f32.mrf.mxu0
      %v499 = vadd.f32 0.0, %v498
      %v500 = vpop.f32.mrf.mxu0
      %501 = vdwg.mxu0
      %502 = vst [vmem:[%s268] sm:$0xff] %v424
      %503 = vst [vmem:[%s268 + $0x8] sm:$0xff] %v429
      %504 = vst [vmem:[%s268 + $0x10] sm:$0xff] %v434
      %505 = vst [vmem:[%s268 + $0x18] sm:$0xff] %v439
      %506 = vst [vmem:[%s268 + $0x20] sm:$0xff] %v444
      %507 = vst [vmem:[%s268 + $0x28] sm:$0xff] %v449
      %508 = vst [vmem:[%s268 + $0x30] sm:$0xff] %v454
      %509 = vst [vmem:[%s268 + $0x38] sm:$0xff] %v459
      %510 = vst [vmem:[%s268 + $0x40] sm:$0xff] %v464
      %511 = vst [vmem:[%s268 + $0x48] sm:$0xff] %v469
      %512 = vst [vmem:[%s268 + $0x50] sm:$0xff] %v474
      %513 = vst [vmem:[%s268 + $0x58] sm:$0xff] %v479
      %514 = vst [vmem:[%s268 + $0x60] sm:$0xff] %v484
      %515 = vst [vmem:[%s268 + $0x68] sm:$0xff] %v489
      %516 = vst [vmem:[%s268 + $0x70] sm:$0xff] %v494
      %517 = vst [vmem:[%s268 + $0x78] sm:$0xff] %v499
      %v518 = vld [vmem:[%s273] sm:$0xff]
      %v519 = vadd.f32 %v424, %v429
      %v520 = vadd.f32 %v519, %v434
      %v521 = vadd.f32 %v520, %v439
      %v522 = vadd.f32 %v521, %v444
      %v523 = vadd.f32 %v522, %v449
      %v524 = vadd.f32 %v523, %v454
      %v525 = vadd.f32 %v524, %v459
      %v526 = vadd.f32 %v525, %v464
      %v527 = vadd.f32 %v526, %v469
      %v528 = vadd.f32 %v527, %v474
      %v529 = vadd.f32 %v528, %v479
      %v530 = vadd.f32 %v529, %v484
      %v531 = vadd.f32 %v530, %v489
      %v532 = vadd.f32 %v531, %v494
      %v533 = vadd.f32 %v532, %v499
      %v534 = vrot.slane %v533, 4
      %v535 = vadd.f32 %v533, %v534
      %v536 = vrot.slane %v535, 2
      %v537 = vadd.f32 %v535, %v536
      %v538 = vrot.slane %v537, 1
      %v539 = vadd.f32 %v537, %v538
      %v540 = vadd.f32 %v518, %v539
      %541 = vst [vmem:[%s273] sm:$0xff] %v540
      %v542 = vld [vmem:[%s277] sm:$0xff]
      %v543 = vmul.f32 %v424, %v424
      %v544 = vmul.f32 %v429, %v429
      %v545 = vmul.f32 %v434, %v434
      %v546 = vmul.f32 %v439, %v439
      %v547 = vmul.f32 %v444, %v444
      %v548 = vmul.f32 %v449, %v449
      %v549 = vmul.f32 %v454, %v454
      %v550 = vmul.f32 %v459, %v459
      %v551 = vmul.f32 %v464, %v464
      %v552 = vmul.f32 %v469, %v469
      %v553 = vmul.f32 %v474, %v474
      %v554 = vmul.f32 %v479, %v479
      %v555 = vmul.f32 %v484, %v484
      %v556 = vmul.f32 %v489, %v489
      %v557 = vmul.f32 %v494, %v494
      %v558 = vmul.f32 %v499, %v499
      %v559 = vadd.f32 %v543, %v544
      %v560 = vadd.f32 %v559, %v545
      %v561 = vadd.f32 %v560, %v546
      %v562 = vadd.f32 %v561, %v547
      %v563 = vadd.f32 %v562, %v548
      %v564 = vadd.f32 %v563, %v549
      %v565 = vadd.f32 %v564, %v550
      %v566 = vadd.f32 %v565, %v551
      %v567 = vadd.f32 %v566, %v552
      %v568 = vadd.f32 %v567, %v553
      %v569 = vadd.f32 %v568, %v554
      %v570 = vadd.f32 %v569, %v555
      %v571 = vadd.f32 %v570, %v556
      %v572 = vadd.f32 %v571, %v557
      %v573 = vadd.f32 %v572, %v558
      %v574 = vrot.slane %v573, 4
      %v575 = vadd.f32 %v573, %v574
      %v576 = vrot.slane %v575, 2
      %v577 = vadd.f32 %v575, %v576
      %v578 = vrot.slane %v577, 1
      %v579 = vadd.f32 %v577, %v578
      %v580 = vadd.f32 %v542, %v579
      %581 = vst [vmem:[%s277] sm:$0xff] %v580
      %s582 = smul.u32 16, %s21
      %p583 = scmp.lt.s32.totalorder %s20, 3
      %s584 = scalar_select %p583, %s20, 3
      %p585 = scmp.lt.s32.totalorder %s582, 15
      %s586 = scalar_select %p585, %s582, 15
      %s587 = smul.addr %s584, 16
      %s588 = sadd.s32 %s586, %s587
      %s589 = smul.addr %s588, 8
      %s590 = scalar_lea.vmem %s2, %s589
      %p591 = scmp.lt.s32.totalorder %s20, 3
      %s592 = scalar_select %p591, %s20, 3
      %s593 = smul.addr %s592, 8
      %s594 = scalar_lea.vmem %s3, %s593
      %p595 = scmp.lt.s32.totalorder %s20, 3
      %s596 = scalar_select %p595, %s20, 3
      %s597 = smul.addr %s596, 8
      %s598 = scalar_lea.vmem %s4, %s597
      // Predicated region
      $region33: #{generator2d_forward.13} parent=27 // pred_check
        %p599 = pneg %p102
      $region34: #{generator2d_forward.13} parent=27 // pred_check_branch
        %601 = sbr.rel (%p599) target = $region36
      $region35: #{generator2d_forward.13} parent=27 // pred_region
        %s602 = smul.u32 16, %s21
      $region36: #{generator2d_forward.13} parent=27 // pred_fallthru
        _
      // Predicated region
      $region37: #{generator2d_forward.13} parent=27 // pred_check
        %p603 = pneg %p128
      $region38: #{generator2d_forward.13} parent=27 // pred_check_branch
        %605 = sbr.rel (%p603) target = $region40
      $region39: #{generator2d_forward.13} parent=27 // pred_region
        _
      $region40: #{generator2d_forward.13} parent=27 // pred_fallthru
        _
      // Predicated region
      $region41: #{generator2d_forward.13} parent=27 // pred_check
        %p606 = pneg %p154
      $region42: #{generator2d_forward.13} parent=27 // pred_check_branch
        %608 = sbr.rel (%p606) target = $region44
      $region43: #{generator2d_forward.13} parent=27 // pred_region
        _
      $region44: #{generator2d_forward.13} parent=27 // pred_fallthru
        _
    $region28: #{generator2d_forward.13} parent=5 // pred_fallthru
      _
    %p609 = scmp.le.s32.totalorder 2, %s11
    // Predicated region
    $region45: #{generator2d_forward.13} parent=5 // pred_check
      %p610 = pneg %p609
    $region46: #{generator2d_forward.13} parent=5 // pred_check_branch
      %612 = sbr.rel (%p610) target = $region48
    $region47: #{generator2d_forward.13} parent=5 // pred_region
      %s613 = ssub.s32 %s11, 2
      // Predicated region
      $region49: #{generator2d_forward.13} parent=47 // pred_check
        %p614 = pneg %p108
      $region50: #{generator2d_forward.13} parent=47 // pred_check_branch
        %616 = sbr.rel (%p614) target = $region52
      $region51: #{generator2d_forward.13} parent=47 // pred_region
        %s617 = smul.u32 16, %s23
        %p618 = scmp.lt.s32.totalorder %s22, 3
        %s619 = scalar_select %p618, %s22, 3
        %p620 = scmp.lt.s32.totalorder %s617, 15
        %s621 = scalar_select %p620, %s617, 15
        %s622 = smul.addr %s619, 16
        %s623 = sadd.s32 %s621, %s622
        %s624 = smul.addr %s623, 8
        %s625 = scalar_lea.vmem %s2, %s624
      $region52: #{generator2d_forward.13} parent=47 // pred_fallthru
        _
      // Predicated region
      $region53: #{generator2d_forward.13} parent=47 // pred_check
        %p626 = pneg %p134
      $region54: #{generator2d_forward.13} parent=47 // pred_check_branch
        %628 = sbr.rel (%p626) target = $region56
      $region55: #{generator2d_forward.13} parent=47 // pred_region
        %p629 = scmp.lt.s32.totalorder %s22, 3
        %s630 = scalar_select %p629, %s22, 3
        %s631 = smul.addr %s630, 8
        %s632 = scalar_lea.vmem %s3, %s631
      $region56: #{generator2d_forward.13} parent=47 // pred_fallthru
        _
      // Predicated region
      $region57: #{generator2d_forward.13} parent=47 // pred_check
        %p633 = pneg %p160
      $region58: #{generator2d_forward.13} parent=47 // pred_check_branch
        %635 = sbr.rel (%p633) target = $region60
      $region59: #{generator2d_forward.13} parent=47 // pred_region
        %p636 = scmp.lt.s32.totalorder %s22, 3
        %s637 = scalar_select %p636, %s22, 3
        %s638 = smul.addr %s637, 8
        %s639 = scalar_lea.vmem %s4, %s638
      $region60: #{generator2d_forward.13} parent=47 // pred_fallthru
        _
    $region48: #{generator2d_forward.13} parent=5 // pred_fallthru
      _
  $region6: #{generator2d_forward.13} parent=0 // loop_footer
    %s15 = sadd.s32 1, %s11
  $region7: #{generator2d_forward.13} parent=0 // loop_footer_branch
    %10 = sbr.rel target = $region3
  $region8: #{generator2d_forward.13} parent=0 // loop_exit
    _

// kernel: generator2d_forward.14
$region0: #{generator2d_forward.14}
  #allocation0 [shape = 'u32[]', space=smem, size = 0x4, offset = 0x4, fixed_abs, tag = 'smem constant byte address 0x4 - core index']
  #allocation1 [shape = 'u32[144,128]{1,0:T(1,128)}', space=vmem, size = 0x12000, scoped, tag = 'internal scratch']
  %s0 = inlined_call_operand.vmem [shape: f32[4,128,128], index: 0, kind: input, shape index: {}]
  %s1 = inlined_call_operand.vmem [shape: f32[1,128], index: 1, kind: input, shape index: {}]
  %s2 = inlined_call_operand.vmem [shape: f32[1,128], index: 2, kind: input, shape index: {}]
  %s3 = inlined_call_operand.vmem [shape: f32[4,128,128], index: 3, kind: output, shape index: {}]
  %s4 = sld [smem:[#allocation0]]
  $region45: #{generator2d_forward.14} parent=0
    _
  %s6 = ssub.s32 1, %s4
  %s7 = scalar_select 0, %s6, %s4
  loop: start=0, step=1, limit=6
  $region2: #{generator2d_forward.14} parent=0 // loop_pre_header
    _
  $region3: #{generator2d_forward.14} parent=0 // loop_header
    %s9 = sphi 0, %s13
    %p10 = scmp.ge.s32.totalorder %s9, 6
    %s16 = sphi 0, %s28
    %s17 = sphi 0, %s24
    %s18 = sphi 0, %s16
    %s19 = sphi 0, %s17
    %s20 = sphi 0, %s18
    %s21 = sphi 0, %s19
    %s33 = sphi 0, %s35
    %s36 = sphi 0, %s33
    %s37 = sphi 0, %s36
    %s53 = sphi 0, %s37
    %s57 = sphi 0, %s57
    %s59 = sphi 0, %s57
    %s60 = sphi 0, %s59
    %s74 = sphi 0, %s60
    %s78 = sphi 0, %s78
    %s80 = sphi 0, %s78
    %s81 = sphi 0, %s80
    %s95 = sphi 0, %s81
    %s103 = sphi 0, %s105
    %s106 = sphi 0, %s103
    %s107 = sphi 0, %s106
    %s123 = sphi 0, %s107
  $region4: #{generator2d_forward.14} parent=0 // loop_header_branch
    %12 = sbr.rel (%p10) target = $region8
  $region5: #{generator2d_forward.14} parent=0 // loop_body
    %s14 = ssub.s32 %s9, 1
    %s15 = ssub.s32 %s9, 2
    %s22 = sadd.s32 1, %s17
    %p23 = scmp.ge.s32.totalorder %s22, 1
    %s24 = scalar_select %p23, 0, %s22
    %s25 = sadd.s32 1, %s16
    %s26 = scalar_select %p23, %s25, %s16
    %p27 = scmp.ge.s32.totalorder %s26, 4
    %s28 = scalar_select %p27, 0, %s26
    %s29 = ssub.s32 %s16, %s28
    %s30 = ssub.s32 %s17, %s24
    %s31 = sor.u32 %s29, %s30
    %p32 = scmp.eq.s32.totalorder %s31, 0
    %s34 = sadd.s32 %s33, 1
    %s35 = scalar_select %p32, %s33, %s34
    %p38 = pneg %p32
    %p39 = scmp.eq.s32.totalorder %s9, 3
    %p40 = por %p38, %p39
    %p41 = scmp.ne.s32.totalorder %s33, %s36
    %p42 = scmp.eq.s32.totalorder %s9, 0
    %p43 = por %p41, %p42
    %p44 = scmp.ne.s32.totalorder %s33, %s36
    %p45 = scmp.eq.s32.totalorder %s14, 3
    %p46 = por %p44, %p45
    %p47 = scmp.ne.s32.totalorder %s36, %s37
    %p48 = scmp.eq.s32.totalorder %s14, 0
    %p49 = por %p47, %p48
    %p50 = scmp.ne.s32.totalorder %s36, %s37
    %p51 = scmp.eq.s32.totalorder %s15, 3
    %p52 = por %p50, %p51
    %p54 = scmp.ne.s32.totalorder %s37, %s53
    %p55 = scmp.eq.s32.totalorder %s15, 0
    %p56 = por %p54, %p55
    %s58 = sadd.s32 %s57, 1
    %p61 = scmp.eq.s32.totalorder %s9, 3
    %p62 = scmp.ne.s32.totalorder %s57, %s59
    %p63 = scmp.eq.s32.totalorder %s9, 0
    %p64 = por %p62, %p63
    %p65 = scmp.ne.s32.totalorder %s57, %s59
    %p66 = scmp.eq.s32.totalorder %s14, 3
    %p67 = por %p65, %p66
    %p68 = scmp.ne.s32.totalorder %s59, %s60
    %p69 = scmp.eq.s32.totalorder %s14, 0
    %p70 = por %p68, %p69
    %p71 = scmp.ne.s32.totalorder %s59, %s60
    %p72 = scmp.eq.s32.totalorder %s15, 3
    %p73 = por %p71, %p72
    %p75 = scmp.ne.s32.totalorder %s60, %s74
    %p76 = scmp.eq.s32.totalorder %s15, 0
    %p77 = por %p75, %p76
    %s79 = sadd.s32 %s78, 1
    %p82 = scmp.eq.s32.totalorder %s9, 3
    %p83 = scmp.ne.s32.totalorder %s78, %s80
    %p84 = scmp.eq.s32.totalorder %s9, 0
    %p85 = por %p83, %p84
    %p86 = scmp.ne.s32.totalorder %s78, %s80
    %p87 = scmp.eq.s32.totalorder %s14, 3
    %p88 = por %p86, %p87
    %p89 = scmp.ne.s32.totalorder %s80, %s81
    %p90 = scmp.eq.s32.totalorder %s14, 0
    %p91 = por %p89, %p90
    %p92 = scmp.ne.s32.totalorder %s80, %s81
    %p93 = scmp.eq.s32.totalorder %s15, 3
    %p94 = por %p92, %p93
    %p96 = scmp.ne.s32.totalorder %s81, %s95
    %p97 = scmp.eq.s32.totalorder %s15, 0
    %p98 = por %p96, %p97
    %s99 = ssub.s32 %s16, %s28
    %s100 = ssub.s32 %s17, %s24
    %s101 = sor.u32 %s99, %s100
    %p102 = scmp.eq.s32.totalorder %s101, 0
    %s104 = sadd.s32 %s103, 1
    %s105 = scalar_select %p102, %s103, %s104
    %p108 = pneg %p102
    %p109 = scmp.eq.s32.totalorder %s9, 3
    %p110 = por %p108, %p109
    %p111 = scmp.ne.s32.totalorder %s103, %s106
    %p112 = scmp.eq.s32.totalorder %s9, 0
    %p113 = por %p111, %p112
    %p114 = scmp.ne.s32.totalorder %s103, %s106
    %p115 = scmp.eq.s32.totalorder %s14, 3
    %p116 = por %p114, %p115
    %p117 = scmp.ne.s32.totalorder %s106, %s107
    %p118 = scmp.eq.s32.totalorder %s14, 0
    %p119 = por %p117, %p118
    %p120 = scmp.ne.s32.totalorder %s106, %s107
    %p121 = scmp.eq.s32.totalorder %s15, 3
    %p122 = por %p120, %p121
    %p124 = scmp.ne.s32.totalorder %s107, %s123
    %p125 = scmp.eq.s32.totalorder %s15, 0
    %p126 = por %p124, %p125
    %p127 = scmp.le.s32.totalorder 1, %s9
    %p128 = scmp.lt.s32.totalorder %s9, 5
    %p129 = pnand %p127, %p128
    %p130 = pneg %p129
    // Predicated region
    $region9: #{generator2d_forward.14} parent=5 // pred_check
      _
    $region10: #{generator2d_forward.14} parent=5 // pred_check_branch
      %132 = sbr.rel (%p129) target = $region12
    $region11: #{generator2d_forward.14} parent=5 // pred_region
      %s133 = ssub.s32 %s9, 1
      // Predicated region
      $region13: #{generator2d_forward.14} parent=11 // pred_check
        %p134 = pneg %p70
      $region14: #{generator2d_forward.14} parent=11 // pred_check_branch
        %136 = sbr.rel (%p134) target = $region16
      $region15: #{generator2d_forward.14} parent=11 // pred_region
        _
      $region16: #{generator2d_forward.14} parent=11 // pred_fallthru
        _
      // Predicated region
      $region17: #{generator2d_forward.14} parent=11 // pred_check
        %p137 = pneg %p91
      $region18: #{generator2d_forward.14} parent=11 // pred_check_branch
        %139 = sbr.rel (%p137) target = $region20
      $region19: #{generator2d_forward.14} parent=11 // pred_region
        _
      $region20: #{generator2d_forward.14} parent=11 // pred_fallthru
        _
    $region12: #{generator2d_forward.14} parent=5 // pred_fallthru
      _
    %p140 = scmp.lt.s32.totalorder %s9, 4
    // Predicated region
    $region21: #{generator2d_forward.14} parent=5 // pred_check
      %p141 = pneg %p140
    $region22: #{generator2d_forward.14} parent=5 // pred_check_branch
      %143 = sbr.rel (%p141) target = $region24
    $region23: #{generator2d_forward.14} parent=5 // pred_region
      // Predicated region
      $region25: #{generator2d_forward.14} parent=23 // pred_check
        %p144 = pneg %p43
      $region26: #{generator2d_forward.14} parent=23 // pred_check_branch
        %146 = sbr.rel (%p144) target = $region28
      $region27: #{generator2d_forward.14} parent=23 // pred_region
        %s147 = smul.u32 16, %s17
        %p148 = scmp.lt.s32.totalorder %s16, 3
        %s149 = scalar_select %p148, %s16, 3
        %p150 = scmp.lt.s32.totalorder %s147, 15
        %s151 = scalar_select %p150, %s147, 15
        %s152 = smul.addr %s149, 16
        %s153 = sadd.s32 %s151, %s152
        %s154 = smul.addr %s153, 8
        %s155 = scalar_lea.vmem %s0, %s154
        %s156 = smul.u32 16, %s17
      $region28: #{generator2d_forward.14} parent=23 // pred_fallthru
        _
    $region24: #{generator2d_forward.14} parent=5 // pred_fallthru
      _
    %p157 = scmp.le.s32.totalorder 1, %s9
    %p158 = scmp.lt.s32.totalorder %s9, 5
    %p159 = pnand %p157, %p158
    %p160 = pneg %p159
    // Predicated region
    $region29: #{generator2d_forward.14} parent=5 // pred_check
      _
    $region30: #{generator2d_forward.14} parent=5 // pred_check_branch
      %162 = sbr.rel (%p159) target = $region32
    $region31: #{generator2d_forward.14} parent=5 // pred_region
      %s163 = ssub.s32 %s9, 1
      %s164 = smul.u32 16, %s19
      %p165 = scmp.lt.s32.totalorder %s18, 3
      %s166 = scalar_select %p165, %s18, 3
      %p167 = scmp.lt.s32.totalorder %s164, 15
      %s168 = scalar_select %p167, %s164, 15
      %s169 = smul.addr %s166, 16
      %s170 = sadd.s32 %s168, %s169
      %s171 = smul.addr %s170, 8
      %s172 = scalar_lea.vmem %s0, %s171
      %p173 = pneg %p49
      %p174 = pneg %p46
      %p175 = pneg %p70
      %p176 = pneg %p67
      %p177 = pneg %p91
      %p178 = pneg %p88
      %p179 = pneg %p119
      %p180 = pneg %p116
      %s181 = smul.u32 16, %s19
      %p182 = scmp.lt.s32.totalorder %s18, 3
      %s183 = scalar_select %p182, %s18, 3
      %p184 = scmp.lt.s32.totalorder %s181, 15
      %s185 = scalar_select %p184, %s181, 15
      %s186 = smul.addr %s183, 16
      %s187 = sadd.s32 %s185, %s186
      %s188 = smul.addr %s187, 8
      %s189 = scalar_lea.vmem %s3, %s188
      %s190 = smul.u32 16, %s19
      %p191 = scmp.lt.s32.totalorder %s18, 3
      %s192 = scalar_select %p191, %s18, 3
      %p193 = scmp.lt.s32.totalorder %s190, 15
      %s194 = scalar_select %p193, %s190, 15
      %s195 = smul.addr %s192, 16
      %s196 = sadd.s32 %s194, %s195
      %s197 = smul.addr %s196, 8
      %s198 = scalar_lea.vmem %s0, %s197
      %s199 = smul.u32 16, %s19
      %s200 = smul.u32 16, %s19
      %p201 = scmp.lt.s32.totalorder %s18, 3
      %s202 = scalar_select %p201, %s18, 3
      %p203 = scmp.lt.s32.totalorder %s200, 15
      %s204 = scalar_select %p203, %s200, 15
      %s205 = smul.addr %s202, 16
      %s206 = sadd.s32 %s204, %s205
      %s207 = smul.addr %s206, 8
      %s208 = scalar_lea.vmem %s3, %s207
      %s209 = smul.u32 16, %s19
      %v210 = vld [vmem:[%s198] sm:$0xff]
      %v211 = vld [vmem:[%s198 + $0x8] sm:$0xff]
      %v212 = vld [vmem:[%s198 + $0x10] sm:$0xff]
      %v213 = vld [vmem:[%s198 + $0x18] sm:$0xff]
      %v214 = vld [vmem:[%s198 + $0x20] sm:$0xff]
      %v215 = vld [vmem:[%s198 + $0x28] sm:$0xff]
      %v216 = vld [vmem:[%s198 + $0x30] sm:$0xff]
      %v217 = vld [vmem:[%s198 + $0x38] sm:$0xff]
      %v218 = vld [vmem:[%s198 + $0x40] sm:$0xff]
      %v219 = vld [vmem:[%s198 + $0x48] sm:$0xff]
      %v220 = vld [vmem:[%s198 + $0x50] sm:$0xff]
      %v221 = vld [vmem:[%s198 + $0x58] sm:$0xff]
      %v222 = vld [vmem:[%s198 + $0x60] sm:$0xff]
      %v223 = vld [vmem:[%s198 + $0x68] sm:$0xff]
      %v224 = vld [vmem:[%s198 + $0x70] sm:$0xff]
      %v225 = vld [vmem:[%s198 + $0x78] sm:$0xff]
      %v226 = vld [vmem:[%s1] sm:$0x1]
      %v228 = vlaneseq
      %v229 = vshrl.u32 %v228, 7
      %v230 = vsub.s32 0, %v229
      %v231 = vrot.slane %v226, %v230
      %v233 = vmul.f32 %v210, %v231
      %v234 = vmul.f32 %v211, %v231
      %v235 = vmul.f32 %v212, %v231
      %v236 = vmul.f32 %v213, %v231
      %v237 = vmul.f32 %v214, %v231
      %v238 = vmul.f32 %v215, %v231
      %v239 = vmul.f32 %v216, %v231
      %v240 = vmul.f32 %v217, %v231
      %v241 = vmul.f32 %v218, %v231
      %v242 = vmul.f32 %v219, %v231
      %v243 = vmul.f32 %v220, %v231
      %v244 = vmul.f32 %v221, %v231
      %v245 = vmul.f32 %v222, %v231
      %v246 = vmul.f32 %v223, %v231
      %v247 = vmul.f32 %v224, %v231
      %v248 = vmul.f32 %v225, %v231
      %v249 = vld [vmem:[%s2] sm:$0x1]
      %v251 = vlaneseq
      %v252 = vshrl.u32 %v251, 7
      %v253 = vsub.s32 0, %v252
      %v254 = vrot.slane %v249, %v253
      %v256 = vadd.f32 %v233, %v254
      %v257 = vadd.f32 %v234, %v254
      %v258 = vadd.f32 %v235, %v254
      %v259 = vadd.f32 %v236, %v254
      %v260 = vadd.f32 %v237, %v254
      %v261 = vadd.f32 %v238, %v254
      %v262 = vadd.f32 %v239, %v254
      %v263 = vadd.f32 %v240, %v254
      %v264 = vadd.f32 %v241, %v254
      %v265 = vadd.f32 %v242, %v254
      %v266 = vadd.f32 %v243, %v254
      %v267 = vadd.f32 %v244, %v254
      %v268 = vadd.f32 %v245, %v254
      %v269 = vadd.f32 %v246, %v254
      %v270 = vadd.f32 %v247, %v254
      %v271 = vadd.f32 %v248, %v254
      %v272 = vmax.f32 %v256, 0.0
      %v273 = vmax.f32 %v257, 0.0
      %v274 = vmax.f32 %v258, 0.0
      %v275 = vmax.f32 %v259, 0.0
      %v276 = vmax.f32 %v260, 0.0
      %v277 = vmax.f32 %v261, 0.0
      %v278 = vmax.f32 %v262, 0.0
      %v279 = vmax.f32 %v263, 0.0
      %v280 = vmax.f32 %v264, 0.0
      %v281 = vmax.f32 %v265, 0.0
      %v282 = vmax.f32 %v266, 0.0
      %v283 = vmax.f32 %v267, 0.0
      %v284 = vmax.f32 %v268, 0.0
      %v285 = vmax.f32 %v269, 0.0
      %v286 = vmax.f32 %v270, 0.0
      %v287 = vmax.f32 %v271, 0.0
      %288 = vst [vmem:[%s208] sm:$0xff] %v272
      %289 = vst [vmem:[%s208 + $0x8] sm:$0xff] %v273
      %290 = vst [vmem:[%s208 + $0x10] sm:$0xff] %v274
      %291 = vst [vmem:[%s208 + $0x18] sm:$0xff] %v275
      %292 = vst [vmem:[%s208 + $0x20] sm:$0xff] %v276
      %293 = vst [vmem:[%s208 + $0x28] sm:$0xff] %v277
      %294 = vst [vmem:[%s208 + $0x30] sm:$0xff] %v278
      %295 = vst [vmem:[%s208 + $0x38] sm:$0xff] %v279
      %296 = vst [vmem:[%s208 + $0x40] sm:$0xff] %v280
      %297 = vst [vmem:[%s208 + $0x48] sm:$0xff] %v281
      %298 = vst [vmem:[%s208 + $0x50] sm:$0xff] %v282
      %299 = vst [vmem:[%s208 + $0x58] sm:$0xff] %v283
      %300 = vst [vmem:[%s208 + $0x60] sm:$0xff] %v284
      %301 = vst [vmem:[%s208 + $0x68] sm:$0xff] %v285
      %302 = vst [vmem:[%s208 + $0x70] sm:$0xff] %v286
      %303 = vst [vmem:[%s208 + $0x78] sm:$0xff] %v287
      %s304 = smul.u32 16, %s19
      %p305 = scmp.lt.s32.totalorder %s18, 3
      %s306 = scalar_select %p305, %s18, 3
      %p307 = scmp.lt.s32.totalorder %s304, 15
      %s308 = scalar_select %p307, %s304, 15
      %s309 = smul.addr %s306, 16
      %s310 = sadd.s32 %s308, %s309
      %s311 = smul.addr %s310, 8
      %s312 = scalar_lea.vmem %s3, %s311
      // Predicated region
      $region33: #{generator2d_forward.14} parent=31 // pred_check
        %p313 = pneg %p116
      $region34: #{generator2d_forward.14} parent=31 // pred_check_branch
        %315 = sbr.rel (%p313) target = $region36
      $region35: #{generator2d_forward.14} parent=31 // pred_region
        %s316 = smul.u32 16, %s19
      $region36: #{generator2d_forward.14} parent=31 // pred_fallthru
        _
    $region32: #{generator2d_forward.14} parent=5 // pred_fallthru
      _
    %p317 = scmp.le.s32.totalorder 2, %s9
    // Predicated region
    $region37: #{generator2d_forward.14} parent=5 // pred_check
      %p318 = pneg %p317
    $region38: #{generator2d_forward.14} parent=5 // pred_check_branch
      %320 = sbr.rel (%p318) target = $region40
    $region39: #{generator2d_forward.14} parent=5 // pred_region
      %s321 = ssub.s32 %s9, 2
      // Predicated region
      $region41: #{generator2d_forward.14} parent=39 // pred_check
        %p322 = pneg %p122
      $region42: #{generator2d_forward.14} parent=39 // pred_check_branch
        %324 = sbr.rel (%p322) target = $region44
      $region43: #{generator2d_forward.14} parent=39 // pred_region
        %s325 = smul.u32 16, %s21
        %p326 = scmp.lt.s32.totalorder %s20, 3
        %s327 = scalar_select %p326, %s20, 3
        %p328 = scmp.lt.s32.totalorder %s325, 15
        %s329 = scalar_select %p328, %s325, 15
        %s330 = smul.addr %s327, 16
        %s331 = sadd.s32 %s329, %s330
        %s332 = smul.addr %s331, 8
        %s333 = scalar_lea.vmem %s3, %s332
      $region44: #{generator2d_forward.14} parent=39 // pred_fallthru
        _
    $region40: #{generator2d_forward.14} parent=5 // pred_fallthru
      _
  $region6: #{generator2d_forward.14} parent=0 // loop_footer
    %s13 = sadd.s32 1, %s9
  $region7: #{generator2d_forward.14} parent=0 // loop_footer_branch
    %8 = sbr.rel target = $region3
  $region8: #{generator2d_forward.14} parent=0 // loop_exit
    _

// kernel: generator2d_forward.15
$region0: #{generator2d_forward.15}
  #allocation0 [shape = 'u32[]', space=smem, size = 0x4, offset = 0x4, fixed_abs, tag = 'smem constant byte address 0x4 - core index']
  #allocation1 [shape = 'u32[144,128]{1,0:T(1,128)}', space=vmem, size = 0x12000, scoped, tag = 'internal scratch']
  %s0 = inlined_call_operand.vmem [shape: f32[4,512,32], index: 0, kind: input, shape index: {}]
  %s1 = inlined_call_operand.vmem [shape: f32[4,32,128], index: 1, kind: input, shape index: {}]
  %s2 = inlined_call_operand.vmem [shape: f32[4,512,128], index: 2, kind: output, shape index: {0}]
  %s3 = inlined_call_operand.vmem [shape: f32[4,8,128], index: 3, kind: output, shape index: {1}]
  %s4 = inlined_call_operand.vmem [shape: f32[4,8,128], index: 4, kind: output, shape index: {2}]
  %5 = xla_tuple %s2, %s3, %s4
  %s6 = sld [smem:[#allocation0]]
  $region61: #{generator2d_forward.15} parent=0
    _
  %s8 = ssub.s32 1, %s6
  %s9 = scalar_select 0, %s8, %s6
  loop: start=0, step=1, limit=6
  $region2: #{generator2d_forward.15} parent=0 // loop_pre_header
    _
  $region3: #{generator2d_forward.15} parent=0 // loop_header
    %s11 = sphi 0, %s15
    %p12 = scmp.ge.s32.totalorder %s11, 6
    %s18 = sphi 0, %s30
    %s19 = sphi 0, %s26
    %s20 = sphi 0, %s18
    %s21 = sphi 0, %s19
    %s22 = sphi 0, %s20
    %s23 = sphi 0, %s21
    %s35 = sphi 0, %s37
    %s38 = sphi 0, %s35
    %s39 = sphi 0, %s38
    %s55 = sphi 0, %s39
    %s61 = sphi 0, %s63
    %s64 = sphi 0, %s61
    %s65 = sphi 0, %s64
    %s81 = sphi 0, %s65
    %s89 = sphi 0, %s91
    %s92 = sphi 0, %s89
    %s93 = sphi 0, %s92
    %s109 = sphi 0, %s93
    %s115 = sphi 0, %s117
    %s118 = sphi 0, %s115
    %s119 = sphi 0, %s118
    %s135 = sphi 0, %s119
    %s141 = sphi 0, %s143
    %s144 = sphi 0, %s141
    %s145 = sphi 0, %s144
    %s161 = sphi 0, %s145
  $region4: #{generator2d_forward.15} parent=0 // loop_header_branch
    %14 = sbr.rel (%p12) target = $region8
  $region5: #{generator2d_forward.15} parent=0 // loop_body
    %s16 = ssub.s32 %s11, 1
    %s17 = ssub.s32 %s11, 2
    %s24 = sadd.s32 1, %s19
    %p25 = scmp.ge.s32.totalorder %s24, 1
    %s26 = scalar_select %p25, 0, %s24
    %s27 = sadd.s32 1, %s18
    %s28 = scalar_select %p25, %s27, %s18
    %p29 = scmp.ge.s32.totalorder %s28, 4
    %s30 = scalar_select %p29, 0, %s28
    %s31 = ssub.s32 %s18, %s30
    %s32 = ssub.s32 %s19, %s26
    %s33 = sor.u32 %s31, %s32
    %p34 = scmp.eq.s32.totalorder %s33, 0
    %s36 = sadd.s32 %s35, 1
    %s37 = scalar_select %p34, %s35, %s36
    %p40 = pneg %p34
    %p41 = scmp.eq.s32.totalorder %s11, 3
    %p42 = por %p40, %p41
    %p43 = scmp.ne.s32.totalorder %s35, %s38
    %p44 = scmp.eq.s32.totalorder %s11, 0
    %p45 = por %p43, %p44
    %p46 = scmp.ne.s32.totalorder %s35, %s38
    %p47 = scmp.eq.s32.totalorder %s16, 3
    %p48 = por %p46, %p47
    %p49 = scmp.ne.s32.totalorder %s38, %s39
    %p50 = scmp.eq.s32.totalorder %s16, 0
    %p51 = por %p49, %p50
    %p52 = scmp.ne.s32.totalorder %s38, %s39
    %p53 = scmp.eq.s32.totalorder %s17, 3
    %p54 = por %p52, %p53
    %p56 = scmp.ne.s32.totalorder %s39, %s55
    %p57 = scmp.eq.s32.totalorder %s17, 0
    %p58 = por %p56, %p57
    %s59 = ssub.s32 %s18, %s30
    %p60 = scmp.eq.s32.totalorder %s59, 0
    %s62 = sadd.s32 %s61, 1
    %s63 = scalar_select %p60, %s61, %s62
    %p66 = pneg %p60
    %p67 = scmp.eq.s32.totalorder %s11, 3
    %p68 = por %p66, %p67
    %p69 = scmp.ne.s32.totalorder %s61, %s64
    %p70 = scmp.eq.s32.totalorder %s11, 0
    %p71 = por %p69, %p70
    %p72 = scmp.ne.s32.totalorder %s61, %s64
    %p73 = scmp.eq.s32.totalorder %s16, 3
    %p74 = por %p72, %p73
    %p75 = scmp.ne.s32.totalorder %s64, %s65
    %p76 = scmp.eq.s32.totalorder %s16, 0
    %p77 = por %p75, %p76
    %p78 = scmp.ne.s32.totalorder %s64, %s65
    %p79 = scmp.eq.s32.totalorder %s17, 3
    %p80 = por %p78, %p79
    %p82 = scmp.ne.s32.totalorder %s65, %s81
    %p83 = scmp.eq.s32.totalorder %s17, 0
    %p84 = por %p82, %p83
    %s85 = ssub.s32 %s18, %s30
    %s86 = ssub.s32 %s19, %s26
    %s87 = sor.u32 %s85, %s86
    %p88 = scmp.eq.s32.totalorder %s87, 0
    %s90 = sadd.s32 %s89, 1
    %s91 = scalar_select %p88, %s89, %s90
    %p94 = pneg %p88
    %p95 = scmp.eq.s32.totalorder %s11, 3
    %p96 = por %p94, %p95
    %p97 = scmp.ne.s32.totalorder %s89, %s92
    %p98 = scmp.eq.s32.totalorder %s11, 0
    %p99 = por %p97, %p98
    %p100 = scmp.ne.s32.totalorder %s89, %s92
    %p101 = scmp.eq.s32.totalorder %s16, 3
    %p102 = por %p100, %p101
    %p103 = scmp.ne.s32.totalorder %s92, %s93
    %p104 = scmp.eq.s32.totalorder %s16, 0
    %p105 = por %p103, %p104
    %p106 = scmp.ne.s32.totalorder %s92, %s93
    %p107 = scmp.eq.s32.totalorder %s17, 3
    %p108 = por %p106, %p107
    %p110 = scmp.ne.s32.totalorder %s93, %s109
    %p111 = scmp.eq.s32.totalorder %s17, 0
    %p112 = por %p110, %p111
    %s113 = ssub.s32 %s18, %s30
    %p114 = scmp.eq.s32.totalorder %s113, 0
    %s116 = sadd.s32 %s115, 1
    %s117 = scalar_select %p114, %s115, %s116
    %p120 = pneg %p114
    %p121 = scmp.eq.s32.totalorder %s11, 3
    %p122 = por %p120, %p121
    %p123 = scmp.ne.s32.totalorder %s115, %s118
    %p124 = scmp.eq.s32.totalorder %s11, 0
    %p125 = por %p123, %p124
    %p126 = scmp.ne.s32.totalorder %s115, %s118
    %p127 = scmp.eq.s32.totalorder %s16, 3
    %p128 = por %p126, %p127
    %p129 = scmp.ne.s32.totalorder %s118, %s119
    %p130 = scmp.eq.s32.totalorder %s16, 0
    %p131 = por %p129, %p130
    %p132 = scmp.ne.s32.totalorder %s118, %s119
    %p133 = scmp.eq.s32.totalorder %s17, 3
    %p134 = por %p132, %p133
    %p136 = scmp.ne.s32.totalorder %s119, %s135
    %p137 = scmp.eq.s32.totalorder %s17, 0
    %p138 = por %p136, %p137
    %s139 = ssub.s32 %s18, %s30
    %p140 = scmp.eq.s32.totalorder %s139, 0
    %s142 = sadd.s32 %s141, 1
    %s143 = scalar_select %p140, %s141, %s142
    %p146 = pneg %p140
    %p147 = scmp.eq.s32.totalorder %s11, 3
    %p148 = por %p146, %p147
    %p149 = scmp.ne.s32.totalorder %s141, %s144
    %p150 = scmp.eq.s32.totalorder %s11, 0
    %p151 = por %p149, %p150
    %p152 = scmp.ne.s32.totalorder %s141, %s144
    %p153 = scmp.eq.s32.totalorder %s16, 3
    %p154 = por %p152, %p153
    %p155 = scmp.ne.s32.totalorder %s144, %s145
    %p156 = scmp.eq.s32.totalorder %s16, 0
    %p157 = por %p155, %p156
    %p158 = scmp.ne.s32.totalorder %s144, %s145
    %p159 = scmp.eq.s32.totalorder %s17, 3
    %p160 = por %p158, %p159
    %p162 = scmp.ne.s32.totalorder %s145, %s161
    %p163 = scmp.eq.s32.totalorder %s17, 0
    %p164 = por %p162, %p163
    %p165 = scmp.le.s32.totalorder 1, %s11
    %p166 = scmp.lt.s32.totalorder %s11, 5
    %p167 = pnand %p165, %p166
    %p168 = pneg %p167
    // Predicated region
    $region9: #{generator2d_forward.15} parent=5 // pred_check
      _
    $region10: #{generator2d_forward.15} parent=5 // pred_check_branch
      %170 = sbr.rel (%p167) target = $region12
    $region11: #{generator2d_forward.15} parent=5 // pred_region
      %s171 = ssub.s32 %s11, 1
    $region12: #{generator2d_forward.15} parent=5 // pred_fallthru
      _
    %p172 = scmp.lt.s32.totalorder %s11, 4
    // Predicated region
    $region13: #{generator2d_forward.15} parent=5 // pred_check
      %p173 = pneg %p172
    $region14: #{generator2d_forward.15} parent=5 // pred_check_branch
      %175 = sbr.rel (%p173) target = $region16
    $region15: #{generator2d_forward.15} parent=5 // pred_region
      // Predicated region
      $region17: #{generator2d_forward.15} parent=15 // pred_check
        %p176 = pneg %p45
      $region18: #{generator2d_forward.15} parent=15 // pred_check_branch
        %178 = sbr.rel (%p176) target = $region20
      $region19: #{generator2d_forward.15} parent=15 // pred_region
        %s179 = smul.u32 64, %s19
        %p180 = scmp.lt.s32.totalorder %s18, 3
        %s181 = scalar_select %p180, %s18, 3
        %p182 = scmp.lt.s32.totalorder %s179, 63
        %s183 = scalar_select %p182, %s179, 63
        %s184 = smul.addr %s181, 64
        %s185 = sadd.s32 %s183, %s184
        %s186 = smul.addr %s185, 8
        %s187 = scalar_lea.vmem %s0, %s186
        %s188 = smul.u32 64, %s19
      $region20: #{generator2d_forward.15} parent=15 // pred_fallthru
        _
      // Predicated region
      $region21: #{generator2d_forward.15} parent=15 // pred_check
        %p189 = pneg %p71
      $region22: #{generator2d_forward.15} parent=15 // pred_check_branch
        %191 = sbr.rel (%p189) target = $region24
      $region23: #{generator2d_forward.15} parent=15 // pred_region
        %p192 = scmp.lt.s32.totalorder %s18, 3
        %s193 = scalar_select %p192, %s18, 3
        %s194 = smul.addr %s193, 4
        %s195 = smul.addr %s194, 8
        %s196 = scalar_lea.vmem %s1, %s195
      $region24: #{generator2d_forward.15} parent=15 // pred_fallthru
        _
    $region16: #{generator2d_forward.15} parent=5 // pred_fallthru
      _
    %p197 = scmp.le.s32.totalorder 1, %s11
    %p198 = scmp.lt.s32.totalorder %s11, 5
    %p199 = pnand %p197, %p198
    %p200 = pneg %p199
    // Predicated region
    $region25: #{generator2d_forward.15} parent=5 // pred_check
      _
    $region26: #{generator2d_forward.15} parent=5 // pred_check_branch
      %202 = sbr.rel (%p199) target = $region28
    $region27: #{generator2d_forward.15} parent=5 // pred_region
      %s203 = ssub.s32 %s11, 1
      %s204 = smul.u32 64, %s21
      %p205 = scmp.lt.s32.totalorder %s20, 3
      %s206 = scalar_select %p205, %s20, 3
      %p207 = scmp.lt.s32.totalorder %s204, 63
      %s208 = scalar_select %p207, %s204, 63
      %s209 = smul.addr %s206, 64
      %s210 = sadd.s32 %s208, %s209
      %s211 = smul.addr %s210, 8
      %s212 = scalar_lea.vmem %s0, %s211
      %p213 = pneg %p51
      %p214 = pneg %p48
      %p215 = scmp.lt.s32.totalorder %s20, 3
      %s216 = scalar_select %p215, %s20, 3
      %s217 = smul.addr %s216, 4
      %s218 = smul.addr %s217, 8
      %s219 = scalar_lea.vmem %s1, %s218
      %p220 = pneg %p77
      %p221 = pneg %p74
      %p222 = pneg %p105
      %p223 = pneg %p102
      %s224 = smul.u32 64, %s21
      %p225 = scmp.lt.s32.totalorder %s20, 3
      %s226 = scalar_select %p225, %s20, 3
      %p227 = scmp.lt.s32.totalorder %s224, 63
      %s228 = scalar_select %p227, %s224, 63
      %s229 = smul.addr %s226, 64
      %s230 = sadd.s32 %s228, %s229
      %s231 = smul.addr %s230, 8
      %s232 = scalar_lea.vmem %s2, %s231
      %p233 = pneg %p131
      %p234 = pneg %p128
      %p235 = scmp.lt.s32.totalorder %s20, 3
      %s236 = scalar_select %p235, %s20, 3
      %s237 = smul.addr %s236, 8
      %s238 = scalar_lea.vmem %s3, %s237
      %p239 = pneg %p157
      %p240 = pneg %p154
      %p241 = scmp.lt.s32.totalorder %s20, 3
      %s242 = scalar_select %p241, %s20, 3
      %s243 = smul.addr %s242, 8
      %s244 = scalar_lea.vmem %s4, %s243
      %s245 = smul.u32 64, %s21
      %p246 = scmp.lt.s32.totalorder %s20, 3
      %s247 = scalar_select %p246, %s20, 3
      %p248 = scmp.lt.s32.totalorder %s245, 63
      %s249 = scalar_select %p248, %s245, 63
      %s250 = smul.addr %s247, 64
      %s251 = sadd.s32 %s249, %s250
      %s252 = smul.addr %s251, 8
      %s253 = scalar_lea.vmem %s0, %s252
      %s254 = smul.u32 64, %s21
      %p255 = scmp.lt.s32.totalorder %s20, 3
      %s256 = scalar_select %p255, %s20, 3
      %s257 = smul.addr %s256, 4
      %s258 = smul.addr %s257, 8
      %s259 = scalar_lea.vmem %s1, %s258
      %s260 = smul.u32 64, %s21
      %p261 = scmp.lt.s32.totalorder %s20, 3
      %s262 = scalar_select %p261, %s20, 3
      %p263 = scmp.lt.s32.totalorder %s260, 63
      %s264 = scalar_select %p263, %s260, 63
      %s265 = smul.addr %s262, 64
      %s266 = sadd.s32 %s264, %s265
      %s267 = smul.addr %s266, 8
      %s268 = scalar_lea.vmem %s2, %s267
      %s269 = smul.u32 64, %s21
      %p270 = scmp.lt.s32.totalorder %s20, 3
      %s271 = scalar_select %p270, %s20, 3
      %s272 = smul.addr %s271, 8
      %s273 = scalar_lea.vmem %s3, %s272
      %p274 = scmp.lt.s32.totalorder %s20, 3
      %s275 = scalar_select %p274, %s20, 3
      %s276 = smul.addr %s275, 8
      %s277 = scalar_lea.vmem %s4, %s276
      %p278 = scmp.eq.s32.totalorder %s21, 0
      // Predicated region
      $region29: #{generator2d_forward.15} parent=27 // pred_check
        %p279 = pneg %p278
      $region30: #{generator2d_forward.15} parent=27 // pred_check_branch
        %281 = sbr.rel (%p279) target = $region32
      $region31: #{generator2d_forward.15} parent=27 // pred_region
        %282 = vst [vmem:[%s273] sm:$0xff] 0.0
        %283 = vst [vmem:[%s277] sm:$0xff] 0.0
      $region32: #{generator2d_forward.15} parent=27 // pred_fallthru
        _
      %v284 = vld [vmem:[%s253] sm:$0xff]
      %v285 = vld [vmem:[%s253 + $0x8] sm:$0xff]
      %v286 = vld [vmem:[%s253 + $0x10] sm:$0xff]
      %v287 = vld [vmem:[%s253 + $0x18] sm:$0xff]
      %v288 = vld [vmem:[%s253 + $0x20] sm:$0xff]
      %v289 = vld [vmem:[%s253 + $0x28] sm:$0xff]
      %v290 = vld [vmem:[%s253 + $0x30] sm:$0xff]
      %v291 = vld [vmem:[%s253 + $0x38] sm:$0xff]
      %v292 = vld [vmem:[%s253 + $0x40] sm:$0xff]
      %v293 = vld [vmem:[%s253 + $0x48] sm:$0xff]
      %v294 = vld [vmem:[%s253 + $0x50] sm:$0xff]
      %v295 = vld [vmem:[%s253 + $0x58] sm:$0xff]
      %v296 = vld [vmem:[%s253 + $0x60] sm:$0xff]
      %v297 = vld [vmem:[%s253 + $0x68] sm:$0xff]
      %v298 = vld [vmem:[%s253 + $0x70] sm:$0xff]
      %v299 = vld [vmem:[%s253 + $0x78] sm:$0xff]
      %v300 = vld [vmem:[%s253 + $0x80] sm:$0xff]
      %v301 = vld [vmem:[%s253 + $0x88] sm:$0xff]
      %v302 = vld [vmem:[%s253 + $0x90] sm:$0xff]
      %v303 = vld [vmem:[%s253 + $0x98] sm:$0xff]
      %v304 = vld [vmem:[%s253 + $0xa0] sm:$0xff]
      %v305 = vld [vmem:[%s253 + $0xa8] sm:$0xff]
      %v306 = vld [vmem:[%s253 + $0xb0] sm:$0xff]
      %v307 = vld [vmem:[%s253 + $0xb8] sm:$0xff]
      %v308 = vld [vmem:[%s253 + $0xc0] sm:$0xff]
      %v309 = vld [vmem:[%s253 + $0xc8] sm:$0xff]
      %v310 = vld [vmem:[%s253 + $0xd0] sm:$0xff]
      %v311 = vld [vmem:[%s253 + $0xd8] sm:$0xff]
      %v312 = vld [vmem:[%s253 + $0xe0] sm:$0xff]
      %v313 = vld [vmem:[%s253 + $0xe8] sm:$0xff]
      %v314 = vld [vmem:[%s253 + $0xf0] sm:$0xff]
      %v315 = vld [vmem:[%s253 + $0xf8] sm:$0xff]
      %v316 = vld [vmem:[%s253 + $0x100] sm:$0xff]
      %v317 = vld [vmem:[%s253 + $0x108] sm:$0xff]
      %v318 = vld [vmem:[%s253 + $0x110] sm:$0xff]
      %v319 = vld [vmem:[%s253 + $0x118] sm:$0xff]
      %v320 = vld [vmem:[%s253 + $0x120] sm:$0xff]
      %v321 = vld [vmem:[%s253 + $0x128] sm:$0xff]
      %v322 = vld [vmem:[%s253 + $0x130] sm:$0xff]
      %v323 = vld [vmem:[%s253 + $0x138] sm:$0xff]
      %v324 = vld [vmem:[%s253 + $0x140] sm:$0xff]
      %v325 = vld [vmem:[%s253 + $0x148] sm:$0xff]
      %v326 = vld [vmem:[%s253 + $0x150] sm:$0xff]
      %v327 = vld [vmem:[%s253 + $0x158] sm:$0xff]
      %v328 = vld [vmem:[%s253 + $0x160] sm:$0xff]
      %v329 = vld [vmem:[%s253 + $0x168] sm:$0xff]
      %v330 = vld [vmem:[%s253 + $0x170] sm:$0xff]
      %v331 = vld [vmem:[%s253 + $0x178] sm:$0xff]
      %v332 = vld [vmem:[%s253 + $0x180] sm:$0xff]
      %v333 = vld [vmem:[%s253 + $0x188] sm:$0xff]
      %v334 = vld [vmem:[%s253 + $0x190] sm:$0xff]
      %v335 = vld [vmem:[%s253 + $0x198] sm:$0xff]
      %v336 = vld [vmem:[%s253 + $0x1a0] sm:$0xff]
      %v337 = vld [vmem:[%s253 + $0x1a8] sm:$0xff]
      %v338 = vld [vmem:[%s253 + $0x1b0] sm:$0xff]
      %v339 = vld [vmem:[%s253 + $0x1b8] sm:$0xff]
      %v340 = vld [vmem:[%s253 + $0x1c0] sm:$0xff]
      %v341 = vld [vmem:[%s253 + $0x1c8] sm:$0xff]
      %v342 = vld [vmem:[%s253 + $0x1d0] sm:$0xff]
      %v343 = vld [vmem:[%s253 + $0x1d8] sm:$0xff]
      %v344 = vld [vmem:[%s253 + $0x1e0] sm:$0xff]
      %v345 = vld [vmem:[%s253 + $0x1e8] sm:$0xff]
      %v346 = vld [vmem:[%s253 + $0x1f0] sm:$0xff]
      %v347 = vld [vmem:[%s253 + $0x1f8] sm:$0xff]
      %v348 = vld [vmem:[%s259] sm:$0xff]
      %v349 = vld [vmem:[%s259 + $0x8] sm:$0xff]
      %v350 = vld [vmem:[%s259 + $0x10] sm:$0xff]
      %v351 = vld [vmem:[%s259 + $0x18] sm:$0xff]
      %vm352 = vcmask 261120
      %v354 = vsel %vm352, %v284, 0
      %v357 = vsel %vm352, %v285, 0
      %v360 = vsel %vm352, %v286, 0
      %v363 = vsel %vm352, %v287, 0
      %v366 = vsel %vm352, %v288, 0
      %v369 = vsel %vm352, %v289, 0
      %v372 = vsel %vm352, %v290, 0
      %v375 = vsel %vm352, %v291, 0
      %v378 = vsel %vm352, %v292, 0
      %v381 = vsel %vm352, %v293, 0
      %v384 = vsel %vm352, %v294, 0
      %v387 = vsel %vm352, %v295, 0
      %v390 = vsel %vm352, %v296, 0
      %v393 = vsel %vm352, %v297, 0
      %v396 = vsel %vm352, %v298, 0
      %v399 = vsel %vm352, %v299, 0
      %v402 = vsel %vm352, %v300, 0
      %v405 = vsel %vm352, %v301, 0
      %v408 = vsel %vm352, %v302, 0
      %v411 = vsel %vm352, %v303, 0
      %v414 = vsel %vm352, %v304, 0
      %v417 = vsel %vm352, %v305, 0
      %v420 = vsel %vm352, %v306, 0
      %v423 = vsel %vm352, %v307, 0
      %v426 = vsel %vm352, %v308, 0
      %v429 = vsel %vm352, %v309, 0
      %v432 = vsel %vm352, %v310, 0
      %v435 = vsel %vm352, %v311, 0
      %v438 = vsel %vm352, %v312, 0
      %v441 = vsel %vm352, %v313, 0
      %v444 = vsel %vm352, %v314, 0
      %v447 = vsel %vm352, %v315, 0
      %v450 = vsel %vm352, %v316, 0
      %v453 = vsel %vm352, %v317, 0
      %v456 = vsel %vm352, %v318, 0
      %v459 = vsel %vm352, %v319, 0
      %v462 = vsel %vm352, %v320, 0
      %v465 = vsel %vm352, %v321, 0
      %v468 = vsel %vm352, %v322, 0
      %v471 = vsel %vm352, %v323, 0
      %v474 = vsel %vm352, %v324, 0
      %v477 = vsel %vm352, %v325, 0
      %v480 = vsel %vm352, %v326, 0
      %v483 = vsel %vm352, %v327, 0
      %v486 = vsel %vm352, %v328, 0
      %v489 = vsel %vm352, %v329, 0
      %v492 = vsel %vm352, %v330, 0
      %v495 = vsel %vm352, %v331, 0
      %v498 = vsel %vm352, %v332, 0
      %v501 = vsel %vm352, %v333, 0
      %v504 = vsel %vm352, %v334, 0
      %v507 = vsel %vm352, %v335, 0
      %v510 = vsel %vm352, %v336, 0
      %v513 = vsel %vm352, %v337, 0
      %v516 = vsel %vm352, %v338, 0
      %v519 = vsel %vm352, %v339, 0
      %v522 = vsel %vm352, %v340, 0
      %v525 = vsel %vm352, %v341, 0
      %v528 = vsel %vm352, %v342, 0
      %v531 = vsel %vm352, %v343, 0
      %v534 = vsel %vm352, %v344, 0
      %v537 = vsel %vm352, %v345, 0
      %v540 = vsel %vm352, %v346, 0
      %v543 = vsel %vm352, %v347, 0
      %545 = vmatprep.subr.mxu0 0.0
      %546 = vmatpush1.msra.mxu0 0.0
      %547 = vmatprep.subr.mxu0 0.0
      %548 = vmatpush1.msra.mxu0 0.0
      %549 = vmatprep.subr.mxu0 0.0
      %550 = vmatpush1.msra.mxu0 0.0
      %551 = vmatprep.subr.mxu0 0.0
      %552 = vmatpush1.msra.mxu0 0.0
      %553 = vmatprep.subr.mxu0 0.0
      %554 = vmatpush1.msra.mxu0 0.0
      %555 = vmatprep.subr.mxu0 0.0
      %556 = vmatpush1.msra.mxu0 0.0
      %557 = vmatprep.subr.mxu0 0.0
      %558 = vmatpush1.msra.mxu0 0.0
      %559 = vmatprep.subr.mxu0 0.0
      %560 = vmatpush1.msra.mxu0 0.0
      %561 = vmatprep.subr.mxu0 0.0
      %562 = vmatpush1.msra.mxu0 0.0
      %563 = vmatprep.subr.mxu0 0.0
      %564 = vmatpush1.msra.mxu0 0.0
      %565 = vmatprep.subr.mxu0 0.0
      %566 = vmatpush1.msra.mxu0 0.0
      %567 = vmatprep.subr.mxu0 0.0
      %568 = vmatpush1.msra.mxu0 0.0
      %569 = vmatprep.subr.mxu0 0.0
      %570 = vmatpush1.msra.mxu0 %v351
      %571 = vmatprep.subr.mxu0 0.0
      %572 = vmatpush1.msra.mxu0 %v350
      %573 = vmatprep.subr.mxu0 0.0
      %574 = vmatpush1.msra.mxu0 %v349
      %575 = vmatprep.subr.mxu0 0.0
      %576 = vmatpush1.msra.mxu0 %v348
      %577 = vmatprep.subr.mxu0 0.0
      %578 = vmatpush2.msra.mxu0 0.0
      %579 = vmatprep.subr.mxu0 0.0
      %580 = vmatpush2.msra.mxu0 0.0
      %581 = vmatprep.subr.mxu0 0.0
      %582 = vmatpush2.msra.mxu0 0.0
      %583 = vmatprep.subr.mxu0 0.0
      %584 = vmatpush2.msra.mxu0 0.0
      %585 = vmatprep.subr.mxu0 0.0
      %586 = vmatpush2.msra.mxu0 0.0
      %587 = vmatprep.subr.mxu0 0.0
      %588 = vmatpush2.msra.mxu0 0.0
      %589 = vmatprep.subr.mxu0 0.0
      %590 = vmatpush2.msra.mxu0 0.0
      %591 = vmatprep.subr.mxu0 0.0
      %592 = vmatpush2.msra.mxu0 0.0
      %593 = vmatprep.subr.mxu0 0.0
      %594 = vmatpush2.msra.mxu0 0.0
      %595 = vmatprep.subr.mxu0 0.0
      %596 = vmatpush2.msra.mxu0 0.0
      %597 = vmatprep.subr.mxu0 0.0
      %598 = vmatpush2.msra.mxu0 0.0
      %599 = vmatprep.subr.mxu0 0.0
      %600 = vmatpush2.msra.mxu0 0.0
      %601 = vmatprep.subr.mxu0 0.0
      %602 = vmatpush2.msra.mxu0 0.0
      %603 = vmatprep.subr.mxu0 0.0
      %604 = vmatpush2.msra.mxu0 0.0
      %605 = vmatprep.subr.mxu0 0.0
      %606 = vmatpush2.msra.mxu0 0.0
      %607 = vmatprep.subr.mxu0 0.0
      %608 = vmatpush2.msra.mxu0 0.0
      %609 = vmatprep.mubr.f32.mxu0 0.0
      %610 = vmatmul.mubr.f32.gmra.mxu0 %v354
      %v611 = vpop.f32.mrf.mxu0
      %v612 = vadd.f32 0.0, %v611
      %v613 = vpop.f32.mrf.mxu0
      %614 = vmatprep.mubr.f32.mxu0 0.0
      %615 = vmatmul.mubr.f32.gmra.mxu0 %v357
      %v616 = vpop.f32.mrf.mxu0
      %v617 = vadd.f32 0.0, %v616
      %v618 = vpop.f32.mrf.mxu0
      %619 = vmatprep.mubr.f32.mxu0 0.0
      %620 = vmatmul.mubr.f32.gmra.mxu0 %v360
      %v621 = vpop.f32.mrf.mxu0
      %v622 = vadd.f32 0.0, %v621
      %v623 = vpop.f32.mrf.mxu0
      %624 = vmatprep.mubr.f32.mxu0 0.0
      %625 = vmatmul.mubr.f32.gmra.mxu0 %v363
      %v626 = vpop.f32.mrf.mxu0
      %v627 = vadd.f32 0.0, %v626
      %v628 = vpop.f32.mrf.mxu0
      %629 = vmatprep.mubr.f32.mxu0 0.0
      %630 = vmatmul.mubr.f32.gmra.mxu0 %v366
      %v631 = vpop.f32.mrf.mxu0
      %v632 = vadd.f32 0.0, %v631
      %v633 = vpop.f32.mrf.mxu0
      %634 = vmatprep.mubr.f32.mxu0 0.0
      %635 = vmatmul.mubr.f32.gmra.mxu0 %v369
      %v636 = vpop.f32.mrf.mxu0
      %v637 = vadd.f32 0.0, %v636
      %v638 = vpop.f32.mrf.mxu0
      %639 = vmatprep.mubr.f32.mxu0 0.0
      %640 = vmatmul.mubr.f32.gmra.mxu0 %v372
      %v641 = vpop.f32.mrf.mxu0
      %v642 = vadd.f32 0.0, %v641
      %v643 = vpop.f32.mrf.mxu0
      %644 = vmatprep.mubr.f32.mxu0 0.0
      %645 = vmatmul.mubr.f32.gmra.mxu0 %v375
      %v646 = vpop.f32.mrf.mxu0
      %v647 = vadd.f32 0.0, %v646
      %v648 = vpop.f32.mrf.mxu0
      %649 = vmatprep.mubr.f32.mxu0 0.0
      %650 = vmatmul.mubr.f32.gmra.mxu0 %v378
      %v651 = vpop.f32.mrf.mxu0
      %v652 = vadd.f32 0.0, %v651
      %v653 = vpop.f32.mrf.mxu0
      %654 = vmatprep.mubr.f32.mxu0 0.0
      %655 = vmatmul.mubr.f32.gmra.mxu0 %v381
      %v656 = vpop.f32.mrf.mxu0
      %v657 = vadd.f32 0.0, %v656
      %v658 = vpop.f32.mrf.mxu0
      %659 = vmatprep.mubr.f32.mxu0 0.0
      %660 = vmatmul.mubr.f32.gmra.mxu0 %v384
      %v661 = vpop.f32.mrf.mxu0
      %v662 = vadd.f32 0.0, %v661
      %v663 = vpop.f32.mrf.mxu0
      %664 = vmatprep.mubr.f32.mxu0 0.0
      %665 = vmatmul.mubr.f32.gmra.mxu0 %v387
      %v666 = vpop.f32.mrf.mxu0
      %v667 = vadd.f32 0.0, %v666
      %v668 = vpop.f32.mrf.mxu0
      %669 = vmatprep.mubr.f32.mxu0 0.0
      %670 = vmatmul.mubr.f32.gmra.mxu0 %v390
      %v671 = vpop.f32.mrf.mxu0
      %v672 = vadd.f32 0.0, %v671
      %v673 = vpop.f32.mrf.mxu0
      %674 = vmatprep.mubr.f32.mxu0 0.0
      %675 = vmatmul.mubr.f32.gmra.mxu0 %v393
      %v676 = vpop.f32.mrf.mxu0
      %v677 = vadd.f32 0.0, %v676
      %v678 = vpop.f32.mrf.mxu0
      %679 = vmatprep.mubr.f32.mxu0 0.0
      %680 = vmatmul.mubr.f32.gmra.mxu0 %v396
      %v681 = vpop.f32.mrf.mxu0
      %v682 = vadd.f32 0.0, %v681
      %v683 = vpop.f32.mrf.mxu0
      %684 = vmatprep.mubr.f32.mxu0 0.0
      %685 = vmatmul.mubr.f32.gmra.mxu0 %v399
      %v686 = vpop.f32.mrf.mxu0
      %v687 = vadd.f32 0.0, %v686
      %v688 = vpop.f32.mrf.mxu0
      %689 = vmatprep.mubr.f32.mxu0 0.0
      %690 = vmatmul.mubr.f32.gmra.mxu0 %v402
      %v691 = vpop.f32.mrf.mxu0
      %v692 = vadd.f32 0.0, %v691
      %v693 = vpop.f32.mrf.mxu0
      %694 = vmatprep.mubr.f32.mxu0 0.0
      %695 = vmatmul.mubr.f32.gmra.mxu0 %v405
      %v696 = vpop.f32.mrf.mxu0
      %v697 = vadd.f32 0.0, %v696
      %v698 = vpop.f32.mrf.mxu0
      %699 = vmatprep.mubr.f32.mxu0 0.0
      %700 = vmatmul.mubr.f32.gmra.mxu0 %v408
      %v701 = vpop.f32.mrf.mxu0
      %v702 = vadd.f32 0.0, %v701
      %v703 = vpop.f32.mrf.mxu0
      %704 = vmatprep.mubr.f32.mxu0 0.0
      %705 = vmatmul.mubr.f32.gmra.mxu0 %v411
      %v706 = vpop.f32.mrf.mxu0
      %v707 = vadd.f32 0.0, %v706
      %v708 = vpop.f32.mrf.mxu0
      %709 = vmatprep.mubr.f32.mxu0 0.0
      %710 = vmatmul.mubr.f32.gmra.mxu0 %v414
      %v711 = vpop.f32.mrf.mxu0
      %v712 = vadd.f32 0.0, %v711
      %v713 = vpop.f32.mrf.mxu0
      %714 = vmatprep.mubr.f32.mxu0 0.0
      %715 = vmatmul.mubr.f32.gmra.mxu0 %v417
      %v716 = vpop.f32.mrf.mxu0
      %v717 = vadd.f32 0.0, %v716
      %v718 = vpop.f32.mrf.mxu0
      %719 = vmatprep.mubr.f32.mxu0 0.0
      %720 = vmatmul.mubr.f32.gmra.mxu0 %v420
      %v721 = vpop.f32.mrf.mxu0
      %v722 = vadd.f32 0.0, %v721
      %v723 = vpop.f32.mrf.mxu0
      %724 = vmatprep.mubr.f32.mxu0 0.0
      %725 = vmatmul.mubr.f32.gmra.mxu0 %v423
      %v726 = vpop.f32.mrf.mxu0
      %v727 = vadd.f32 0.0, %v726
      %v728 = vpop.f32.mrf.mxu0
      %729 = vmatprep.mubr.f32.mxu0 0.0
      %730 = vmatmul.mubr.f32.gmra.mxu0 %v426
      %v731 = vpop.f32.mrf.mxu0
      %v732 = vadd.f32 0.0, %v731
      %v733 = vpop.f32.mrf.mxu0
      %734 = vmatprep.mubr.f32.mxu0 0.0
      %735 = vmatmul.mubr.f32.gmra.mxu0 %v429
      %v736 = vpop.f32.mrf.mxu0
      %v737 = vadd.f32 0.0, %v736
      %v738 = vpop.f32.mrf.mxu0
      %739 = vmatprep.mubr.f32.mxu0 0.0
      %740 = vmatmul.mubr.f32.gmra.mxu0 %v432
      %v741 = vpop.f32.mrf.mxu0
      %v742 = vadd.f32 0.0, %v741
      %v743 = vpop.f32.mrf.mxu0
      %744 = vmatprep.mubr.f32.mxu0 0.0
      %745 = vmatmul.mubr.f32.gmra.mxu0 %v435
      %v746 = vpop.f32.mrf.mxu0
      %v747 = vadd.f32 0.0, %v746
      %v748 = vpop.f32.mrf.mxu0
      %749 = vmatprep.mubr.f32.mxu0 0.0
      %750 = vmatmul.mubr.f32.gmra.mxu0 %v438
      %v751 = vpop.f32.mrf.mxu0
      %v752 = vadd.f32 0.0, %v751
      %v753 = vpop.f32.mrf.mxu0
      %754 = vmatprep.mubr.f32.mxu0 0.0
      %755 = vmatmul.mubr.f32.gmra.mxu0 %v441
      %v756 = vpop.f32.mrf.mxu0
      %v757 = vadd.f32 0.0, %v756
      %v758 = vpop.f32.mrf.mxu0
      %759 = vmatprep.mubr.f32.mxu0 0.0
      %760 = vmatmul.mubr.f32.gmra.mxu0 %v444
      %v761 = vpop.f32.mrf.mxu0
      %v762 = vadd.f32 0.0, %v761
      %v763 = vpop.f32.mrf.mxu0
      %764 = vmatprep.mubr.f32.mxu0 0.0
      %765 = vmatmul.mubr.f32.gmra.mxu0 %v447
      %v766 = vpop.f32.mrf.mxu0
      %v767 = vadd.f32 0.0, %v766
      %v768 = vpop.f32.mrf.mxu0
      %769 = vmatprep.mubr.f32.mxu0 0.0
      %770 = vmatmul.mubr.f32.gmra.mxu0 %v450
      %v771 = vpop.f32.mrf.mxu0
      %v772 = vadd.f32 0.0, %v771
      %v773 = vpop.f32.mrf.mxu0
      %774 = vmatprep.mubr.f32.mxu0 0.0
      %775 = vmatmul.mubr.f32.gmra.mxu0 %v453
      %v776 = vpop.f32.mrf.mxu0
      %v777 = vadd.f32 0.0, %v776
      %v778 = vpop.f32.mrf.mxu0
      %779 = vmatprep.mubr.f32.mxu0 0.0
      %780 = vmatmul.mubr.f32.gmra.mxu0 %v456
      %v781 = vpop.f32.mrf.mxu0
      %v782 = vadd.f32 0.0, %v781
      %v783 = vpop.f32.mrf.mxu0
      %784 = vmatprep.mubr.f32.mxu0 0.0
      %785 = vmatmul.mubr.f32.gmra.mxu0 %v459
      %v786 = vpop.f32.mrf.mxu0
      %v787 = vadd.f32 0.0, %v786
      %v788 = vpop.f32.mrf.mxu0
      %789 = vmatprep.mubr.f32.mxu0 0.0
      %790 = vmatmul.mubr.f32.gmra.mxu0 %v462
      %v791 = vpop.f32.mrf.mxu0
      %v792 = vadd.f32 0.0, %v791
      %v793 = vpop.f32.mrf.mxu0
      %794 = vmatprep.mubr.f32.mxu0 0.0
      %795 = vmatmul.mubr.f32.gmra.mxu0 %v465
      %v796 = vpop.f32.mrf.mxu0
      %v797 = vadd.f32 0.0, %v796
      %v798 = vpop.f32.mrf.mxu0
      %799 = vmatprep.mubr.f32.mxu0 0.0
      %800 = vmatmul.mubr.f32.gmra.mxu0 %v468
      %v801 = vpop.f32.mrf.mxu0
      %v802 = vadd.f32 0.0, %v801
      %v803 = vpop.f32.mrf.mxu0
      %804 = vmatprep.mubr.f32.mxu0 0.0
      %805 = vmatmul.mubr.f32.gmra.mxu0 %v471
      %v806 = vpop.f32.mrf.mxu0
      %v807 = vadd.f32 0.0, %v806
      %v808 = vpop.f32.mrf.mxu0
      %809 = vmatprep.mubr.f32.mxu0 0.0
      %810 = vmatmul.mubr.f32.gmra.mxu0 %v474
      %v811 = vpop.f32.mrf.mxu0
      %v812 = vadd.f32 0.0, %v811
      %v813 = vpop.f32.mrf.mxu0
      %814 = vmatprep.mubr.f32.mxu0 0.0
      %815 = vmatmul.mubr.f32.gmra.mxu0 %v477
      %v816 = vpop.f32.mrf.mxu0
      %v817 = vadd.f32 0.0, %v816
      %v818 = vpop.f32.mrf.mxu0
      %819 = vmatprep.mubr.f32.mxu0 0.0
      %820 = vmatmul.mubr.f32.gmra.mxu0 %v480
      %v821 = vpop.f32.mrf.mxu0
      %v822 = vadd.f32 0.0, %v821
      %v823 = vpop.f32.mrf.mxu0
      %824 = vmatprep.mubr.f32.mxu0 0.0
      %825 = vmatmul.mubr.f32.gmra.mxu0 %v483
      %v826 = vpop.f32.mrf.mxu0
      %v827 = vadd.f32 0.0, %v826
      %v828 = vpop.f32.mrf.mxu0
      %829 = vmatprep.mubr.f32.mxu0 0.0
      %830 = vmatmul.mubr.f32.gmra.mxu0 %v486
      %v831 = vpop.f32.mrf.mxu0
      %v832 = vadd.f32 0.0, %v831
      %v833 = vpop.f32.mrf.mxu0
      %834 = vmatprep.mubr.f32.mxu0 0.0
      %835 = vmatmul.mubr.f32.gmra.mxu0 %v489
      %v836 = vpop.f32.mrf.mxu0
      %v837 = vadd.f32 0.0, %v836
      %v838 = vpop.f32.mrf.mxu0
      %839 = vmatprep.mubr.f32.mxu0 0.0
      %840 = vmatmul.mubr.f32.gmra.mxu0 %v492
      %v841 = vpop.f32.mrf.mxu0
      %v842 = vadd.f32 0.0, %v841
      %v843 = vpop.f32.mrf.mxu0
      %844 = vmatprep.mubr.f32.mxu0 0.0
      %845 = vmatmul.mubr.f32.gmra.mxu0 %v495
      %v846 = vpop.f32.mrf.mxu0
      %v847 = vadd.f32 0.0, %v846
      %v848 = vpop.f32.mrf.mxu0
      %849 = vmatprep.mubr.f32.mxu0 0.0
      %850 = vmatmul.mubr.f32.gmra.mxu0 %v498
      %v851 = vpop.f32.mrf.mxu0
      %v852 = vadd.f32 0.0, %v851
      %v853 = vpop.f32.mrf.mxu0
      %854 = vmatprep.mubr.f32.mxu0 0.0
      %855 = vmatmul.mubr.f32.gmra.mxu0 %v501
      %v856 = vpop.f32.mrf.mxu0
      %v857 = vadd.f32 0.0, %v856
      %v858 = vpop.f32.mrf.mxu0
      %859 = vmatprep.mubr.f32.mxu0 0.0
      %860 = vmatmul.mubr.f32.gmra.mxu0 %v504
      %v861 = vpop.f32.mrf.mxu0
      %v862 = vadd.f32 0.0, %v861
      %v863 = vpop.f32.mrf.mxu0
      %864 = vmatprep.mubr.f32.mxu0 0.0
      %865 = vmatmul.mubr.f32.gmra.mxu0 %v507
      %v866 = vpop.f32.mrf.mxu0
      %v867 = vadd.f32 0.0, %v866
      %v868 = vpop.f32.mrf.mxu0
      %869 = vmatprep.mubr.f32.mxu0 0.0
      %870 = vmatmul.mubr.f32.gmra.mxu0 %v510
      %v871 = vpop.f32.mrf.mxu0
      %v872 = vadd.f32 0.0, %v871
      %v873 = vpop.f32.mrf.mxu0
      %874 = vmatprep.mubr.f32.mxu0 0.0
      %875 = vmatmul.mubr.f32.gmra.mxu0 %v513
      %v876 = vpop.f32.mrf.mxu0
      %v877 = vadd.f32 0.0, %v876
      %v878 = vpop.f32.mrf.mxu0
      %879 = vmatprep.mubr.f32.mxu0 0.0
      %880 = vmatmul.mubr.f32.gmra.mxu0 %v516
      %v881 = vpop.f32.mrf.mxu0
      %v882 = vadd.f32 0.0, %v881
      %v883 = vpop.f32.mrf.mxu0
      %884 = vmatprep.mubr.f32.mxu0 0.0
      %885 = vmatmul.mubr.f32.gmra.mxu0 %v519
      %v886 = vpop.f32.mrf.mxu0
      %v887 = vadd.f32 0.0, %v886
      %v888 = vpop.f32.mrf.mxu0
      %889 = vmatprep.mubr.f32.mxu0 0.0
      %890 = vmatmul.mubr.f32.gmra.mxu0 %v522
      %v891 = vpop.f32.mrf.mxu0
      %v892 = vadd.f32 0.0, %v891
      %v893 = vpop.f32.mrf.mxu0
      %894 = vmatprep.mubr.f32.mxu0 0.0
      %895 = vmatmul.mubr.f32.gmra.mxu0 %v525
      %v896 = vpop.f32.mrf.mxu0
      %v897 = vadd.f32 0.0, %v896
      %v898 = vpop.f32.mrf.mxu0
      %899 = vmatprep.mubr.f32.mxu0 0.0
      %900 = vmatmul.mubr.f32.gmra.mxu0 %v528
      %v901 = vpop.f32.mrf.mxu0
      %v902 = vadd.f32 0.0, %v901
      %v903 = vpop.f32.mrf.mxu0
      %904 = vmatprep.mubr.f32.mxu0 0.0
      %905 = vmatmul.mubr.f32.gmra.mxu0 %v531
      %v906 = vpop.f32.mrf.mxu0
      %v907 = vadd.f32 0.0, %v906
      %v908 = vpop.f32.mrf.mxu0
      %909 = vmatprep.mubr.f32.mxu0 0.0
      %910 = vmatmul.mubr.f32.gmra.mxu0 %v534
      %v911 = vpop.f32.mrf.mxu0
      %v912 = vadd.f32 0.0, %v911
      %v913 = vpop.f32.mrf.mxu0
      %914 = vmatprep.mubr.f32.mxu0 0.0
      %915 = vmatmul.mubr.f32.gmra.mxu0 %v537
      %v916 = vpop.f32.mrf.mxu0
      %v917 = vadd.f32 0.0, %v916
      %v918 = vpop.f32.mrf.mxu0
      %919 = vmatprep.mubr.f32.mxu0 0.0
      %920 = vmatmul.mubr.f32.gmra.mxu0 %v540
      %v921 = vpop.f32.mrf.mxu0
      %v922 = vadd.f32 0.0, %v921
      %v923 = vpop.f32.mrf.mxu0
      %924 = vmatprep.mubr.f32.mxu0 0.0
      %925 = vmatmul.mubr.f32.gmra.mxu0 %v543
      %v926 = vpop.f32.mrf.mxu0
      %v927 = vadd.f32 0.0, %v926
      %v928 = vpop.f32.mrf.mxu0
      %929 = vdwg.mxu0
      %930 = vst [vmem:[%s268] sm:$0xff] %v612
      %931 = vst [vmem:[%s268 + $0x8] sm:$0xff] %v617
      %932 = vst [vmem:[%s268 + $0x10] sm:$0xff] %v622
      %933 = vst [vmem:[%s268 + $0x18] sm:$0xff] %v627
      %934 = vst [vmem:[%s268 + $0x20] sm:$0xff] %v632
      %935 = vst [vmem:[%s268 + $0x28] sm:$0xff] %v637
      %936 = vst [vmem:[%s268 + $0x30] sm:$0xff] %v642
      %937 = vst [vmem:[%s268 + $0x38] sm:$0xff] %v647
      %938 = vst [vmem:[%s268 + $0x40] sm:$0xff] %v652
      %939 = vst [vmem:[%s268 + $0x48] sm:$0xff] %v657
      %940 = vst [vmem:[%s268 + $0x50] sm:$0xff] %v662
      %941 = vst [vmem:[%s268 + $0x58] sm:$0xff] %v667
      %942 = vst [vmem:[%s268 + $0x60] sm:$0xff] %v672
      %943 = vst [vmem:[%s268 + $0x68] sm:$0xff] %v677
      %944 = vst [vmem:[%s268 + $0x70] sm:$0xff] %v682
      %945 = vst [vmem:[%s268 + $0x78] sm:$0xff] %v687
      %946 = vst [vmem:[%s268 + $0x80] sm:$0xff] %v692
      %947 = vst [vmem:[%s268 + $0x88] sm:$0xff] %v697
      %948 = vst [vmem:[%s268 + $0x90] sm:$0xff] %v702
      %949 = vst [vmem:[%s268 + $0x98] sm:$0xff] %v707
      %950 = vst [vmem:[%s268 + $0xa0] sm:$0xff] %v712
      %951 = vst [vmem:[%s268 + $0xa8] sm:$0xff] %v717
      %952 = vst [vmem:[%s268 + $0xb0] sm:$0xff] %v722
      %953 = vst [vmem:[%s268 + $0xb8] sm:$0xff] %v727
      %954 = vst [vmem:[%s268 + $0xc0] sm:$0xff] %v732
      %955 = vst [vmem:[%s268 + $0xc8] sm:$0xff] %v737
      %956 = vst [vmem:[%s268 + $0xd0] sm:$0xff] %v742
      %957 = vst [vmem:[%s268 + $0xd8] sm:$0xff] %v747
      %958 = vst [vmem:[%s268 + $0xe0] sm:$0xff] %v752
      %959 = vst [vmem:[%s268 + $0xe8] sm:$0xff] %v757
      %960 = vst [vmem:[%s268 + $0xf0] sm:$0xff] %v762
      %961 = vst [vmem:[%s268 + $0xf8] sm:$0xff] %v767
      %962 = vst [vmem:[%s268 + $0x100] sm:$0xff] %v772
      %963 = vst [vmem:[%s268 + $0x108] sm:$0xff] %v777
      %964 = vst [vmem:[%s268 + $0x110] sm:$0xff] %v782
      %965 = vst [vmem:[%s268 + $0x118] sm:$0xff] %v787
      %966 = vst [vmem:[%s268 + $0x120] sm:$0xff] %v792
      %967 = vst [vmem:[%s268 + $0x128] sm:$0xff] %v797
      %968 = vst [vmem:[%s268 + $0x130] sm:$0xff] %v802
      %969 = vst [vmem:[%s268 + $0x138] sm:$0xff] %v807
      %970 = vst [vmem:[%s268 + $0x140] sm:$0xff] %v812
      %971 = vst [vmem:[%s268 + $0x148] sm:$0xff] %v817
      %972 = vst [vmem:[%s268 + $0x150] sm:$0xff] %v822
      %973 = vst [vmem:[%s268 + $0x158] sm:$0xff] %v827
      %974 = vst [vmem:[%s268 + $0x160] sm:$0xff] %v832
      %975 = vst [vmem:[%s268 + $0x168] sm:$0xff] %v837
      %976 = vst [vmem:[%s268 + $0x170] sm:$0xff] %v842
      %977 = vst [vmem:[%s268 + $0x178] sm:$0xff] %v847
      %978 = vst [vmem:[%s268 + $0x180] sm:$0xff] %v852
      %979 = vst [vmem:[%s268 + $0x188] sm:$0xff] %v857
      %980 = vst [vmem:[%s268 + $0x190] sm:$0xff] %v862
      %981 = vst [vmem:[%s268 + $0x198] sm:$0xff] %v867
      %982 = vst [vmem:[%s268 + $0x1a0] sm:$0xff] %v872
      %983 = vst [vmem:[%s268 + $0x1a8] sm:$0xff] %v877
      %984 = vst [vmem:[%s268 + $0x1b0] sm:$0xff] %v882
      %985 = vst [vmem:[%s268 + $0x1b8] sm:$0xff] %v887
      %986 = vst [vmem:[%s268 + $0x1c0] sm:$0xff] %v892
      %987 = vst [vmem:[%s268 + $0x1c8] sm:$0xff] %v897
      %988 = vst [vmem:[%s268 + $0x1d0] sm:$0xff] %v902
      %989 = vst [vmem:[%s268 + $0x1d8] sm:$0xff] %v907
      %990 = vst [vmem:[%s268 + $0x1e0] sm:$0xff] %v912
      %991 = vst [vmem:[%s268 + $0x1e8] sm:$0xff] %v917
      %992 = vst [vmem:[%s268 + $0x1f0] sm:$0xff] %v922
      %993 = vst [vmem:[%s268 + $0x1f8] sm:$0xff] %v927
      %v994 = vld [vmem:[%s273] sm:$0xff]
      %v995 = vadd.f32 %v612, %v617
      %v996 = vadd.f32 %v995, %v622
      %v997 = vadd.f32 %v996, %v627
      %v998 = vadd.f32 %v997, %v632
      %v999 = vadd.f32 %v998, %v637
      %v1000 = vadd.f32 %v999, %v642
      %v1001 = vadd.f32 %v1000, %v647
      %v1002 = vadd.f32 %v1001, %v652
      %v1003 = vadd.f32 %v1002, %v657
      %v1004 = vadd.f32 %v1003, %v662
      %v1005 = vadd.f32 %v1004, %v667
      %v1006 = vadd.f32 %v1005, %v672
      %v1007 = vadd.f32 %v1006, %v677
      %v1008 = vadd.f32 %v1007, %v682
      %v1009 = vadd.f32 %v1008, %v687
      %v1010 = vadd.f32 %v1009, %v692
      %v1011 = vadd.f32 %v1010, %v697
      %v1012 = vadd.f32 %v1011, %v702
      %v1013 = vadd.f32 %v1012, %v707
      %v1014 = vadd.f32 %v1013, %v712
      %v1015 = vadd.f32 %v1014, %v717
      %v1016 = vadd.f32 %v1015, %v722
      %v1017 = vadd.f32 %v1016, %v727
      %v1018 = vadd.f32 %v1017, %v732
      %v1019 = vadd.f32 %v1018, %v737
      %v1020 = vadd.f32 %v1019, %v742
      %v1021 = vadd.f32 %v1020, %v747
      %v1022 = vadd.f32 %v1021, %v752
      %v1023 = vadd.f32 %v1022, %v757
      %v1024 = vadd.f32 %v1023, %v762
      %v1025 = vadd.f32 %v1024, %v767
      %v1026 = vadd.f32 %v1025, %v772
      %v1027 = vadd.f32 %v1026, %v777
      %v1028 = vadd.f32 %v1027, %v782
      %v1029 = vadd.f32 %v1028, %v787
      %v1030 = vadd.f32 %v1029, %v792
      %v1031 = vadd.f32 %v1030, %v797
      %v1032 = vadd.f32 %v1031, %v802
      %v1033 = vadd.f32 %v1032, %v807
      %v1034 = vadd.f32 %v1033, %v812
      %v1035 = vadd.f32 %v1034, %v817
      %v1036 = vadd.f32 %v1035, %v822
      %v1037 = vadd.f32 %v1036, %v827
      %v1038 = vadd.f32 %v1037, %v832
      %v1039 = vadd.f32 %v1038, %v837
      %v1040 = vadd.f32 %v1039, %v842
      %v1041 = vadd.f32 %v1040, %v847
      %v1042 = vadd.f32 %v1041, %v852
      %v1043 = vadd.f32 %v1042, %v857
      %v1044 = vadd.f32 %v1043, %v862
      %v1045 = vadd.f32 %v1044, %v867
      %v1046 = vadd.f32 %v1045, %v872
      %v1047 = vadd.f32 %v1046, %v877
      %v1048 = vadd.f32 %v1047, %v882
      %v1049 = vadd.f32 %v1048, %v887
      %v1050 = vadd.f32 %v1049, %v892
      %v1051 = vadd.f32 %v1050, %v897
      %v1052 = vadd.f32 %v1051, %v902
      %v1053 = vadd.f32 %v1052, %v907
      %v1054 = vadd.f32 %v1053, %v912
      %v1055 = vadd.f32 %v1054, %v917
      %v1056 = vadd.f32 %v1055, %v922
      %v1057 = vadd.f32 %v1056, %v927
      %v1058 = vrot.slane %v1057, 4
      %v1059 = vadd.f32 %v1057, %v1058
      %v1060 = vrot.slane %v1059, 2
      %v1061 = vadd.f32 %v1059, %v1060
      %v1062 = vrot.slane %v1061, 1
      %v1063 = vadd.f32 %v1061, %v1062
      %v1064 = vadd.f32 %v994, %v1063
      %1065 = vst [vmem:[%s273] sm:$0xff] %v1064
      %v1066 = vld [vmem:[%s277] sm:$0xff]
      %v1067 = vmul.f32 %v612, %v612
      %v1068 = vmul.f32 %v617, %v617
      %v1069 = vmul.f32 %v622, %v622
      %v1070 = vmul.f32 %v627, %v627
      %v1071 = vmul.f32 %v632, %v632
      %v1072 = vmul.f32 %v637, %v637
      %v1073 = vmul.f32 %v642, %v642
      %v1074 = vmul.f32 %v647, %v647
      %v1075 = vmul.f32 %v652, %v652
      %v1076 = vmul.f32 %v657, %v657
      %v1077 = vmul.f32 %v662, %v662
      %v1078 = vmul.f32 %v667, %v667
      %v1079 = vmul.f32 %v672, %v672
      %v1080 = vmul.f32 %v677, %v677
      %v1081 = vmul.f32 %v682, %v682
      %v1082 = vmul.f32 %v687, %v687
      %v1083 = vmul.f32 %v692, %v692
      %v1084 = vmul.f32 %v697, %v697
      %v1085 = vmul.f32 %v702, %v702
      %v1086 = vmul.f32 %v707, %v707
      %v1087 = vmul.f32 %v712, %v712
      %v1088 = vmul.f32 %v717, %v717
      %v1089 = vmul.f32 %v722, %v722
      %v1090 = vmul.f32 %v727, %v727
      %v1091 = vmul.f32 %v732, %v732
      %v1092 = vmul.f32 %v737, %v737
      %v1093 = vmul.f32 %v742, %v742
      %v1094 = vmul.f32 %v747, %v747
      %v1095 = vmul.f32 %v752, %v752
      %v1096 = vmul.f32 %v757, %v757
      %v1097 = vmul.f32 %v762, %v762
      %v1098 = vmul.f32 %v767, %v767
      %v1099 = vmul.f32 %v772, %v772
      %v1100 = vmul.f32 %v777, %v777
      %v1101 = vmul.f32 %v782, %v782
      %v1102 = vmul.f32 %v787, %v787
      %v1103 = vmul.f32 %v792, %v792
      %v1104 = vmul.f32 %v797, %v797
      %v1105 = vmul.f32 %v802, %v802
      %v1106 = vmul.f32 %v807, %v807
      %v1107 = vmul.f32 %v812, %v812
      %v1108 = vmul.f32 %v817, %v817
      %v1109 = vmul.f32 %v822, %v822
      %v1110 = vmul.f32 %v827, %v827
      %v1111 = vmul.f32 %v832, %v832
      %v1112 = vmul.f32 %v837, %v837
      %v1113 = vmul.f32 %v842, %v842
      %v1114 = vmul.f32 %v847, %v847
      %v1115 = vmul.f32 %v852, %v852
      %v1116 = vmul.f32 %v857, %v857
      %v1117 = vmul.f32 %v862, %v862
      %v1118 = vmul.f32 %v867, %v867
      %v1119 = vmul.f32 %v872, %v872
      %v1120 = vmul.f32 %v877, %v877
      %v1121 = vmul.f32 %v882, %v882
      %v1122 = vmul.f32 %v887, %v887
      %v1123 = vmul.f32 %v892, %v892
      %v1124 = vmul.f32 %v897, %v897
      %v1125 = vmul.f32 %v902, %v902
      %v1126 = vmul.f32 %v907, %v907
      %v1127 = vmul.f32 %v912, %v912
      %v1128 = vmul.f32 %v917, %v917
      %v1129 = vmul.f32 %v922, %v922
      %v1130 = vmul.f32 %v927, %v927
      %v1131 = vadd.f32 %v1067, %v1068
      %v1132 = vadd.f32 %v1131, %v1069
      %v1133 = vadd.f32 %v1132, %v1070
      %v1134 = vadd.f32 %v1133, %v1071
      %v1135 = vadd.f32 %v1134, %v1072
      %v1136 = vadd.f32 %v1135, %v1073
      %v1137 = vadd.f32 %v1136, %v1074
      %v1138 = vadd.f32 %v1137, %v1075
      %v1139 = vadd.f32 %v1138, %v1076
      %v1140 = vadd.f32 %v1139, %v1077
      %v1141 = vadd.f32 %v1140, %v1078
      %v1142 = vadd.f32 %v1141, %v1079
      %v1143 = vadd.f32 %v1142, %v1080
      %v1144 = vadd.f32 %v1143, %v1081
      %v1145 = vadd.f32 %v1144, %v1082
      %v1146 = vadd.f32 %v1145, %v1083
      %v1147 = vadd.f32 %v1146, %v1084
      %v1148 = vadd.f32 %v1147, %v1085
      %v1149 = vadd.f32 %v1148, %v1086
      %v1150 = vadd.f32 %v1149, %v1087
      %v1151 = vadd.f32 %v1150, %v1088
      %v1152 = vadd.f32 %v1151, %v1089
      %v1153 = vadd.f32 %v1152, %v1090
      %v1154 = vadd.f32 %v1153, %v1091
      %v1155 = vadd.f32 %v1154, %v1092
      %v1156 = vadd.f32 %v1155, %v1093
      %v1157 = vadd.f32 %v1156, %v1094
      %v1158 = vadd.f32 %v1157, %v1095
      %v1159 = vadd.f32 %v1158, %v1096
      %v1160 = vadd.f32 %v1159, %v1097
      %v1161 = vadd.f32 %v1160, %v1098
      %v1162 = vadd.f32 %v1161, %v1099
      %v1163 = vadd.f32 %v1162, %v1100
      %v1164 = vadd.f32 %v1163, %v1101
      %v1165 = vadd.f32 %v1164, %v1102
      %v1166 = vadd.f32 %v1165, %v1103
      %v1167 = vadd.f32 %v1166, %v1104
      %v1168 = vadd.f32 %v1167, %v1105
      %v1169 = vadd.f32 %v1168, %v1106
      %v1170 = vadd.f32 %v1169, %v1107
      %v1171 = vadd.f32 %v1170, %v1108
      %v1172 = vadd.f32 %v1171, %v1109
      %v1173 = vadd.f32 %v1172, %v1110
      %v1174 = vadd.f32 %v1173, %v1111
      %v1175 = vadd.f32 %v1174, %v1112
      %v1176 = vadd.f32 %v1175, %v1113
      %v1177 = vadd.f32 %v1176, %v1114
      %v1178 = vadd.f32 %v1177, %v1115
      %v1179 = vadd.f32 %v1178, %v1116
      %v1180 = vadd.f32 %v1179, %v1117
      %v1181 = vadd.f32 %v1180, %v1118
      %v1182 = vadd.f32 %v1181, %v1119
      %v1183 = vadd.f32 %v1182, %v1120
      %v1184 = vadd.f32 %v1183, %v1121
      %v1185 = vadd.f32 %v1184, %v1122
      %v1186 = vadd.f32 %v1185, %v1123
      %v1187 = vadd.f32 %v1186, %v1124
      %v1188 = vadd.f32 %v1187, %v1125
      %v1189 = vadd.f32 %v1188, %v1126
      %v1190 = vadd.f32 %v1189, %v1127
      %v1191 = vadd.f32 %v1190, %v1128
      %v1192 = vadd.f32 %v1191, %v1129
      %v1193 = vadd.f32 %v1192, %v1130
      %v1194 = vrot.slane %v1193, 4
      %v1195 = vadd.f32 %v1193, %v1194
      %v1196 = vrot.slane %v1195, 2
      %v1197 = vadd.f32 %v1195, %v1196
      %v1198 = vrot.slane %v1197, 1
      %v1199 = vadd.f32 %v1197, %v1198
      %v1200 = vadd.f32 %v1066, %v1199
      %1201 = vst [vmem:[%s277] sm:$0xff] %v1200
      %s1202 = smul.u32 64, %s21
      %p1203 = scmp.lt.s32.totalorder %s20, 3
      %s1204 = scalar_select %p1203, %s20, 3
      %p1205 = scmp.lt.s32.totalorder %s1202, 63
      %s1206 = scalar_select %p1205, %s1202, 63
      %s1207 = smul.addr %s1204, 64
      %s1208 = sadd.s32 %s1206, %s1207
      %s1209 = smul.addr %s1208, 8
      %s1210 = scalar_lea.vmem %s2, %s1209
      %p1211 = scmp.lt.s32.totalorder %s20, 3
      %s1212 = scalar_select %p1211, %s20, 3
      %s1213 = smul.addr %s1212, 8
      %s1214 = scalar_lea.vmem %s3, %s1213
      %p1215 = scmp.lt.s32.totalorder %s20, 3
      %s1216 = scalar_select %p1215, %s20, 3
      %s1217 = smul.addr %s1216, 8
      %s1218 = scalar_lea.vmem %s4, %s1217
      // Predicated region
      $region33: #{generator2d_forward.15} parent=27 // pred_check
        %p1219 = pneg %p102
      $region34: #{generator2d_forward.15} parent=27 // pred_check_branch
        %1221 = sbr.rel (%p1219) target = $region36
      $region35: #{generator2d_forward.15} parent=27 // pred_region
        %s1222 = smul.u32 64, %s21
      $region36: #{generator2d_forward.15} parent=27 // pred_fallthru
        _
      // Predicated region
      $region37: #{generator2d_forward.15} parent=27 // pred_check
        %p1223 = pneg %p128
      $region38: #{generator2d_forward.15} parent=27 // pred_check_branch
        %1225 = sbr.rel (%p1223) target = $region40
      $region39: #{generator2d_forward.15} parent=27 // pred_region
        _
      $region40: #{generator2d_forward.15} parent=27 // pred_fallthru
        _
      // Predicated region
      $region41: #{generator2d_forward.15} parent=27 // pred_check
        %p1226 = pneg %p154
      $region42: #{generator2d_forward.15} parent=27 // pred_check_branch
        %1228 = sbr.rel (%p1226) target = $region44
      $region43: #{generator2d_forward.15} parent=27 // pred_region
        _
      $region44: #{generator2d_forward.15} parent=27 // pred_fallthru
        _
    $region28: #{generator2d_forward.15} parent=5 // pred_fallthru
      _
    %p1229 = scmp.le.s32.totalorder 2, %s11
    // Predicated region
    $region45: #{generator2d_forward.15} parent=5 // pred_check
      %p1230 = pneg %p1229
    $region46: #{generator2d_forward.15} parent=5 // pred_check_branch
      %1232 = sbr.rel (%p1230) target = $region48
    $region47: #{generator2d_forward.15} parent=5 // pred_region
      %s1233 = ssub.s32 %s11, 2
      // Predicated region
      $region49: #{generator2d_forward.15} parent=47 // pred_check
        %p1234 = pneg %p108
      $region50: #{generator2d_forward.15} parent=47 // pred_check_branch
        %1236 = sbr.rel (%p1234) target = $region52
      $region51: #{generator2d_forward.15} parent=47 // pred_region
        %s1237 = smul.u32 64, %s23
        %p1238 = scmp.lt.s32.totalorder %s22, 3
        %s1239 = scalar_select %p1238, %s22, 3
        %p1240 = scmp.lt.s32.totalorder %s1237, 63
        %s1241 = scalar_select %p1240, %s1237, 63
        %s1242 = smul.addr %s1239, 64
        %s1243 = sadd.s32 %s1241, %s1242
        %s1244 = smul.addr %s1243, 8
        %s1245 = scalar_lea.vmem %s2, %s1244
      $region52: #{generator2d_forward.15} parent=47 // pred_fallthru
        _
      // Predicated region
      $region53: #{generator2d_forward.15} parent=47 // pred_check
        %p1246 = pneg %p134
      $region54: #{generator2d_forward.15} parent=47 // pred_check_branch
        %1248 = sbr.rel (%p1246) target = $region56
      $region55: #{generator2d_forward.15} parent=47 // pred_region
        %p1249 = scmp.lt.s32.totalorder %s22, 3
        %s1250 = scalar_select %p1249, %s22, 3
        %s1251 = smul.addr %s1250, 8
        %s1252 = scalar_lea.vmem %s3, %s1251
      $region56: #{generator2d_forward.15} parent=47 // pred_fallthru
        _
      // Predicated region
      $region57: #{generator2d_forward.15} parent=47 // pred_check
        %p1253 = pneg %p160
      $region58: #{generator2d_forward.15} parent=47 // pred_check_branch
        %1255 = sbr.rel (%p1253) target = $region60
      $region59: #{generator2d_forward.15} parent=47 // pred_region
        %p1256 = scmp.lt.s32.totalorder %s22, 3
        %s1257 = scalar_select %p1256, %s22, 3
        %s1258 = smul.addr %s1257, 8
        %s1259 = scalar_lea.vmem %s4, %s1258
      $region60: #{generator2d_forward.15} parent=47 // pred_fallthru
        _
    $region48: #{generator2d_forward.15} parent=5 // pred_fallthru
      _
  $region6: #{generator2d_forward.15} parent=0 // loop_footer
    %s15 = sadd.s32 1, %s11
  $region7: #{generator2d_forward.15} parent=0 // loop_footer_branch
    %10 = sbr.rel target = $region3
  $region8: #{generator2d_forward.15} parent=0 // loop_exit
    _

// kernel: generator2d_forward.16
$region0: #{generator2d_forward.16}
  #allocation0 [shape = 'u32[]', space=smem, size = 0x4, offset = 0x4, fixed_abs, tag = 'smem constant byte address 0x4 - core index']
  #allocation1 [shape = 'u32[144,128]{1,0:T(1,128)}', space=vmem, size = 0x12000, scoped, tag = 'internal scratch']
  %s0 = inlined_call_operand.vmem [shape: f32[4,512,128], index: 0, kind: input, shape index: {}]
  %s1 = inlined_call_operand.vmem [shape: f32[1,128], index: 1, kind: input, shape index: {}]
  %s2 = inlined_call_operand.vmem [shape: f32[1,128], index: 2, kind: input, shape index: {}]
  %s3 = inlined_call_operand.vmem [shape: f32[4,512,128], index: 3, kind: output, shape index: {}]
  %s4 = sld [smem:[#allocation0]]
  $region45: #{generator2d_forward.16} parent=0
    _
  %s6 = ssub.s32 1, %s4
  %s7 = scalar_select 0, %s6, %s4
  loop: start=0, step=1, limit=6
  $region2: #{generator2d_forward.16} parent=0 // loop_pre_header
    _
  $region3: #{generator2d_forward.16} parent=0 // loop_header
    %s9 = sphi 0, %s13
    %p10 = scmp.ge.s32.totalorder %s9, 6
    %s16 = sphi 0, %s28
    %s17 = sphi 0, %s24
    %s18 = sphi 0, %s16
    %s19 = sphi 0, %s17
    %s20 = sphi 0, %s18
    %s21 = sphi 0, %s19
    %s33 = sphi 0, %s35
    %s36 = sphi 0, %s33
    %s37 = sphi 0, %s36
    %s53 = sphi 0, %s37
    %s57 = sphi 0, %s57
    %s59 = sphi 0, %s57
    %s60 = sphi 0, %s59
    %s74 = sphi 0, %s60
    %s78 = sphi 0, %s78
    %s80 = sphi 0, %s78
    %s81 = sphi 0, %s80
    %s95 = sphi 0, %s81
    %s103 = sphi 0, %s105
    %s106 = sphi 0, %s103
    %s107 = sphi 0, %s106
    %s123 = sphi 0, %s107
  $region4: #{generator2d_forward.16} parent=0 // loop_header_branch
    %12 = sbr.rel (%p10) target = $region8
  $region5: #{generator2d_forward.16} parent=0 // loop_body
    %s14 = ssub.s32 %s9, 1
    %s15 = ssub.s32 %s9, 2
    %s22 = sadd.s32 1, %s17
    %p23 = scmp.ge.s32.totalorder %s22, 1
    %s24 = scalar_select %p23, 0, %s22
    %s25 = sadd.s32 1, %s16
    %s26 = scalar_select %p23, %s25, %s16
    %p27 = scmp.ge.s32.totalorder %s26, 4
    %s28 = scalar_select %p27, 0, %s26
    %s29 = ssub.s32 %s16, %s28
    %s30 = ssub.s32 %s17, %s24
    %s31 = sor.u32 %s29, %s30
    %p32 = scmp.eq.s32.totalorder %s31, 0
    %s34 = sadd.s32 %s33, 1
    %s35 = scalar_select %p32, %s33, %s34
    %p38 = pneg %p32
    %p39 = scmp.eq.s32.totalorder %s9, 3
    %p40 = por %p38, %p39
    %p41 = scmp.ne.s32.totalorder %s33, %s36
    %p42 = scmp.eq.s32.totalorder %s9, 0
    %p43 = por %p41, %p42
    %p44 = scmp.ne.s32.totalorder %s33, %s36
    %p45 = scmp.eq.s32.totalorder %s14, 3
    %p46 = por %p44, %p45
    %p47 = scmp.ne.s32.totalorder %s36, %s37
    %p48 = scmp.eq.s32.totalorder %s14, 0
    %p49 = por %p47, %p48
    %p50 = scmp.ne.s32.totalorder %s36, %s37
    %p51 = scmp.eq.s32.totalorder %s15, 3
    %p52 = por %p50, %p51
    %p54 = scmp.ne.s32.totalorder %s37, %s53
    %p55 = scmp.eq.s32.totalorder %s15, 0
    %p56 = por %p54, %p55
    %s58 = sadd.s32 %s57, 1
    %p61 = scmp.eq.s32.totalorder %s9, 3
    %p62 = scmp.ne.s32.totalorder %s57, %s59
    %p63 = scmp.eq.s32.totalorder %s9, 0
    %p64 = por %p62, %p63
    %p65 = scmp.ne.s32.totalorder %s57, %s59
    %p66 = scmp.eq.s32.totalorder %s14, 3
    %p67 = por %p65, %p66
    %p68 = scmp.ne.s32.totalorder %s59, %s60
    %p69 = scmp.eq.s32.totalorder %s14, 0
    %p70 = por %p68, %p69
    %p71 = scmp.ne.s32.totalorder %s59, %s60
    %p72 = scmp.eq.s32.totalorder %s15, 3
    %p73 = por %p71, %p72
    %p75 = scmp.ne.s32.totalorder %s60, %s74
    %p76 = scmp.eq.s32.totalorder %s15, 0
    %p77 = por %p75, %p76
    %s79 = sadd.s32 %s78, 1
    %p82 = scmp.eq.s32.totalorder %s9, 3
    %p83 = scmp.ne.s32.totalorder %s78, %s80
    %p84 = scmp.eq.s32.totalorder %s9, 0
    %p85 = por %p83, %p84
    %p86 = scmp.ne.s32.totalorder %s78, %s80
    %p87 = scmp.eq.s32.totalorder %s14, 3
    %p88 = por %p86, %p87
    %p89 = scmp.ne.s32.totalorder %s80, %s81
    %p90 = scmp.eq.s32.totalorder %s14, 0
    %p91 = por %p89, %p90
    %p92 = scmp.ne.s32.totalorder %s80, %s81
    %p93 = scmp.eq.s32.totalorder %s15, 3
    %p94 = por %p92, %p93
    %p96 = scmp.ne.s32.totalorder %s81, %s95
    %p97 = scmp.eq.s32.totalorder %s15, 0
    %p98 = por %p96, %p97
    %s99 = ssub.s32 %s16, %s28
    %s100 = ssub.s32 %s17, %s24
    %s101 = sor.u32 %s99, %s100
    %p102 = scmp.eq.s32.totalorder %s101, 0
    %s104 = sadd.s32 %s103, 1
    %s105 = scalar_select %p102, %s103, %s104
    %p108 = pneg %p102
    %p109 = scmp.eq.s32.totalorder %s9, 3
    %p110 = por %p108, %p109
    %p111 = scmp.ne.s32.totalorder %s103, %s106
    %p112 = scmp.eq.s32.totalorder %s9, 0
    %p113 = por %p111, %p112
    %p114 = scmp.ne.s32.totalorder %s103, %s106
    %p115 = scmp.eq.s32.totalorder %s14, 3
    %p116 = por %p114, %p115
    %p117 = scmp.ne.s32.totalorder %s106, %s107
    %p118 = scmp.eq.s32.totalorder %s14, 0
    %p119 = por %p117, %p118
    %p120 = scmp.ne.s32.totalorder %s106, %s107
    %p121 = scmp.eq.s32.totalorder %s15, 3
    %p122 = por %p120, %p121
    %p124 = scmp.ne.s32.totalorder %s107, %s123
    %p125 = scmp.eq.s32.totalorder %s15, 0
    %p126 = por %p124, %p125
    %p127 = scmp.le.s32.totalorder 1, %s9
    %p128 = scmp.lt.s32.totalorder %s9, 5
    %p129 = pnand %p127, %p128
    %p130 = pneg %p129
    // Predicated region
    $region9: #{generator2d_forward.16} parent=5 // pred_check
      _
    $region10: #{generator2d_forward.16} parent=5 // pred_check_branch
      %132 = sbr.rel (%p129) target = $region12
    $region11: #{generator2d_forward.16} parent=5 // pred_region
      %s133 = ssub.s32 %s9, 1
      // Predicated region
      $region13: #{generator2d_forward.16} parent=11 // pred_check
        %p134 = pneg %p70
      $region14: #{generator2d_forward.16} parent=11 // pred_check_branch
        %136 = sbr.rel (%p134) target = $region16
      $region15: #{generator2d_forward.16} parent=11 // pred_region
        _
      $region16: #{generator2d_forward.16} parent=11 // pred_fallthru
        _
      // Predicated region
      $region17: #{generator2d_forward.16} parent=11 // pred_check
        %p137 = pneg %p91
      $region18: #{generator2d_forward.16} parent=11 // pred_check_branch
        %139 = sbr.rel (%p137) target = $region20
      $region19: #{generator2d_forward.16} parent=11 // pred_region
        _
      $region20: #{generator2d_forward.16} parent=11 // pred_fallthru
        _
    $region12: #{generator2d_forward.16} parent=5 // pred_fallthru
      _
    %p140 = scmp.lt.s32.totalorder %s9, 4
    // Predicated region
    $region21: #{generator2d_forward.16} parent=5 // pred_check
      %p141 = pneg %p140
    $region22: #{generator2d_forward.16} parent=5 // pred_check_branch
      %143 = sbr.rel (%p141) target = $region24
    $region23: #{generator2d_forward.16} parent=5 // pred_region
      // Predicated region
      $region25: #{generator2d_forward.16} parent=23 // pred_check
        %p144 = pneg %p43
      $region26: #{generator2d_forward.16} parent=23 // pred_check_branch
        %146 = sbr.rel (%p144) target = $region28
      $region27: #{generator2d_forward.16} parent=23 // pred_region
        %s147 = smul.u32 64, %s17
        %p148 = scmp.lt.s32.totalorder %s16, 3
        %s149 = scalar_select %p148, %s16, 3
        %p150 = scmp.lt.s32.totalorder %s147, 63
        %s151 = scalar_select %p150, %s147, 63
        %s152 = smul.addr %s149, 64
        %s153 = sadd.s32 %s151, %s152
        %s154 = smul.addr %s153, 8
        %s155 = scalar_lea.vmem %s0, %s154
        %s156 = smul.u32 64, %s17
      $region28: #{generator2d_forward.16} parent=23 // pred_fallthru
        _
    $region24: #{generator2d_forward.16} parent=5 // pred_fallthru
      _
    %p157 = scmp.le.s32.totalorder 1, %s9
    %p158 = scmp.lt.s32.totalorder %s9, 5
    %p159 = pnand %p157, %p158
    %p160 = pneg %p159
    // Predicated region
    $region29: #{generator2d_forward.16} parent=5 // pred_check
      _
    $region30: #{generator2d_forward.16} parent=5 // pred_check_branch
      %162 = sbr.rel (%p159) target = $region32
    $region31: #{generator2d_forward.16} parent=5 // pred_region
      %s163 = ssub.s32 %s9, 1
      %s164 = smul.u32 64, %s19
      %p165 = scmp.lt.s32.totalorder %s18, 3
      %s166 = scalar_select %p165, %s18, 3
      %p167 = scmp.lt.s32.totalorder %s164, 63
      %s168 = scalar_select %p167, %s164, 63
      %s169 = smul.addr %s166, 64
      %s170 = sadd.s32 %s168, %s169
      %s171 = smul.addr %s170, 8
      %s172 = scalar_lea.vmem %s0, %s171
      %p173 = pneg %p49
      %p174 = pneg %p46
      %p175 = pneg %p70
      %p176 = pneg %p67
      %p177 = pneg %p91
      %p178 = pneg %p88
      %p179 = pneg %p119
      %p180 = pneg %p116
      %s181 = smul.u32 64, %s19
      %p182 = scmp.lt.s32.totalorder %s18, 3
      %s183 = scalar_select %p182, %s18, 3
      %p184 = scmp.lt.s32.totalorder %s181, 63
      %s185 = scalar_select %p184, %s181, 63
      %s186 = smul.addr %s183, 64
      %s187 = sadd.s32 %s185, %s186
      %s188 = smul.addr %s187, 8
      %s189 = scalar_lea.vmem %s3, %s188
      %s190 = smul.u32 64, %s19
      %p191 = scmp.lt.s32.totalorder %s18, 3
      %s192 = scalar_select %p191, %s18, 3
      %p193 = scmp.lt.s32.totalorder %s190, 63
      %s194 = scalar_select %p193, %s190, 63
      %s195 = smul.addr %s192, 64
      %s196 = sadd.s32 %s194, %s195
      %s197 = smul.addr %s196, 8
      %s198 = scalar_lea.vmem %s0, %s197
      %s199 = smul.u32 64, %s19
      %s200 = smul.u32 64, %s19
      %p201 = scmp.lt.s32.totalorder %s18, 3
      %s202 = scalar_select %p201, %s18, 3
      %p203 = scmp.lt.s32.totalorder %s200, 63
      %s204 = scalar_select %p203, %s200, 63
      %s205 = smul.addr %s202, 64
      %s206 = sadd.s32 %s204, %s205
      %s207 = smul.addr %s206, 8
      %s208 = scalar_lea.vmem %s3, %s207
      %s209 = smul.u32 64, %s19
      %v210 = vld [vmem:[%s198] sm:$0xff]
      %v211 = vld [vmem:[%s198 + $0x8] sm:$0xff]
      %v212 = vld [vmem:[%s198 + $0x10] sm:$0xff]
      %v213 = vld [vmem:[%s198 + $0x18] sm:$0xff]
      %v214 = vld [vmem:[%s198 + $0x20] sm:$0xff]
      %v215 = vld [vmem:[%s198 + $0x28] sm:$0xff]
      %v216 = vld [vmem:[%s198 + $0x30] sm:$0xff]
      %v217 = vld [vmem:[%s198 + $0x38] sm:$0xff]
      %v218 = vld [vmem:[%s198 + $0x40] sm:$0xff]
      %v219 = vld [vmem:[%s198 + $0x48] sm:$0xff]
      %v220 = vld [vmem:[%s198 + $0x50] sm:$0xff]
      %v221 = vld [vmem:[%s198 + $0x58] sm:$0xff]
      %v222 = vld [vmem:[%s198 + $0x60] sm:$0xff]
      %v223 = vld [vmem:[%s198 + $0x68] sm:$0xff]
      %v224 = vld [vmem:[%s198 + $0x70] sm:$0xff]
      %v225 = vld [vmem:[%s198 + $0x78] sm:$0xff]
      %v226 = vld [vmem:[%s198 + $0x80] sm:$0xff]
      %v227 = vld [vmem:[%s198 + $0x88] sm:$0xff]
      %v228 = vld [vmem:[%s198 + $0x90] sm:$0xff]
      %v229 = vld [vmem:[%s198 + $0x98] sm:$0xff]
      %v230 = vld [vmem:[%s198 + $0xa0] sm:$0xff]
      %v231 = vld [vmem:[%s198 + $0xa8] sm:$0xff]
      %v232 = vld [vmem:[%s198 + $0xb0] sm:$0xff]
      %v233 = vld [vmem:[%s198 + $0xb8] sm:$0xff]
      %v234 = vld [vmem:[%s198 + $0xc0] sm:$0xff]
      %v235 = vld [vmem:[%s198 + $0xc8] sm:$0xff]
      %v236 = vld [vmem:[%s198 + $0xd0] sm:$0xff]
      %v237 = vld [vmem:[%s198 + $0xd8] sm:$0xff]
      %v238 = vld [vmem:[%s198 + $0xe0] sm:$0xff]
      %v239 = vld [vmem:[%s198 + $0xe8] sm:$0xff]
      %v240 = vld [vmem:[%s198 + $0xf0] sm:$0xff]
      %v241 = vld [vmem:[%s198 + $0xf8] sm:$0xff]
      %v242 = vld [vmem:[%s198 + $0x100] sm:$0xff]
      %v243 = vld [vmem:[%s198 + $0x108] sm:$0xff]
      %v244 = vld [vmem:[%s198 + $0x110] sm:$0xff]
      %v245 = vld [vmem:[%s198 + $0x118] sm:$0xff]
      %v246 = vld [vmem:[%s198 + $0x120] sm:$0xff]
      %v247 = vld [vmem:[%s198 + $0x128] sm:$0xff]
      %v248 = vld [vmem:[%s198 + $0x130] sm:$0xff]
      %v249 = vld [vmem:[%s198 + $0x138] sm:$0xff]
      %v250 = vld [vmem:[%s198 + $0x140] sm:$0xff]
      %v251 = vld [vmem:[%s198 + $0x148] sm:$0xff]
      %v252 = vld [vmem:[%s198 + $0x150] sm:$0xff]
      %v253 = vld [vmem:[%s198 + $0x158] sm:$0xff]
      %v254 = vld [vmem:[%s198 + $0x160] sm:$0xff]
      %v255 = vld [vmem:[%s198 + $0x168] sm:$0xff]
      %v256 = vld [vmem:[%s198 + $0x170] sm:$0xff]
      %v257 = vld [vmem:[%s198 + $0x178] sm:$0xff]
      %v258 = vld [vmem:[%s198 + $0x180] sm:$0xff]
      %v259 = vld [vmem:[%s198 + $0x188] sm:$0xff]
      %v260 = vld [vmem:[%s198 + $0x190] sm:$0xff]
      %v261 = vld [vmem:[%s198 + $0x198] sm:$0xff]
      %v262 = vld [vmem:[%s198 + $0x1a0] sm:$0xff]
      %v263 = vld [vmem:[%s198 + $0x1a8] sm:$0xff]
      %v264 = vld [vmem:[%s198 + $0x1b0] sm:$0xff]
      %v265 = vld [vmem:[%s198 + $0x1b8] sm:$0xff]
      %v266 = vld [vmem:[%s198 + $0x1c0] sm:$0xff]
      %v267 = vld [vmem:[%s198 + $0x1c8] sm:$0xff]
      %v268 = vld [vmem:[%s198 + $0x1d0] sm:$0xff]
      %v269 = vld [vmem:[%s198 + $0x1d8] sm:$0xff]
      %v270 = vld [vmem:[%s198 + $0x1e0] sm:$0xff]
      %v271 = vld [vmem:[%s198 + $0x1e8] sm:$0xff]
      %v272 = vld [vmem:[%s198 + $0x1f0] sm:$0xff]
      %v273 = vld [vmem:[%s198 + $0x1f8] sm:$0xff]
      %v274 = vld [vmem:[%s1] sm:$0x1]
      %v276 = vlaneseq
      %v277 = vshrl.u32 %v276, 7
      %v278 = vsub.s32 0, %v277
      %v279 = vrot.slane %v274, %v278
      %v281 = vmul.f32 %v210, %v279
      %v282 = vmul.f32 %v211, %v279
      %v283 = vmul.f32 %v212, %v279
      %v284 = vmul.f32 %v213, %v279
      %v285 = vmul.f32 %v214, %v279
      %v286 = vmul.f32 %v215, %v279
      %v287 = vmul.f32 %v216, %v279
      %v288 = vmul.f32 %v217, %v279
      %v289 = vmul.f32 %v218, %v279
      %v290 = vmul.f32 %v219, %v279
      %v291 = vmul.f32 %v220, %v279
      %v292 = vmul.f32 %v221, %v279
      %v293 = vmul.f32 %v222, %v279
      %v294 = vmul.f32 %v223, %v279
      %v295 = vmul.f32 %v224, %v279
      %v296 = vmul.f32 %v225, %v279
      %v297 = vmul.f32 %v226, %v279
      %v298 = vmul.f32 %v227, %v279
      %v299 = vmul.f32 %v228, %v279
      %v300 = vmul.f32 %v229, %v279
      %v301 = vmul.f32 %v230, %v279
      %v302 = vmul.f32 %v231, %v279
      %v303 = vmul.f32 %v232, %v279
      %v304 = vmul.f32 %v233, %v279
      %v305 = vmul.f32 %v234, %v279
      %v306 = vmul.f32 %v235, %v279
      %v307 = vmul.f32 %v236, %v279
      %v308 = vmul.f32 %v237, %v279
      %v309 = vmul.f32 %v238, %v279
      %v310 = vmul.f32 %v239, %v279
      %v311 = vmul.f32 %v240, %v279
      %v312 = vmul.f32 %v241, %v279
      %v313 = vmul.f32 %v242, %v279
      %v314 = vmul.f32 %v243, %v279
      %v315 = vmul.f32 %v244, %v279
      %v316 = vmul.f32 %v245, %v279
      %v317 = vmul.f32 %v246, %v279
      %v318 = vmul.f32 %v247, %v279
      %v319 = vmul.f32 %v248, %v279
      %v320 = vmul.f32 %v249, %v279
      %v321 = vmul.f32 %v250, %v279
      %v322 = vmul.f32 %v251, %v279
      %v323 = vmul.f32 %v252, %v279
      %v324 = vmul.f32 %v253, %v279
      %v325 = vmul.f32 %v254, %v279
      %v326 = vmul.f32 %v255, %v279
      %v327 = vmul.f32 %v256, %v279
      %v328 = vmul.f32 %v257, %v279
      %v329 = vmul.f32 %v258, %v279
      %v330 = vmul.f32 %v259, %v279
      %v331 = vmul.f32 %v260, %v279
      %v332 = vmul.f32 %v261, %v279
      %v333 = vmul.f32 %v262, %v279
      %v334 = vmul.f32 %v263, %v279
      %v335 = vmul.f32 %v264, %v279
      %v336 = vmul.f32 %v265, %v279
      %v337 = vmul.f32 %v266, %v279
      %v338 = vmul.f32 %v267, %v279
      %v339 = vmul.f32 %v268, %v279
      %v340 = vmul.f32 %v269, %v279
      %v341 = vmul.f32 %v270, %v279
      %v342 = vmul.f32 %v271, %v279
      %v343 = vmul.f32 %v272, %v279
      %v344 = vmul.f32 %v273, %v279
      %v345 = vld [vmem:[%s2] sm:$0x1]
      %v347 = vlaneseq
      %v348 = vshrl.u32 %v347, 7
      %v349 = vsub.s32 0, %v348
      %v350 = vrot.slane %v345, %v349
      %v352 = vadd.f32 %v281, %v350
      %v353 = vadd.f32 %v282, %v350
      %v354 = vadd.f32 %v283, %v350
      %v355 = vadd.f32 %v284, %v350
      %v356 = vadd.f32 %v285, %v350
      %v357 = vadd.f32 %v286, %v350
      %v358 = vadd.f32 %v287, %v350
      %v359 = vadd.f32 %v288, %v350
      %v360 = vadd.f32 %v289, %v350
      %v361 = vadd.f32 %v290, %v350
      %v362 = vadd.f32 %v291, %v350
      %v363 = vadd.f32 %v292, %v350
      %v364 = vadd.f32 %v293, %v350
      %v365 = vadd.f32 %v294, %v350
      %v366 = vadd.f32 %v295, %v350
      %v367 = vadd.f32 %v296, %v350
      %v368 = vadd.f32 %v297, %v350
      %v369 = vadd.f32 %v298, %v350
      %v370 = vadd.f32 %v299, %v350
      %v371 = vadd.f32 %v300, %v350
      %v372 = vadd.f32 %v301, %v350
      %v373 = vadd.f32 %v302, %v350
      %v374 = vadd.f32 %v303, %v350
      %v375 = vadd.f32 %v304, %v350
      %v376 = vadd.f32 %v305, %v350
      %v377 = vadd.f32 %v306, %v350
      %v378 = vadd.f32 %v307, %v350
      %v379 = vadd.f32 %v308, %v350
      %v380 = vadd.f32 %v309, %v350
      %v381 = vadd.f32 %v310, %v350
      %v382 = vadd.f32 %v311, %v350
      %v383 = vadd.f32 %v312, %v350
      %v384 = vadd.f32 %v313, %v350
      %v385 = vadd.f32 %v314, %v350
      %v386 = vadd.f32 %v315, %v350
      %v387 = vadd.f32 %v316, %v350
      %v388 = vadd.f32 %v317, %v350
      %v389 = vadd.f32 %v318, %v350
      %v390 = vadd.f32 %v319, %v350
      %v391 = vadd.f32 %v320, %v350
      %v392 = vadd.f32 %v321, %v350
      %v393 = vadd.f32 %v322, %v350
      %v394 = vadd.f32 %v323, %v350
      %v395 = vadd.f32 %v324, %v350
      %v396 = vadd.f32 %v325, %v350
      %v397 = vadd.f32 %v326, %v350
      %v398 = vadd.f32 %v327, %v350
      %v399 = vadd.f32 %v328, %v350
      %v400 = vadd.f32 %v329, %v350
      %v401 = vadd.f32 %v330, %v350
      %v402 = vadd.f32 %v331, %v350
      %v403 = vadd.f32 %v332, %v350
      %v404 = vadd.f32 %v333, %v350
      %v405 = vadd.f32 %v334, %v350
      %v406 = vadd.f32 %v335, %v350
      %v407 = vadd.f32 %v336, %v350
      %v408 = vadd.f32 %v337, %v350
      %v409 = vadd.f32 %v338, %v350
      %v410 = vadd.f32 %v339, %v350
      %v411 = vadd.f32 %v340, %v350
      %v412 = vadd.f32 %v341, %v350
      %v413 = vadd.f32 %v342, %v350
      %v414 = vadd.f32 %v343, %v350
      %v415 = vadd.f32 %v344, %v350
      %v416 = vmax.f32 %v352, 0.0
      %v417 = vmax.f32 %v353, 0.0
      %v418 = vmax.f32 %v354, 0.0
      %v419 = vmax.f32 %v355, 0.0
      %v420 = vmax.f32 %v356, 0.0
      %v421 = vmax.f32 %v357, 0.0
      %v422 = vmax.f32 %v358, 0.0
      %v423 = vmax.f32 %v359, 0.0
      %v424 = vmax.f32 %v360, 0.0
      %v425 = vmax.f32 %v361, 0.0
      %v426 = vmax.f32 %v362, 0.0
      %v427 = vmax.f32 %v363, 0.0
      %v428 = vmax.f32 %v364, 0.0
      %v429 = vmax.f32 %v365, 0.0
      %v430 = vmax.f32 %v366, 0.0
      %v431 = vmax.f32 %v367, 0.0
      %v432 = vmax.f32 %v368, 0.0
      %v433 = vmax.f32 %v369, 0.0
      %v434 = vmax.f32 %v370, 0.0
      %v435 = vmax.f32 %v371, 0.0
      %v436 = vmax.f32 %v372, 0.0
      %v437 = vmax.f32 %v373, 0.0
      %v438 = vmax.f32 %v374, 0.0
      %v439 = vmax.f32 %v375, 0.0
      %v440 = vmax.f32 %v376, 0.0
      %v441 = vmax.f32 %v377, 0.0
      %v442 = vmax.f32 %v378, 0.0
      %v443 = vmax.f32 %v379, 0.0
      %v444 = vmax.f32 %v380, 0.0
      %v445 = vmax.f32 %v381, 0.0
      %v446 = vmax.f32 %v382, 0.0
      %v447 = vmax.f32 %v383, 0.0
      %v448 = vmax.f32 %v384, 0.0
      %v449 = vmax.f32 %v385, 0.0
      %v450 = vmax.f32 %v386, 0.0
      %v451 = vmax.f32 %v387, 0.0
      %v452 = vmax.f32 %v388, 0.0
      %v453 = vmax.f32 %v389, 0.0
      %v454 = vmax.f32 %v390, 0.0
      %v455 = vmax.f32 %v391, 0.0
      %v456 = vmax.f32 %v392, 0.0
      %v457 = vmax.f32 %v393, 0.0
      %v458 = vmax.f32 %v394, 0.0
      %v459 = vmax.f32 %v395, 0.0
      %v460 = vmax.f32 %v396, 0.0
      %v461 = vmax.f32 %v397, 0.0
      %v462 = vmax.f32 %v398, 0.0
      %v463 = vmax.f32 %v399, 0.0
      %v464 = vmax.f32 %v400, 0.0
      %v465 = vmax.f32 %v401, 0.0
      %v466 = vmax.f32 %v402, 0.0
      %v467 = vmax.f32 %v403, 0.0
      %v468 = vmax.f32 %v404, 0.0
      %v469 = vmax.f32 %v405, 0.0
      %v470 = vmax.f32 %v406, 0.0
      %v471 = vmax.f32 %v407, 0.0
      %v472 = vmax.f32 %v408, 0.0
      %v473 = vmax.f32 %v409, 0.0
      %v474 = vmax.f32 %v410, 0.0
      %v475 = vmax.f32 %v411, 0.0
      %v476 = vmax.f32 %v412, 0.0
      %v477 = vmax.f32 %v413, 0.0
      %v478 = vmax.f32 %v414, 0.0
      %v479 = vmax.f32 %v415, 0.0
      %480 = vst [vmem:[%s208] sm:$0xff] %v416
      %481 = vst [vmem:[%s208 + $0x8] sm:$0xff] %v417
      %482 = vst [vmem:[%s208 + $0x10] sm:$0xff] %v418
      %483 = vst [vmem:[%s208 + $0x18] sm:$0xff] %v419
      %484 = vst [vmem:[%s208 + $0x20] sm:$0xff] %v420
      %485 = vst [vmem:[%s208 + $0x28] sm:$0xff] %v421
      %486 = vst [vmem:[%s208 + $0x30] sm:$0xff] %v422
      %487 = vst [vmem:[%s208 + $0x38] sm:$0xff] %v423
      %488 = vst [vmem:[%s208 + $0x40] sm:$0xff] %v424
      %489 = vst [vmem:[%s208 + $0x48] sm:$0xff] %v425
      %490 = vst [vmem:[%s208 + $0x50] sm:$0xff] %v426
      %491 = vst [vmem:[%s208 + $0x58] sm:$0xff] %v427
      %492 = vst [vmem:[%s208 + $0x60] sm:$0xff] %v428
      %493 = vst [vmem:[%s208 + $0x68] sm:$0xff] %v429
      %494 = vst [vmem:[%s208 + $0x70] sm:$0xff] %v430
      %495 = vst [vmem:[%s208 + $0x78] sm:$0xff] %v431
      %496 = vst [vmem:[%s208 + $0x80] sm:$0xff] %v432
      %497 = vst [vmem:[%s208 + $0x88] sm:$0xff] %v433
      %498 = vst [vmem:[%s208 + $0x90] sm:$0xff] %v434
      %499 = vst [vmem:[%s208 + $0x98] sm:$0xff] %v435
      %500 = vst [vmem:[%s208 + $0xa0] sm:$0xff] %v436
      %501 = vst [vmem:[%s208 + $0xa8] sm:$0xff] %v437
      %502 = vst [vmem:[%s208 + $0xb0] sm:$0xff] %v438
      %503 = vst [vmem:[%s208 + $0xb8] sm:$0xff] %v439
      %504 = vst [vmem:[%s208 + $0xc0] sm:$0xff] %v440
      %505 = vst [vmem:[%s208 + $0xc8] sm:$0xff] %v441
      %506 = vst [vmem:[%s208 + $0xd0] sm:$0xff] %v442
      %507 = vst [vmem:[%s208 + $0xd8] sm:$0xff] %v443
      %508 = vst [vmem:[%s208 + $0xe0] sm:$0xff] %v444
      %509 = vst [vmem:[%s208 + $0xe8] sm:$0xff] %v445
      %510 = vst [vmem:[%s208 + $0xf0] sm:$0xff] %v446
      %511 = vst [vmem:[%s208 + $0xf8] sm:$0xff] %v447
      %512 = vst [vmem:[%s208 + $0x100] sm:$0xff] %v448
      %513 = vst [vmem:[%s208 + $0x108] sm:$0xff] %v449
      %514 = vst [vmem:[%s208 + $0x110] sm:$0xff] %v450
      %515 = vst [vmem:[%s208 + $0x118] sm:$0xff] %v451
      %516 = vst [vmem:[%s208 + $0x120] sm:$0xff] %v452
      %517 = vst [vmem:[%s208 + $0x128] sm:$0xff] %v453
      %518 = vst [vmem:[%s208 + $0x130] sm:$0xff] %v454
      %519 = vst [vmem:[%s208 + $0x138] sm:$0xff] %v455
      %520 = vst [vmem:[%s208 + $0x140] sm:$0xff] %v456
      %521 = vst [vmem:[%s208 + $0x148] sm:$0xff] %v457
      %522 = vst [vmem:[%s208 + $0x150] sm:$0xff] %v458
      %523 = vst [vmem:[%s208 + $0x158] sm:$0xff] %v459
      %524 = vst [vmem:[%s208 + $0x160] sm:$0xff] %v460
      %525 = vst [vmem:[%s208 + $0x168] sm:$0xff] %v461
      %526 = vst [vmem:[%s208 + $0x170] sm:$0xff] %v462
      %527 = vst [vmem:[%s208 + $0x178] sm:$0xff] %v463
      %528 = vst [vmem:[%s208 + $0x180] sm:$0xff] %v464
      %529 = vst [vmem:[%s208 + $0x188] sm:$0xff] %v465
      %530 = vst [vmem:[%s208 + $0x190] sm:$0xff] %v466
      %531 = vst [vmem:[%s208 + $0x198] sm:$0xff] %v467
      %532 = vst [vmem:[%s208 + $0x1a0] sm:$0xff] %v468
      %533 = vst [vmem:[%s208 + $0x1a8] sm:$0xff] %v469
      %534 = vst [vmem:[%s208 + $0x1b0] sm:$0xff] %v470
      %535 = vst [vmem:[%s208 + $0x1b8] sm:$0xff] %v471
      %536 = vst [vmem:[%s208 + $0x1c0] sm:$0xff] %v472
      %537 = vst [vmem:[%s208 + $0x1c8] sm:$0xff] %v473
      %538 = vst [vmem:[%s208 + $0x1d0] sm:$0xff] %v474
      %539 = vst [vmem:[%s208 + $0x1d8] sm:$0xff] %v475
      %540 = vst [vmem:[%s208 + $0x1e0] sm:$0xff] %v476
      %541 = vst [vmem:[%s208 + $0x1e8] sm:$0xff] %v477
      %542 = vst [vmem:[%s208 + $0x1f0] sm:$0xff] %v478
      %543 = vst [vmem:[%s208 + $0x1f8] sm:$0xff] %v479
      %s544 = smul.u32 64, %s19
      %p545 = scmp.lt.s32.totalorder %s18, 3
      %s546 = scalar_select %p545, %s18, 3
      %p547 = scmp.lt.s32.totalorder %s544, 63
      %s548 = scalar_select %p547, %s544, 63
      %s549 = smul.addr %s546, 64
      %s550 = sadd.s32 %s548, %s549
      %s551 = smul.addr %s550, 8
      %s552 = scalar_lea.vmem %s3, %s551
      // Predicated region
      $region33: #{generator2d_forward.16} parent=31 // pred_check
        %p553 = pneg %p116
      $region34: #{generator2d_forward.16} parent=31 // pred_check_branch
        %555 = sbr.rel (%p553) target = $region36
      $region35: #{generator2d_forward.16} parent=31 // pred_region
        %s556 = smul.u32 64, %s19
      $region36: #{generator2d_forward.16} parent=31 // pred_fallthru
        _
    $region32: #{generator2d_forward.16} parent=5 // pred_fallthru
      _
    %p557 = scmp.le.s32.totalorder 2, %s9
    // Predicated region
    $region37: #{generator2d_forward.16} parent=5 // pred_check
      %p558 = pneg %p557
    $region38: #{generator2d_forward.16} parent=5 // pred_check_branch
      %560 = sbr.rel (%p558) target = $region40
    $region39: #{generator2d_forward.16} parent=5 // pred_region
      %s561 = ssub.s32 %s9, 2
      // Predicated region
      $region41: #{generator2d_forward.16} parent=39 // pred_check
        %p562 = pneg %p122
      $region42: #{generator2d_forward.16} parent=39 // pred_check_branch
        %564 = sbr.rel (%p562) target = $region44
      $region43: #{generator2d_forward.16} parent=39 // pred_region
        %s565 = smul.u32 64, %s21
        %p566 = scmp.lt.s32.totalorder %s20, 3
        %s567 = scalar_select %p566, %s20, 3
        %p568 = scmp.lt.s32.totalorder %s565, 63
        %s569 = scalar_select %p568, %s565, 63
        %s570 = smul.addr %s567, 64
        %s571 = sadd.s32 %s569, %s570
        %s572 = smul.addr %s571, 8
        %s573 = scalar_lea.vmem %s3, %s572
      $region44: #{generator2d_forward.16} parent=39 // pred_fallthru
        _
    $region40: #{generator2d_forward.16} parent=5 // pred_fallthru
      _
  $region6: #{generator2d_forward.16} parent=0 // loop_footer
    %s13 = sadd.s32 1, %s9
  $region7: #{generator2d_forward.16} parent=0 // loop_footer_branch
    %8 = sbr.rel target = $region3
  $region8: #{generator2d_forward.16} parent=0 // loop_exit
    _

// kernel: generator2d_forward.17
$region0: #{generator2d_forward.17}
  #allocation0 [shape = 'u32[]', space=smem, size = 0x4, offset = 0x4, fixed_abs, tag = 'smem constant byte address 0x4 - core index']
  #allocation1 [shape = 'u32[144,128]{1,0:T(1,128)}', space=vmem, size = 0x12000, scoped, tag = 'internal scratch']
  %s0 = inlined_call_operand.vmem [shape: f32[4,2048,16], index: 0, kind: input, shape index: {}]
  %s1 = inlined_call_operand.vmem [shape: f32[4,16,128], index: 1, kind: input, shape index: {}]
  %s2 = inlined_call_operand.vmem [shape: f32[4,2048,128], index: 2, kind: output, shape index: {}]
  %s3 = sld [smem:[#allocation0]]
  $region41: #{generator2d_forward.17} parent=0
    _
  %s5 = ssub.s32 1, %s3
  %s6 = scalar_select 0, %s5, %s3
  loop: start=0, step=1, limit=18
  $region2: #{generator2d_forward.17} parent=0 // loop_pre_header
    _
  $region3: #{generator2d_forward.17} parent=0 // loop_header
    %s8 = sphi 0, %s12
    %p9 = scmp.ge.s32.totalorder %s8, 18
    %s15 = sphi 0, %s27
    %s16 = sphi 0, %s23
    %s17 = sphi 0, %s15
    %s18 = sphi 0, %s16
    %s19 = sphi 0, %s17
    %s20 = sphi 0, %s18
    %s32 = sphi 0, %s34
    %s35 = sphi 0, %s32
    %s36 = sphi 0, %s35
    %s52 = sphi 0, %s36
    %s58 = sphi 0, %s60
    %s61 = sphi 0, %s58
    %s62 = sphi 0, %s61
    %s78 = sphi 0, %s62
    %s86 = sphi 0, %s88
    %s89 = sphi 0, %s86
    %s90 = sphi 0, %s89
    %s106 = sphi 0, %s90
  $region4: #{generator2d_forward.17} parent=0 // loop_header_branch
    %11 = sbr.rel (%p9) target = $region8
  $region5: #{generator2d_forward.17} parent=0 // loop_body
    %s13 = ssub.s32 %s8, 1
    %s14 = ssub.s32 %s8, 2
    %s21 = sadd.s32 1, %s16
    %p22 = scmp.ge.s32.totalorder %s21, 4
    %s23 = scalar_select %p22, 0, %s21
    %s24 = sadd.s32 1, %s15
    %s25 = scalar_select %p22, %s24, %s15
    %p26 = scmp.ge.s32.totalorder %s25, 4
    %s27 = scalar_select %p26, 0, %s25
    %s28 = ssub.s32 %s15, %s27
    %s29 = ssub.s32 %s16, %s23
    %s30 = sor.u32 %s28, %s29
    %p31 = scmp.eq.s32.totalorder %s30, 0
    %s33 = sadd.s32 %s32, 1
    %s34 = scalar_select %p31, %s32, %s33
    %p37 = pneg %p31
    %p38 = scmp.eq.s32.totalorder %s8, 15
    %p39 = por %p37, %p38
    %p40 = scmp.ne.s32.totalorder %s32, %s35
    %p41 = scmp.eq.s32.totalorder %s8, 0
    %p42 = por %p40, %p41
    %p43 = scmp.ne.s32.totalorder %s32, %s35
    %p44 = scmp.eq.s32.totalorder %s13, 15
    %p45 = por %p43, %p44
    %p46 = scmp.ne.s32.totalorder %s35, %s36
    %p47 = scmp.eq.s32.totalorder %s13, 0
    %p48 = por %p46, %p47
    %p49 = scmp.ne.s32.totalorder %s35, %s36
    %p50 = scmp.eq.s32.totalorder %s14, 15
    %p51 = por %p49, %p50
    %p53 = scmp.ne.s32.totalorder %s36, %s52
    %p54 = scmp.eq.s32.totalorder %s14, 0
    %p55 = por %p53, %p54
    %s56 = ssub.s32 %s15, %s27
    %p57 = scmp.eq.s32.totalorder %s56, 0
    %s59 = sadd.s32 %s58, 1
    %s60 = scalar_select %p57, %s58, %s59
    %p63 = pneg %p57
    %p64 = scmp.eq.s32.totalorder %s8, 15
    %p65 = por %p63, %p64
    %p66 = scmp.ne.s32.totalorder %s58, %s61
    %p67 = scmp.eq.s32.totalorder %s8, 0
    %p68 = por %p66, %p67
    %p69 = scmp.ne.s32.totalorder %s58, %s61
    %p70 = scmp.eq.s32.totalorder %s13, 15
    %p71 = por %p69, %p70
    %p72 = scmp.ne.s32.totalorder %s61, %s62
    %p73 = scmp.eq.s32.totalorder %s13, 0
    %p74 = por %p72, %p73
    %p75 = scmp.ne.s32.totalorder %s61, %s62
    %p76 = scmp.eq.s32.totalorder %s14, 15
    %p77 = por %p75, %p76
    %p79 = scmp.ne.s32.totalorder %s62, %s78
    %p80 = scmp.eq.s32.totalorder %s14, 0
    %p81 = por %p79, %p80
    %s82 = ssub.s32 %s15, %s27
    %s83 = ssub.s32 %s16, %s23
    %s84 = sor.u32 %s82, %s83
    %p85 = scmp.eq.s32.totalorder %s84, 0
    %s87 = sadd.s32 %s86, 1
    %s88 = scalar_select %p85, %s86, %s87
    %p91 = pneg %p85
    %p92 = scmp.eq.s32.totalorder %s8, 15
    %p93 = por %p91, %p92
    %p94 = scmp.ne.s32.totalorder %s86, %s89
    %p95 = scmp.eq.s32.totalorder %s8, 0
    %p96 = por %p94, %p95
    %p97 = scmp.ne.s32.totalorder %s86, %s89
    %p98 = scmp.eq.s32.totalorder %s13, 15
    %p99 = por %p97, %p98
    %p100 = scmp.ne.s32.totalorder %s89, %s90
    %p101 = scmp.eq.s32.totalorder %s13, 0
    %p102 = por %p100, %p101
    %p103 = scmp.ne.s32.totalorder %s89, %s90
    %p104 = scmp.eq.s32.totalorder %s14, 15
    %p105 = por %p103, %p104
    %p107 = scmp.ne.s32.totalorder %s90, %s106
    %p108 = scmp.eq.s32.totalorder %s14, 0
    %p109 = por %p107, %p108
    %p110 = scmp.le.s32.totalorder 1, %s8
    %p111 = scmp.lt.s32.totalorder %s8, 17
    %p112 = pnand %p110, %p111
    %p113 = pneg %p112
    // Predicated region
    $region9: #{generator2d_forward.17} parent=5 // pred_check
      _
    $region10: #{generator2d_forward.17} parent=5 // pred_check_branch
      %115 = sbr.rel (%p112) target = $region12
    $region11: #{generator2d_forward.17} parent=5 // pred_region
      %s116 = ssub.s32 %s8, 1
    $region12: #{generator2d_forward.17} parent=5 // pred_fallthru
      _
    %p117 = scmp.lt.s32.totalorder %s8, 16
    // Predicated region
    $region13: #{generator2d_forward.17} parent=5 // pred_check
      %p118 = pneg %p117
    $region14: #{generator2d_forward.17} parent=5 // pred_check_branch
      %120 = sbr.rel (%p118) target = $region16
    $region15: #{generator2d_forward.17} parent=5 // pred_region
      // Predicated region
      $region17: #{generator2d_forward.17} parent=15 // pred_check
        %p121 = pneg %p42
      $region18: #{generator2d_forward.17} parent=15 // pred_check_branch
        %123 = sbr.rel (%p121) target = $region20
      $region19: #{generator2d_forward.17} parent=15 // pred_region
        %s124 = smul.u32 64, %s16
        %p125 = scmp.lt.s32.totalorder %s15, 3
        %s126 = scalar_select %p125, %s15, 3
        %p127 = scmp.lt.s32.totalorder %s124, 255
        %s128 = scalar_select %p127, %s124, 255
        %s129 = smul.addr %s126, 256
        %s130 = sadd.s32 %s128, %s129
        %s131 = smul.addr %s130, 8
        %s132 = scalar_lea.vmem %s0, %s131
        %s133 = smul.u32 64, %s16
      $region20: #{generator2d_forward.17} parent=15 // pred_fallthru
        _
      // Predicated region
      $region21: #{generator2d_forward.17} parent=15 // pred_check
        %p134 = pneg %p68
      $region22: #{generator2d_forward.17} parent=15 // pred_check_branch
        %136 = sbr.rel (%p134) target = $region24
      $region23: #{generator2d_forward.17} parent=15 // pred_region
        %p137 = scmp.lt.s32.totalorder %s15, 3
        %s138 = scalar_select %p137, %s15, 3
        %s139 = smul.addr %s138, 2
        %s140 = smul.addr %s139, 8
        %s141 = scalar_lea.vmem %s1, %s140
      $region24: #{generator2d_forward.17} parent=15 // pred_fallthru
        _
    $region16: #{generator2d_forward.17} parent=5 // pred_fallthru
      _
    %p142 = scmp.le.s32.totalorder 1, %s8
    %p143 = scmp.lt.s32.totalorder %s8, 17
    %p144 = pnand %p142, %p143
    %p145 = pneg %p144
    // Predicated region
    $region25: #{generator2d_forward.17} parent=5 // pred_check
      _
    $region26: #{generator2d_forward.17} parent=5 // pred_check_branch
      %147 = sbr.rel (%p144) target = $region28
    $region27: #{generator2d_forward.17} parent=5 // pred_region
      %s148 = ssub.s32 %s8, 1
      %s149 = smul.u32 64, %s18
      %p150 = scmp.lt.s32.totalorder %s17, 3
      %s151 = scalar_select %p150, %s17, 3
      %p152 = scmp.lt.s32.totalorder %s149, 255
      %s153 = scalar_select %p152, %s149, 255
      %s154 = smul.addr %s151, 256
      %s155 = sadd.s32 %s153, %s154
      %s156 = smul.addr %s155, 8
      %s157 = scalar_lea.vmem %s0, %s156
      %p158 = pneg %p48
      %p159 = pneg %p45
      %p160 = scmp.lt.s32.totalorder %s17, 3
      %s161 = scalar_select %p160, %s17, 3
      %s162 = smul.addr %s161, 2
      %s163 = smul.addr %s162, 8
      %s164 = scalar_lea.vmem %s1, %s163
      %p165 = pneg %p74
      %p166 = pneg %p71
      %p167 = pneg %p102
      %p168 = pneg %p99
      %s169 = smul.u32 64, %s18
      %p170 = scmp.lt.s32.totalorder %s17, 3
      %s171 = scalar_select %p170, %s17, 3
      %p172 = scmp.lt.s32.totalorder %s169, 255
      %s173 = scalar_select %p172, %s169, 255
      %s174 = smul.addr %s171, 256
      %s175 = sadd.s32 %s173, %s174
      %s176 = smul.addr %s175, 8
      %s177 = scalar_lea.vmem %s2, %s176
      %s178 = smul.u32 64, %s18
      %p179 = scmp.lt.s32.totalorder %s17, 3
      %s180 = scalar_select %p179, %s17, 3
      %p181 = scmp.lt.s32.totalorder %s178, 255
      %s182 = scalar_select %p181, %s178, 255
      %s183 = smul.addr %s180, 256
      %s184 = sadd.s32 %s182, %s183
      %s185 = smul.addr %s184, 8
      %s186 = scalar_lea.vmem %s0, %s185
      %s187 = smul.u32 64, %s18
      %p188 = scmp.lt.s32.totalorder %s17, 3
      %s189 = scalar_select %p188, %s17, 3
      %s190 = smul.addr %s189, 2
      %s191 = smul.addr %s190, 8
      %s192 = scalar_lea.vmem %s1, %s191
      %s193 = smul.u32 64, %s18
      %p194 = scmp.lt.s32.totalorder %s17, 3
      %s195 = scalar_select %p194, %s17, 3
      %p196 = scmp.lt.s32.totalorder %s193, 255
      %s197 = scalar_select %p196, %s193, 255
      %s198 = smul.addr %s195, 256
      %s199 = sadd.s32 %s197, %s198
      %s200 = smul.addr %s199, 8
      %s201 = scalar_lea.vmem %s2, %s200
      %s202 = smul.u32 64, %s18
      %v203 = vld [vmem:[%s186] sm:$0xff]
      %v204 = vld [vmem:[%s186 + $0x8] sm:$0xff]
      %v205 = vld [vmem:[%s186 + $0x10] sm:$0xff]
      %v206 = vld [vmem:[%s186 + $0x18] sm:$0xff]
      %v207 = vld [vmem:[%s186 + $0x20] sm:$0xff]
      %v208 = vld [vmem:[%s186 + $0x28] sm:$0xff]
      %v209 = vld [vmem:[%s186 + $0x30] sm:$0xff]
      %v210 = vld [vmem:[%s186 + $0x38] sm:$0xff]
      %v211 = vld [vmem:[%s186 + $0x40] sm:$0xff]
      %v212 = vld [vmem:[%s186 + $0x48] sm:$0xff]
      %v213 = vld [vmem:[%s186 + $0x50] sm:$0xff]
      %v214 = vld [vmem:[%s186 + $0x58] sm:$0xff]
      %v215 = vld [vmem:[%s186 + $0x60] sm:$0xff]
      %v216 = vld [vmem:[%s186 + $0x68] sm:$0xff]
      %v217 = vld [vmem:[%s186 + $0x70] sm:$0xff]
      %v218 = vld [vmem:[%s186 + $0x78] sm:$0xff]
      %v219 = vld [vmem:[%s186 + $0x80] sm:$0xff]
      %v220 = vld [vmem:[%s186 + $0x88] sm:$0xff]
      %v221 = vld [vmem:[%s186 + $0x90] sm:$0xff]
      %v222 = vld [vmem:[%s186 + $0x98] sm:$0xff]
      %v223 = vld [vmem:[%s186 + $0xa0] sm:$0xff]
      %v224 = vld [vmem:[%s186 + $0xa8] sm:$0xff]
      %v225 = vld [vmem:[%s186 + $0xb0] sm:$0xff]
      %v226 = vld [vmem:[%s186 + $0xb8] sm:$0xff]
      %v227 = vld [vmem:[%s186 + $0xc0] sm:$0xff]
      %v228 = vld [vmem:[%s186 + $0xc8] sm:$0xff]
      %v229 = vld [vmem:[%s186 + $0xd0] sm:$0xff]
      %v230 = vld [vmem:[%s186 + $0xd8] sm:$0xff]
      %v231 = vld [vmem:[%s186 + $0xe0] sm:$0xff]
      %v232 = vld [vmem:[%s186 + $0xe8] sm:$0xff]
      %v233 = vld [vmem:[%s186 + $0xf0] sm:$0xff]
      %v234 = vld [vmem:[%s186 + $0xf8] sm:$0xff]
      %v235 = vld [vmem:[%s186 + $0x100] sm:$0xff]
      %v236 = vld [vmem:[%s186 + $0x108] sm:$0xff]
      %v237 = vld [vmem:[%s186 + $0x110] sm:$0xff]
      %v238 = vld [vmem:[%s186 + $0x118] sm:$0xff]
      %v239 = vld [vmem:[%s186 + $0x120] sm:$0xff]
      %v240 = vld [vmem:[%s186 + $0x128] sm:$0xff]
      %v241 = vld [vmem:[%s186 + $0x130] sm:$0xff]
      %v242 = vld [vmem:[%s186 + $0x138] sm:$0xff]
      %v243 = vld [vmem:[%s186 + $0x140] sm:$0xff]
      %v244 = vld [vmem:[%s186 + $0x148] sm:$0xff]
      %v245 = vld [vmem:[%s186 + $0x150] sm:$0xff]
      %v246 = vld [vmem:[%s186 + $0x158] sm:$0xff]
      %v247 = vld [vmem:[%s186 + $0x160] sm:$0xff]
      %v248 = vld [vmem:[%s186 + $0x168] sm:$0xff]
      %v249 = vld [vmem:[%s186 + $0x170] sm:$0xff]
      %v250 = vld [vmem:[%s186 + $0x178] sm:$0xff]
      %v251 = vld [vmem:[%s186 + $0x180] sm:$0xff]
      %v252 = vld [vmem:[%s186 + $0x188] sm:$0xff]
      %v253 = vld [vmem:[%s186 + $0x190] sm:$0xff]
      %v254 = vld [vmem:[%s186 + $0x198] sm:$0xff]
      %v255 = vld [vmem:[%s186 + $0x1a0] sm:$0xff]
      %v256 = vld [vmem:[%s186 + $0x1a8] sm:$0xff]
      %v257 = vld [vmem:[%s186 + $0x1b0] sm:$0xff]
      %v258 = vld [vmem:[%s186 + $0x1b8] sm:$0xff]
      %v259 = vld [vmem:[%s186 + $0x1c0] sm:$0xff]
      %v260 = vld [vmem:[%s186 + $0x1c8] sm:$0xff]
      %v261 = vld [vmem:[%s186 + $0x1d0] sm:$0xff]
      %v262 = vld [vmem:[%s186 + $0x1d8] sm:$0xff]
      %v263 = vld [vmem:[%s186 + $0x1e0] sm:$0xff]
      %v264 = vld [vmem:[%s186 + $0x1e8] sm:$0xff]
      %v265 = vld [vmem:[%s186 + $0x1f0] sm:$0xff]
      %v266 = vld [vmem:[%s186 + $0x1f8] sm:$0xff]
      %v267 = vld [vmem:[%s192] sm:$0xff]
      %v268 = vld [vmem:[%s192 + $0x8] sm:$0xff]
      %vm269 = vcmask 130048
      %v271 = vsel %vm269, %v203, 0
      %v274 = vsel %vm269, %v204, 0
      %v277 = vsel %vm269, %v205, 0
      %v280 = vsel %vm269, %v206, 0
      %v283 = vsel %vm269, %v207, 0
      %v286 = vsel %vm269, %v208, 0
      %v289 = vsel %vm269, %v209, 0
      %v292 = vsel %vm269, %v210, 0
      %v295 = vsel %vm269, %v211, 0
      %v298 = vsel %vm269, %v212, 0
      %v301 = vsel %vm269, %v213, 0
      %v304 = vsel %vm269, %v214, 0
      %v307 = vsel %vm269, %v215, 0
      %v310 = vsel %vm269, %v216, 0
      %v313 = vsel %vm269, %v217, 0
      %v316 = vsel %vm269, %v218, 0
      %v319 = vsel %vm269, %v219, 0
      %v322 = vsel %vm269, %v220, 0
      %v325 = vsel %vm269, %v221, 0
      %v328 = vsel %vm269, %v222, 0
      %v331 = vsel %vm269, %v223, 0
      %v334 = vsel %vm269, %v224, 0
      %v337 = vsel %vm269, %v225, 0
      %v340 = vsel %vm269, %v226, 0
      %v343 = vsel %vm269, %v227, 0
      %v346 = vsel %vm269, %v228, 0
      %v349 = vsel %vm269, %v229, 0
      %v352 = vsel %vm269, %v230, 0
      %v355 = vsel %vm269, %v231, 0
      %v358 = vsel %vm269, %v232, 0
      %v361 = vsel %vm269, %v233, 0
      %v364 = vsel %vm269, %v234, 0
      %v367 = vsel %vm269, %v235, 0
      %v370 = vsel %vm269, %v236, 0
      %v373 = vsel %vm269, %v237, 0
      %v376 = vsel %vm269, %v238, 0
      %v379 = vsel %vm269, %v239, 0
      %v382 = vsel %vm269, %v240, 0
      %v385 = vsel %vm269, %v241, 0
      %v388 = vsel %vm269, %v242, 0
      %v391 = vsel %vm269, %v243, 0
      %v394 = vsel %vm269, %v244, 0
      %v397 = vsel %vm269, %v245, 0
      %v400 = vsel %vm269, %v246, 0
      %v403 = vsel %vm269, %v247, 0
      %v406 = vsel %vm269, %v248, 0
      %v409 = vsel %vm269, %v249, 0
      %v412 = vsel %vm269, %v250, 0
      %v415 = vsel %vm269, %v251, 0
      %v418 = vsel %vm269, %v252, 0
      %v421 = vsel %vm269, %v253, 0
      %v424 = vsel %vm269, %v254, 0
      %v427 = vsel %vm269, %v255, 0
      %v430 = vsel %vm269, %v256, 0
      %v433 = vsel %vm269, %v257, 0
      %v436 = vsel %vm269, %v258, 0
      %v439 = vsel %vm269, %v259, 0
      %v442 = vsel %vm269, %v260, 0
      %v445 = vsel %vm269, %v261, 0
      %v448 = vsel %vm269, %v262, 0
      %v451 = vsel %vm269, %v263, 0
      %v454 = vsel %vm269, %v264, 0
      %v457 = vsel %vm269, %v265, 0
      %v460 = vsel %vm269, %v266, 0
      %462 = vmatprep.subr.mxu0 0.0
      %463 = vmatpush1.msra.mxu0 0.0
      %464 = vmatprep.subr.mxu0 0.0
      %465 = vmatpush1.msra.mxu0 0.0
      %466 = vmatprep.subr.mxu0 0.0
      %467 = vmatpush1.msra.mxu0 0.0
      %468 = vmatprep.subr.mxu0 0.0
      %469 = vmatpush1.msra.mxu0 0.0
      %470 = vmatprep.subr.mxu0 0.0
      %471 = vmatpush1.msra.mxu0 0.0
      %472 = vmatprep.subr.mxu0 0.0
      %473 = vmatpush1.msra.mxu0 0.0
      %474 = vmatprep.subr.mxu0 0.0
      %475 = vmatpush1.msra.mxu0 0.0
      %476 = vmatprep.subr.mxu0 0.0
      %477 = vmatpush1.msra.mxu0 0.0
      %478 = vmatprep.subr.mxu0 0.0
      %479 = vmatpush1.msra.mxu0 0.0
      %480 = vmatprep.subr.mxu0 0.0
      %481 = vmatpush1.msra.mxu0 0.0
      %482 = vmatprep.subr.mxu0 0.0
      %483 = vmatpush1.msra.mxu0 0.0
      %484 = vmatprep.subr.mxu0 0.0
      %485 = vmatpush1.msra.mxu0 0.0
      %486 = vmatprep.subr.mxu0 0.0
      %487 = vmatpush1.msra.mxu0 0.0
      %488 = vmatprep.subr.mxu0 0.0
      %489 = vmatpush1.msra.mxu0 0.0
      %490 = vmatprep.subr.mxu0 0.0
      %491 = vmatpush1.msra.mxu0 %v268
      %492 = vmatprep.subr.mxu0 0.0
      %493 = vmatpush1.msra.mxu0 %v267
      %494 = vmatprep.subr.mxu0 0.0
      %495 = vmatpush2.msra.mxu0 0.0
      %496 = vmatprep.subr.mxu0 0.0
      %497 = vmatpush2.msra.mxu0 0.0
      %498 = vmatprep.subr.mxu0 0.0
      %499 = vmatpush2.msra.mxu0 0.0
      %500 = vmatprep.subr.mxu0 0.0
      %501 = vmatpush2.msra.mxu0 0.0
      %502 = vmatprep.subr.mxu0 0.0
      %503 = vmatpush2.msra.mxu0 0.0
      %504 = vmatprep.subr.mxu0 0.0
      %505 = vmatpush2.msra.mxu0 0.0
      %506 = vmatprep.subr.mxu0 0.0
      %507 = vmatpush2.msra.mxu0 0.0
      %508 = vmatprep.subr.mxu0 0.0
      %509 = vmatpush2.msra.mxu0 0.0
      %510 = vmatprep.subr.mxu0 0.0
      %511 = vmatpush2.msra.mxu0 0.0
      %512 = vmatprep.subr.mxu0 0.0
      %513 = vmatpush2.msra.mxu0 0.0
      %514 = vmatprep.subr.mxu0 0.0
      %515 = vmatpush2.msra.mxu0 0.0
      %516 = vmatprep.subr.mxu0 0.0
      %517 = vmatpush2.msra.mxu0 0.0
      %518 = vmatprep.subr.mxu0 0.0
      %519 = vmatpush2.msra.mxu0 0.0
      %520 = vmatprep.subr.mxu0 0.0
      %521 = vmatpush2.msra.mxu0 0.0
      %522 = vmatprep.subr.mxu0 0.0
      %523 = vmatpush2.msra.mxu0 0.0
      %524 = vmatprep.subr.mxu0 0.0
      %525 = vmatpush2.msra.mxu0 0.0
      %526 = vmatprep.mubr.f32.mxu0 0.0
      %527 = vmatmul.mubr.f32.gmra.mxu0 %v271
      %v528 = vpop.f32.mrf.mxu0
      %v529 = vadd.f32 0.0, %v528
      %v530 = vpop.f32.mrf.mxu0
      %531 = vmatprep.mubr.f32.mxu0 0.0
      %532 = vmatmul.mubr.f32.gmra.mxu0 %v274
      %v533 = vpop.f32.mrf.mxu0
      %v534 = vadd.f32 0.0, %v533
      %v535 = vpop.f32.mrf.mxu0
      %536 = vmatprep.mubr.f32.mxu0 0.0
      %537 = vmatmul.mubr.f32.gmra.mxu0 %v277
      %v538 = vpop.f32.mrf.mxu0
      %v539 = vadd.f32 0.0, %v538
      %v540 = vpop.f32.mrf.mxu0
      %541 = vmatprep.mubr.f32.mxu0 0.0
      %542 = vmatmul.mubr.f32.gmra.mxu0 %v280
      %v543 = vpop.f32.mrf.mxu0
      %v544 = vadd.f32 0.0, %v543
      %v545 = vpop.f32.mrf.mxu0
      %546 = vmatprep.mubr.f32.mxu0 0.0
      %547 = vmatmul.mubr.f32.gmra.mxu0 %v283
      %v548 = vpop.f32.mrf.mxu0
      %v549 = vadd.f32 0.0, %v548
      %v550 = vpop.f32.mrf.mxu0
      %551 = vmatprep.mubr.f32.mxu0 0.0
      %552 = vmatmul.mubr.f32.gmra.mxu0 %v286
      %v553 = vpop.f32.mrf.mxu0
      %v554 = vadd.f32 0.0, %v553
      %v555 = vpop.f32.mrf.mxu0
      %556 = vmatprep.mubr.f32.mxu0 0.0
      %557 = vmatmul.mubr.f32.gmra.mxu0 %v289
      %v558 = vpop.f32.mrf.mxu0
      %v559 = vadd.f32 0.0, %v558
      %v560 = vpop.f32.mrf.mxu0
      %561 = vmatprep.mubr.f32.mxu0 0.0
      %562 = vmatmul.mubr.f32.gmra.mxu0 %v292
      %v563 = vpop.f32.mrf.mxu0
      %v564 = vadd.f32 0.0, %v563
      %v565 = vpop.f32.mrf.mxu0
      %566 = vmatprep.mubr.f32.mxu0 0.0
      %567 = vmatmul.mubr.f32.gmra.mxu0 %v295
      %v568 = vpop.f32.mrf.mxu0
      %v569 = vadd.f32 0.0, %v568
      %v570 = vpop.f32.mrf.mxu0
      %571 = vmatprep.mubr.f32.mxu0 0.0
      %572 = vmatmul.mubr.f32.gmra.mxu0 %v298
      %v573 = vpop.f32.mrf.mxu0
      %v574 = vadd.f32 0.0, %v573
      %v575 = vpop.f32.mrf.mxu0
      %576 = vmatprep.mubr.f32.mxu0 0.0
      %577 = vmatmul.mubr.f32.gmra.mxu0 %v301
      %v578 = vpop.f32.mrf.mxu0
      %v579 = vadd.f32 0.0, %v578
      %v580 = vpop.f32.mrf.mxu0
      %581 = vmatprep.mubr.f32.mxu0 0.0
      %582 = vmatmul.mubr.f32.gmra.mxu0 %v304
      %v583 = vpop.f32.mrf.mxu0
      %v584 = vadd.f32 0.0, %v583
      %v585 = vpop.f32.mrf.mxu0
      %586 = vmatprep.mubr.f32.mxu0 0.0
      %587 = vmatmul.mubr.f32.gmra.mxu0 %v307
      %v588 = vpop.f32.mrf.mxu0
      %v589 = vadd.f32 0.0, %v588
      %v590 = vpop.f32.mrf.mxu0
      %591 = vmatprep.mubr.f32.mxu0 0.0
      %592 = vmatmul.mubr.f32.gmra.mxu0 %v310
      %v593 = vpop.f32.mrf.mxu0
      %v594 = vadd.f32 0.0, %v593
      %v595 = vpop.f32.mrf.mxu0
      %596 = vmatprep.mubr.f32.mxu0 0.0
      %597 = vmatmul.mubr.f32.gmra.mxu0 %v313
      %v598 = vpop.f32.mrf.mxu0
      %v599 = vadd.f32 0.0, %v598
      %v600 = vpop.f32.mrf.mxu0
      %601 = vmatprep.mubr.f32.mxu0 0.0
      %602 = vmatmul.mubr.f32.gmra.mxu0 %v316
      %v603 = vpop.f32.mrf.mxu0
      %v604 = vadd.f32 0.0, %v603
      %v605 = vpop.f32.mrf.mxu0
      %606 = vmatprep.mubr.f32.mxu0 0.0
      %607 = vmatmul.mubr.f32.gmra.mxu0 %v319
      %v608 = vpop.f32.mrf.mxu0
      %v609 = vadd.f32 0.0, %v608
      %v610 = vpop.f32.mrf.mxu0
      %611 = vmatprep.mubr.f32.mxu0 0.0
      %612 = vmatmul.mubr.f32.gmra.mxu0 %v322
      %v613 = vpop.f32.mrf.mxu0
      %v614 = vadd.f32 0.0, %v613
      %v615 = vpop.f32.mrf.mxu0
      %616 = vmatprep.mubr.f32.mxu0 0.0
      %617 = vmatmul.mubr.f32.gmra.mxu0 %v325
      %v618 = vpop.f32.mrf.mxu0
      %v619 = vadd.f32 0.0, %v618
      %v620 = vpop.f32.mrf.mxu0
      %621 = vmatprep.mubr.f32.mxu0 0.0
      %622 = vmatmul.mubr.f32.gmra.mxu0 %v328
      %v623 = vpop.f32.mrf.mxu0
      %v624 = vadd.f32 0.0, %v623
      %v625 = vpop.f32.mrf.mxu0
      %626 = vmatprep.mubr.f32.mxu0 0.0
      %627 = vmatmul.mubr.f32.gmra.mxu0 %v331
      %v628 = vpop.f32.mrf.mxu0
      %v629 = vadd.f32 0.0, %v628
      %v630 = vpop.f32.mrf.mxu0
      %631 = vmatprep.mubr.f32.mxu0 0.0
      %632 = vmatmul.mubr.f32.gmra.mxu0 %v334
      %v633 = vpop.f32.mrf.mxu0
      %v634 = vadd.f32 0.0, %v633
      %v635 = vpop.f32.mrf.mxu0
      %636 = vmatprep.mubr.f32.mxu0 0.0
      %637 = vmatmul.mubr.f32.gmra.mxu0 %v337
      %v638 = vpop.f32.mrf.mxu0
      %v639 = vadd.f32 0.0, %v638
      %v640 = vpop.f32.mrf.mxu0
      %641 = vmatprep.mubr.f32.mxu0 0.0
      %642 = vmatmul.mubr.f32.gmra.mxu0 %v340
      %v643 = vpop.f32.mrf.mxu0
      %v644 = vadd.f32 0.0, %v643
      %v645 = vpop.f32.mrf.mxu0
      %646 = vmatprep.mubr.f32.mxu0 0.0
      %647 = vmatmul.mubr.f32.gmra.mxu0 %v343
      %v648 = vpop.f32.mrf.mxu0
      %v649 = vadd.f32 0.0, %v648
      %v650 = vpop.f32.mrf.mxu0
      %651 = vmatprep.mubr.f32.mxu0 0.0
      %652 = vmatmul.mubr.f32.gmra.mxu0 %v346
      %v653 = vpop.f32.mrf.mxu0
      %v654 = vadd.f32 0.0, %v653
      %v655 = vpop.f32.mrf.mxu0
      %656 = vmatprep.mubr.f32.mxu0 0.0
      %657 = vmatmul.mubr.f32.gmra.mxu0 %v349
      %v658 = vpop.f32.mrf.mxu0
      %v659 = vadd.f32 0.0, %v658
      %v660 = vpop.f32.mrf.mxu0
      %661 = vmatprep.mubr.f32.mxu0 0.0
      %662 = vmatmul.mubr.f32.gmra.mxu0 %v352
      %v663 = vpop.f32.mrf.mxu0
      %v664 = vadd.f32 0.0, %v663
      %v665 = vpop.f32.mrf.mxu0
      %666 = vmatprep.mubr.f32.mxu0 0.0
      %667 = vmatmul.mubr.f32.gmra.mxu0 %v355
      %v668 = vpop.f32.mrf.mxu0
      %v669 = vadd.f32 0.0, %v668
      %v670 = vpop.f32.mrf.mxu0
      %671 = vmatprep.mubr.f32.mxu0 0.0
      %672 = vmatmul.mubr.f32.gmra.mxu0 %v358
      %v673 = vpop.f32.mrf.mxu0
      %v674 = vadd.f32 0.0, %v673
      %v675 = vpop.f32.mrf.mxu0
      %676 = vmatprep.mubr.f32.mxu0 0.0
      %677 = vmatmul.mubr.f32.gmra.mxu0 %v361
      %v678 = vpop.f32.mrf.mxu0
      %v679 = vadd.f32 0.0, %v678
      %v680 = vpop.f32.mrf.mxu0
      %681 = vmatprep.mubr.f32.mxu0 0.0
      %682 = vmatmul.mubr.f32.gmra.mxu0 %v364
      %v683 = vpop.f32.mrf.mxu0
      %v684 = vadd.f32 0.0, %v683
      %v685 = vpop.f32.mrf.mxu0
      %686 = vmatprep.mubr.f32.mxu0 0.0
      %687 = vmatmul.mubr.f32.gmra.mxu0 %v367
      %v688 = vpop.f32.mrf.mxu0
      %v689 = vadd.f32 0.0, %v688
      %v690 = vpop.f32.mrf.mxu0
      %691 = vmatprep.mubr.f32.mxu0 0.0
      %692 = vmatmul.mubr.f32.gmra.mxu0 %v370
      %v693 = vpop.f32.mrf.mxu0
      %v694 = vadd.f32 0.0, %v693
      %v695 = vpop.f32.mrf.mxu0
      %696 = vmatprep.mubr.f32.mxu0 0.0
      %697 = vmatmul.mubr.f32.gmra.mxu0 %v373
      %v698 = vpop.f32.mrf.mxu0
      %v699 = vadd.f32 0.0, %v698
      %v700 = vpop.f32.mrf.mxu0
      %701 = vmatprep.mubr.f32.mxu0 0.0
      %702 = vmatmul.mubr.f32.gmra.mxu0 %v376
      %v703 = vpop.f32.mrf.mxu0
      %v704 = vadd.f32 0.0, %v703
      %v705 = vpop.f32.mrf.mxu0
      %706 = vmatprep.mubr.f32.mxu0 0.0
      %707 = vmatmul.mubr.f32.gmra.mxu0 %v379
      %v708 = vpop.f32.mrf.mxu0
      %v709 = vadd.f32 0.0, %v708
      %v710 = vpop.f32.mrf.mxu0
      %711 = vmatprep.mubr.f32.mxu0 0.0
      %712 = vmatmul.mubr.f32.gmra.mxu0 %v382
      %v713 = vpop.f32.mrf.mxu0
      %v714 = vadd.f32 0.0, %v713
      %v715 = vpop.f32.mrf.mxu0
      %716 = vmatprep.mubr.f32.mxu0 0.0
      %717 = vmatmul.mubr.f32.gmra.mxu0 %v385
      %v718 = vpop.f32.mrf.mxu0
      %v719 = vadd.f32 0.0, %v718
      %v720 = vpop.f32.mrf.mxu0
      %721 = vmatprep.mubr.f32.mxu0 0.0
      %722 = vmatmul.mubr.f32.gmra.mxu0 %v388
      %v723 = vpop.f32.mrf.mxu0
      %v724 = vadd.f32 0.0, %v723
      %v725 = vpop.f32.mrf.mxu0
      %726 = vmatprep.mubr.f32.mxu0 0.0
      %727 = vmatmul.mubr.f32.gmra.mxu0 %v391
      %v728 = vpop.f32.mrf.mxu0
      %v729 = vadd.f32 0.0, %v728
      %v730 = vpop.f32.mrf.mxu0
      %731 = vmatprep.mubr.f32.mxu0 0.0
      %732 = vmatmul.mubr.f32.gmra.mxu0 %v394
      %v733 = vpop.f32.mrf.mxu0
      %v734 = vadd.f32 0.0, %v733
      %v735 = vpop.f32.mrf.mxu0
      %736 = vmatprep.mubr.f32.mxu0 0.0
      %737 = vmatmul.mubr.f32.gmra.mxu0 %v397
      %v738 = vpop.f32.mrf.mxu0
      %v739 = vadd.f32 0.0, %v738
      %v740 = vpop.f32.mrf.mxu0
      %741 = vmatprep.mubr.f32.mxu0 0.0
      %742 = vmatmul.mubr.f32.gmra.mxu0 %v400
      %v743 = vpop.f32.mrf.mxu0
      %v744 = vadd.f32 0.0, %v743
      %v745 = vpop.f32.mrf.mxu0
      %746 = vmatprep.mubr.f32.mxu0 0.0
      %747 = vmatmul.mubr.f32.gmra.mxu0 %v403
      %v748 = vpop.f32.mrf.mxu0
      %v749 = vadd.f32 0.0, %v748
      %v750 = vpop.f32.mrf.mxu0
      %751 = vmatprep.mubr.f32.mxu0 0.0
      %752 = vmatmul.mubr.f32.gmra.mxu0 %v406
      %v753 = vpop.f32.mrf.mxu0
      %v754 = vadd.f32 0.0, %v753
      %v755 = vpop.f32.mrf.mxu0
      %756 = vmatprep.mubr.f32.mxu0 0.0
      %757 = vmatmul.mubr.f32.gmra.mxu0 %v409
      %v758 = vpop.f32.mrf.mxu0
      %v759 = vadd.f32 0.0, %v758
      %v760 = vpop.f32.mrf.mxu0
      %761 = vmatprep.mubr.f32.mxu0 0.0
      %762 = vmatmul.mubr.f32.gmra.mxu0 %v412
      %v763 = vpop.f32.mrf.mxu0
      %v764 = vadd.f32 0.0, %v763
      %v765 = vpop.f32.mrf.mxu0
      %766 = vmatprep.mubr.f32.mxu0 0.0
      %767 = vmatmul.mubr.f32.gmra.mxu0 %v415
      %v768 = vpop.f32.mrf.mxu0
      %v769 = vadd.f32 0.0, %v768
      %v770 = vpop.f32.mrf.mxu0
      %771 = vmatprep.mubr.f32.mxu0 0.0
      %772 = vmatmul.mubr.f32.gmra.mxu0 %v418
      %v773 = vpop.f32.mrf.mxu0
      %v774 = vadd.f32 0.0, %v773
      %v775 = vpop.f32.mrf.mxu0
      %776 = vmatprep.mubr.f32.mxu0 0.0
      %777 = vmatmul.mubr.f32.gmra.mxu0 %v421
      %v778 = vpop.f32.mrf.mxu0
      %v779 = vadd.f32 0.0, %v778
      %v780 = vpop.f32.mrf.mxu0
      %781 = vmatprep.mubr.f32.mxu0 0.0
      %782 = vmatmul.mubr.f32.gmra.mxu0 %v424
      %v783 = vpop.f32.mrf.mxu0
      %v784 = vadd.f32 0.0, %v783
      %v785 = vpop.f32.mrf.mxu0
      %786 = vmatprep.mubr.f32.mxu0 0.0
      %787 = vmatmul.mubr.f32.gmra.mxu0 %v427
      %v788 = vpop.f32.mrf.mxu0
      %v789 = vadd.f32 0.0, %v788
      %v790 = vpop.f32.mrf.mxu0
      %791 = vmatprep.mubr.f32.mxu0 0.0
      %792 = vmatmul.mubr.f32.gmra.mxu0 %v430
      %v793 = vpop.f32.mrf.mxu0
      %v794 = vadd.f32 0.0, %v793
      %v795 = vpop.f32.mrf.mxu0
      %796 = vmatprep.mubr.f32.mxu0 0.0
      %797 = vmatmul.mubr.f32.gmra.mxu0 %v433
      %v798 = vpop.f32.mrf.mxu0
      %v799 = vadd.f32 0.0, %v798
      %v800 = vpop.f32.mrf.mxu0
      %801 = vmatprep.mubr.f32.mxu0 0.0
      %802 = vmatmul.mubr.f32.gmra.mxu0 %v436
      %v803 = vpop.f32.mrf.mxu0
      %v804 = vadd.f32 0.0, %v803
      %v805 = vpop.f32.mrf.mxu0
      %806 = vmatprep.mubr.f32.mxu0 0.0
      %807 = vmatmul.mubr.f32.gmra.mxu0 %v439
      %v808 = vpop.f32.mrf.mxu0
      %v809 = vadd.f32 0.0, %v808
      %v810 = vpop.f32.mrf.mxu0
      %811 = vmatprep.mubr.f32.mxu0 0.0
      %812 = vmatmul.mubr.f32.gmra.mxu0 %v442
      %v813 = vpop.f32.mrf.mxu0
      %v814 = vadd.f32 0.0, %v813
      %v815 = vpop.f32.mrf.mxu0
      %816 = vmatprep.mubr.f32.mxu0 0.0
      %817 = vmatmul.mubr.f32.gmra.mxu0 %v445
      %v818 = vpop.f32.mrf.mxu0
      %v819 = vadd.f32 0.0, %v818
      %v820 = vpop.f32.mrf.mxu0
      %821 = vmatprep.mubr.f32.mxu0 0.0
      %822 = vmatmul.mubr.f32.gmra.mxu0 %v448
      %v823 = vpop.f32.mrf.mxu0
      %v824 = vadd.f32 0.0, %v823
      %v825 = vpop.f32.mrf.mxu0
      %826 = vmatprep.mubr.f32.mxu0 0.0
      %827 = vmatmul.mubr.f32.gmra.mxu0 %v451
      %v828 = vpop.f32.mrf.mxu0
      %v829 = vadd.f32 0.0, %v828
      %v830 = vpop.f32.mrf.mxu0
      %831 = vmatprep.mubr.f32.mxu0 0.0
      %832 = vmatmul.mubr.f32.gmra.mxu0 %v454
      %v833 = vpop.f32.mrf.mxu0
      %v834 = vadd.f32 0.0, %v833
      %v835 = vpop.f32.mrf.mxu0
      %836 = vmatprep.mubr.f32.mxu0 0.0
      %837 = vmatmul.mubr.f32.gmra.mxu0 %v457
      %v838 = vpop.f32.mrf.mxu0
      %v839 = vadd.f32 0.0, %v838
      %v840 = vpop.f32.mrf.mxu0
      %841 = vmatprep.mubr.f32.mxu0 0.0
      %842 = vmatmul.mubr.f32.gmra.mxu0 %v460
      %v843 = vpop.f32.mrf.mxu0
      %v844 = vadd.f32 0.0, %v843
      %v845 = vpop.f32.mrf.mxu0
      %846 = vdwg.mxu0
      %v847 = vtanh.pop %v529
      %v848 = vtanh.pop %v534
      %v849 = vtanh.pop %v539
      %v850 = vtanh.pop %v544
      %v851 = vtanh.pop %v549
      %v852 = vtanh.pop %v554
      %v853 = vtanh.pop %v559
      %v854 = vtanh.pop %v564
      %v855 = vtanh.pop %v569
      %v856 = vtanh.pop %v574
      %v857 = vtanh.pop %v579
      %v858 = vtanh.pop %v584
      %v859 = vtanh.pop %v589
      %v860 = vtanh.pop %v594
      %v861 = vtanh.pop %v599
      %v862 = vtanh.pop %v604
      %v863 = vtanh.pop %v609
      %v864 = vtanh.pop %v614
      %v865 = vtanh.pop %v619
      %v866 = vtanh.pop %v624
      %v867 = vtanh.pop %v629
      %v868 = vtanh.pop %v634
      %v869 = vtanh.pop %v639
      %v870 = vtanh.pop %v644
      %v871 = vtanh.pop %v649
      %v872 = vtanh.pop %v654
      %v873 = vtanh.pop %v659
      %v874 = vtanh.pop %v664
      %v875 = vtanh.pop %v669
      %v876 = vtanh.pop %v674
      %v877 = vtanh.pop %v679
      %v878 = vtanh.pop %v684
      %v879 = vtanh.pop %v689
      %v880 = vtanh.pop %v694
      %v881 = vtanh.pop %v699
      %v882 = vtanh.pop %v704
      %v883 = vtanh.pop %v709
      %v884 = vtanh.pop %v714
      %v885 = vtanh.pop %v719
      %v886 = vtanh.pop %v724
      %v887 = vtanh.pop %v729
      %v888 = vtanh.pop %v734
      %v889 = vtanh.pop %v739
      %v890 = vtanh.pop %v744
      %v891 = vtanh.pop %v749
      %v892 = vtanh.pop %v754
      %v893 = vtanh.pop %v759
      %v894 = vtanh.pop %v764
      %v895 = vtanh.pop %v769
      %v896 = vtanh.pop %v774
      %v897 = vtanh.pop %v779
      %v898 = vtanh.pop %v784
      %v899 = vtanh.pop %v789
      %v900 = vtanh.pop %v794
      %v901 = vtanh.pop %v799
      %v902 = vtanh.pop %v804
      %v903 = vtanh.pop %v809
      %v904 = vtanh.pop %v814
      %v905 = vtanh.pop %v819
      %v906 = vtanh.pop %v824
      %v907 = vtanh.pop %v829
      %v908 = vtanh.pop %v834
      %v909 = vtanh.pop %v839
      %v910 = vtanh.pop %v844
      %911 = vst [vmem:[%s201] sm:$0xff] %v847
      %912 = vst [vmem:[%s201 + $0x8] sm:$0xff] %v848
      %913 = vst [vmem:[%s201 + $0x10] sm:$0xff] %v849
      %914 = vst [vmem:[%s201 + $0x18] sm:$0xff] %v850
      %915 = vst [vmem:[%s201 + $0x20] sm:$0xff] %v851
      %916 = vst [vmem:[%s201 + $0x28] sm:$0xff] %v852
      %917 = vst [vmem:[%s201 + $0x30] sm:$0xff] %v853
      %918 = vst [vmem:[%s201 + $0x38] sm:$0xff] %v854
      %919 = vst [vmem:[%s201 + $0x40] sm:$0xff] %v855
      %920 = vst [vmem:[%s201 + $0x48] sm:$0xff] %v856
      %921 = vst [vmem:[%s201 + $0x50] sm:$0xff] %v857
      %922 = vst [vmem:[%s201 + $0x58] sm:$0xff] %v858
      %923 = vst [vmem:[%s201 + $0x60] sm:$0xff] %v859
      %924 = vst [vmem:[%s201 + $0x68] sm:$0xff] %v860
      %925 = vst [vmem:[%s201 + $0x70] sm:$0xff] %v861
      %926 = vst [vmem:[%s201 + $0x78] sm:$0xff] %v862
      %927 = vst [vmem:[%s201 + $0x80] sm:$0xff] %v863
      %928 = vst [vmem:[%s201 + $0x88] sm:$0xff] %v864
      %929 = vst [vmem:[%s201 + $0x90] sm:$0xff] %v865
      %930 = vst [vmem:[%s201 + $0x98] sm:$0xff] %v866
      %931 = vst [vmem:[%s201 + $0xa0] sm:$0xff] %v867
      %932 = vst [vmem:[%s201 + $0xa8] sm:$0xff] %v868
      %933 = vst [vmem:[%s201 + $0xb0] sm:$0xff] %v869
      %934 = vst [vmem:[%s201 + $0xb8] sm:$0xff] %v870
      %935 = vst [vmem:[%s201 + $0xc0] sm:$0xff] %v871
      %936 = vst [vmem:[%s201 + $0xc8] sm:$0xff] %v872
      %937 = vst [vmem:[%s201 + $0xd0] sm:$0xff] %v873
      %938 = vst [vmem:[%s201 + $0xd8] sm:$0xff] %v874
      %939 = vst [vmem:[%s201 + $0xe0] sm:$0xff] %v875
      %940 = vst [vmem:[%s201 + $0xe8] sm:$0xff] %v876
      %941 = vst [vmem:[%s201 + $0xf0] sm:$0xff] %v877
      %942 = vst [vmem:[%s201 + $0xf8] sm:$0xff] %v878
      %943 = vst [vmem:[%s201 + $0x100] sm:$0xff] %v879
      %944 = vst [vmem:[%s201 + $0x108] sm:$0xff] %v880
      %945 = vst [vmem:[%s201 + $0x110] sm:$0xff] %v881
      %946 = vst [vmem:[%s201 + $0x118] sm:$0xff] %v882
      %947 = vst [vmem:[%s201 + $0x120] sm:$0xff] %v883
      %948 = vst [vmem:[%s201 + $0x128] sm:$0xff] %v884
      %949 = vst [vmem:[%s201 + $0x130] sm:$0xff] %v885
      %950 = vst [vmem:[%s201 + $0x138] sm:$0xff] %v886
      %951 = vst [vmem:[%s201 + $0x140] sm:$0xff] %v887
      %952 = vst [vmem:[%s201 + $0x148] sm:$0xff] %v888
      %953 = vst [vmem:[%s201 + $0x150] sm:$0xff] %v889
      %954 = vst [vmem:[%s201 + $0x158] sm:$0xff] %v890
      %955 = vst [vmem:[%s201 + $0x160] sm:$0xff] %v891
      %956 = vst [vmem:[%s201 + $0x168] sm:$0xff] %v892
      %957 = vst [vmem:[%s201 + $0x170] sm:$0xff] %v893
      %958 = vst [vmem:[%s201 + $0x178] sm:$0xff] %v894
      %959 = vst [vmem:[%s201 + $0x180] sm:$0xff] %v895
      %960 = vst [vmem:[%s201 + $0x188] sm:$0xff] %v896
      %961 = vst [vmem:[%s201 + $0x190] sm:$0xff] %v897
      %962 = vst [vmem:[%s201 + $0x198] sm:$0xff] %v898
      %963 = vst [vmem:[%s201 + $0x1a0] sm:$0xff] %v899
      %964 = vst [vmem:[%s201 + $0x1a8] sm:$0xff] %v900
      %965 = vst [vmem:[%s201 + $0x1b0] sm:$0xff] %v901
      %966 = vst [vmem:[%s201 + $0x1b8] sm:$0xff] %v902
      %967 = vst [vmem:[%s201 + $0x1c0] sm:$0xff] %v903
      %968 = vst [vmem:[%s201 + $0x1c8] sm:$0xff] %v904
      %969 = vst [vmem:[%s201 + $0x1d0] sm:$0xff] %v905
      %970 = vst [vmem:[%s201 + $0x1d8] sm:$0xff] %v906
      %971 = vst [vmem:[%s201 + $0x1e0] sm:$0xff] %v907
      %972 = vst [vmem:[%s201 + $0x1e8] sm:$0xff] %v908
      %973 = vst [vmem:[%s201 + $0x1f0] sm:$0xff] %v909
      %974 = vst [vmem:[%s201 + $0x1f8] sm:$0xff] %v910
      %s975 = smul.u32 64, %s18
      %p976 = scmp.lt.s32.totalorder %s17, 3
      %s977 = scalar_select %p976, %s17, 3
      %p978 = scmp.lt.s32.totalorder %s975, 255
      %s979 = scalar_select %p978, %s975, 255
      %s980 = smul.addr %s977, 256
      %s981 = sadd.s32 %s979, %s980
      %s982 = smul.addr %s981, 8
      %s983 = scalar_lea.vmem %s2, %s982
      // Predicated region
      $region29: #{generator2d_forward.17} parent=27 // pred_check
        %p984 = pneg %p99
      $region30: #{generator2d_forward.17} parent=27 // pred_check_branch
        %986 = sbr.rel (%p984) target = $region32
      $region31: #{generator2d_forward.17} parent=27 // pred_region
        %s987 = smul.u32 64, %s18
      $region32: #{generator2d_forward.17} parent=27 // pred_fallthru
        _
    $region28: #{generator2d_forward.17} parent=5 // pred_fallthru
      _
    %p988 = scmp.le.s32.totalorder 2, %s8
    // Predicated region
    $region33: #{generator2d_forward.17} parent=5 // pred_check
      %p989 = pneg %p988
    $region34: #{generator2d_forward.17} parent=5 // pred_check_branch
      %991 = sbr.rel (%p989) target = $region36
    $region35: #{generator2d_forward.17} parent=5 // pred_region
      %s992 = ssub.s32 %s8, 2
      // Predicated region
      $region37: #{generator2d_forward.17} parent=35 // pred_check
        %p993 = pneg %p105
      $region38: #{generator2d_forward.17} parent=35 // pred_check_branch
        %995 = sbr.rel (%p993) target = $region40
      $region39: #{generator2d_forward.17} parent=35 // pred_region
        %s996 = smul.u32 64, %s20
        %p997 = scmp.lt.s32.totalorder %s19, 3
        %s998 = scalar_select %p997, %s19, 3
        %p999 = scmp.lt.s32.totalorder %s996, 255
        %s1000 = scalar_select %p999, %s996, 255
        %s1001 = smul.addr %s998, 256
        %s1002 = sadd.s32 %s1000, %s1001
        %s1003 = smul.addr %s1002, 8
        %s1004 = scalar_lea.vmem %s2, %s1003
      $region40: #{generator2d_forward.17} parent=35 // pred_fallthru
        _
    $region36: #{generator2d_forward.17} parent=5 // pred_fallthru
      _
  $region6: #{generator2d_forward.17} parent=0 // loop_footer
    %s12 = sadd.s32 1, %s8
  $region7: #{generator2d_forward.17} parent=0 // loop_footer_branch
    %7 = sbr.rel target = $region3
  $region8: #{generator2d_forward.17} parent=0 // loop_exit
    _

</llo_original>
